<compile_context>
chip_gen: v5e
topology: v5e:2x2
jax: 0.10.0
libtpu: 0.0.40
codegen_flags: <defaults>
</compile_context>

<pallas_src>
import functools

import jax
import jax.numpy as jnp
from jax import lax
from jax.experimental import pallas as pl
from jax.experimental.pallas import tpu as pltpu


# -----------------------------------------------------------------------------
# Fused kernel
# -----------------------------------------------------------------------------
def _basic_block_kernel(xp_ref, w1_ref, b1_ref, w2_ref, b2_ref, *rest,
                        s, Wop, L, has_proj):
    # xp_ref : (1, s*s, Lp, cin) bf16  -- parity planes of the padded input,
    #                                     spatially flattened (rows, channels)
    # w1_ref : (9, cin,  cmid) bf16    -- conv1 taps, BN1 scale folded in
    # b1_ref : (1, cmid) f32           -- BN1 bias
    # w2_ref : (9, cmid, cout) bf16    -- conv2 taps, BN2 scale folded in
    # b2_ref : (1, cout) f32           -- BN2 bias
    # [ws_ref: (cin, cout) bf16, bs_ref: (1, cout) f32]  -- projection shortcut
    # mask   : (L, 1) f32              -- 1.0 on valid output columns, else 0.0
    # o_ref  : (1, L, cout)
    # h_scr  : (Lp, cmid) bf16 VMEM scratch -- padded conv1 output
    if has_proj:
        ws_ref, bs_ref, mask_ref, o_ref, h_scr = rest
    else:
        ws_ref = bs_ref = None
        mask_ref, o_ref, h_scr = rest

    cmid = w1_ref.shape[2]
    cout = w2_ref.shape[2]
    mask = mask_ref[...]                                        # (L, 1) f32

    # ---- conv1 (stride s) + folded BN1 + ReLU -> padded h scratch -----------
    acc1 = jnp.zeros((L, cmid), jnp.float32)
    for kh in range(3):
        for kw in range(3):
            plane = (kh % s) * s + (kw % s)
            off = (kh // s) * Wop + (kw // s)
            a = xp_ref[0, plane, pl.ds(off, L), :]              # (L, cin) bf16
            acc1 = acc1 + jnp.dot(a, w1_ref[kh * 3 + kw],
                                  preferred_element_type=jnp.float32)
    h = jnp.maximum(acc1 + b1_ref[...], 0.0) * mask             # zero pad cols
    h_scr[...] = jnp.zeros_like(h_scr)                          # zero borders
    h_scr[pl.ds(Wop + 1, L), :] = h.astype(h_scr.dtype)         # interior

    # ---- conv2 (stride 1) + folded BN2 --------------------------------------
    acc2 = jnp.zeros((L, cout), jnp.float32)
    for kh in range(3):
        for kw in range(3):
            off = kh * Wop + kw
            acc2 = acc2 + jnp.dot(h_scr[pl.ds(off, L), :], w2_ref[kh * 3 + kw],
                                  preferred_element_type=jnp.float32)
    y = acc2 + b2_ref[...]

    # ---- shortcut (identity or 1x1 projection + folded BN) ------------------
    sc_plane = (1 % s) * s + (1 % s)
    sc_off = (1 // s) * Wop + (1 // s)
    xs = xp_ref[0, sc_plane, pl.ds(sc_off, L), :]               # (L, cin) bf16
    if has_proj:
        sc = jnp.dot(xs, ws_ref[...],
                     preferred_element_type=jnp.float32) + bs_ref[...]
    else:
        sc = xs.astype(jnp.float32)

    o_ref[0] = jnp.maximum(y + sc, 0.0).astype(o_ref.dtype)


def _fused_basic_block(xp, w1, b1, w2, b2, ws, bs, mask, *, s, Ho, Wo, cout):
    N, ss, Lp, cin = xp.shape
    cmid = w1.shape[-1]
    Wop = Wo + 2
    L = Ho * Wop
    has_proj = ws is not None

    kern = functools.partial(_basic_block_kernel,
                             s=s, Wop=Wop, L=L, has_proj=has_proj)

    in_specs = [
        pl.BlockSpec((1, ss, Lp, cin), lambda n: (n, 0, 0, 0)),
        pl.BlockSpec((9, cin, cmid), lambda n: (0, 0, 0)),
        pl.BlockSpec((1, cmid), lambda n: (0, 0)),
        pl.BlockSpec((9, cmid, cout), lambda n: (0, 0, 0)),
        pl.BlockSpec((1, cout), lambda n: (0, 0)),
    ]
    args = [xp, w1, b1, w2, b2]
    if has_proj:
        in_specs += [pl.BlockSpec((cin, cout), lambda n: (0, 0)),
                     pl.BlockSpec((1, cout), lambda n: (0, 0))]
        args += [ws, bs]
    in_specs += [pl.BlockSpec((L, 1), lambda n: (0, 0))]
    args += [mask]

    return pl.pallas_call(
        kern,
        out_shape=jax.ShapeDtypeStruct((N, L, cout), jnp.float32),
        grid=(N,),
        in_specs=in_specs,
        out_specs=pl.BlockSpec((1, L, cout), lambda n: (n, 0, 0)),
        scratch_shapes=[pltpu.VMEM((Lp, cmid), jnp.bfloat16)],
        compiler_params=pltpu.CompilerParams(
            dimension_semantics=("parallel",),
            vmem_limit_bytes=64 * 1024 * 1024),
    )(*args)


# -----------------------------------------------------------------------------
# Parameters & forward (glue: layout, padding, parity split, BN folding)
# -----------------------------------------------------------------------------
def _fold_bn(gamma, beta, mean, var, eps=1e-5):
    scale = gamma / jnp.sqrt(var + eps)
    bias = beta - mean * scale
    return scale.astype(jnp.float32), bias.astype(jnp.float32)


def init_basic_block_params(key, in_planes, planes, stride=1, expansion=1):
    ks = jax.random.split(key, 16)

    def bn_params(k):
        k0, k1, k2, k3 = jax.random.split(k, 4)
        return dict(
            gamma=1.0 + 0.1 * jax.random.normal(k0, (planes,), jnp.float32),
            beta=0.1 * jax.random.normal(k1, (planes,), jnp.float32),
            mean=0.1 * jax.random.normal(k2, (planes,), jnp.float32),
            var=0.5 + jax.random.uniform(k3, (planes,), jnp.float32),
        )

    p = {
        "w1": 0.1 * jax.random.normal(ks[0], (planes, in_planes, 3, 3), jnp.float32),
        "bn1": bn_params(ks[1]),
        "w2": 0.1 * jax.random.normal(ks[2], (planes, planes, 3, 3), jnp.float32),
        "bn2": bn_params(ks[3]),
    }
    if stride != 1 or in_planes != expansion * planes:
        p["ws"] = 0.1 * jax.random.normal(
            ks[4], (expansion * planes, in_planes, 1, 1), jnp.float32)
        p["bns"] = bn_params(ks[5])
    return p


def basic_block_forward(x_nchw, params, stride=1):
    N, Cin, H, W = x_nchw.shape
    s = int(stride)
    assert H % s == 0 and W % s == 0, "spatial dims must be divisible by stride"
    planes = params["w1"].shape[0]
    Ho, Wo = H // s, W // s
    Hop, Wop = Ho + 2, Wo + 2

    x = jnp.transpose(x_nchw, (0, 2, 3, 1)).astype(jnp.float32)       # NHWC

    # Pad and split into s*s parity planes, each (Hop+1, Wop), flattened.
    # (The extra bottom row keeps every in-kernel tap slice statically in-bounds.)
    Hpad, Wpad = s * (Hop + 1), s * Wop
    x_p = jnp.pad(x, ((0, 0), (1, Hpad - H - 1), (1, Wpad - W - 1), (0, 0)))
    xp = (x_p.reshape(N, Hop + 1, s, Wop, s, Cin)
              .transpose(0, 2, 4, 1, 3, 5)
              .reshape(N, s * s, (Hop + 1) * Wop, Cin)
              .astype(jnp.bfloat16))

    # Fold BN scale into conv weights; keep only the bias for the kernel.
    s1, b1 = _fold_bn(**params["bn1"])
    s2, b2 = _fold_bn(**params["bn2"])
    w1 = (params["w1"] * s1[:, None, None, None]).transpose(2, 3, 1, 0) \
        .reshape(9, Cin, planes).astype(jnp.bfloat16)
    w2 = (params["w2"] * s2[:, None, None, None]).transpose(2, 3, 1, 0) \
        .reshape(9, planes, planes).astype(jnp.bfloat16)
    b1 = b1.reshape(1, planes)
    b2 = b2.reshape(1, planes)

    if "ws" in params:
        ssc, bsc = _fold_bn(**params["bns"])
        ws = (params["ws"][:, :, 0, 0] * ssc[:, None]).T.astype(jnp.bfloat16)
        bs = bsc.reshape(1, planes)
    else:
        ws, bs = None, None

    L = Ho * Wop
    mask = (jnp.arange(L, dtype=jnp.int32) % Wop < Wo) \
        .astype(jnp.float32).reshape(L, 1)

    out_flat = _fused_basic_block(xp, w1, b1, w2, b2, ws, bs, mask,
                                  s=s, Ho=Ho, Wo=Wo, cout=planes)
    out = out_flat.reshape(N, Ho, Wop, planes)[:, :, :Wo, :]          # drop pad cols
    return jnp.transpose(out, (0, 3, 1, 2))                           # NCHW


# -----------------------------------------------------------------------------
# Pure-JAX reference (same eval-mode BN semantics, f32 precision)
# -----------------------------------------------------------------------------
def reference_forward(x_nchw, params, stride=1):
    def conv(x, w, s, pad):
        return lax.conv_general_dilated(
            x, w, (s, s), ((pad, pad), (pad, pad)),
            dimension_numbers=("NCHW", "OIHW", "NCHW"),
            precision=lax.Precision.HIGHEST)

    def bn(x, p):
        sc = p["gamma"] / jnp.sqrt(p["var"] + 1e-5)
        bi = p["beta"] - p["mean"] * sc
        return x * sc[None, :, None, None] + bi[None, :, None, None]

    out = jax.nn.relu(bn(conv(x_nchw, params["w1"], stride, 1), params["bn1"]))
    out = bn(conv(out, params["w2"], 1, 1), params["bn2"])
    if "ws" in params:
        sc = bn(conv(x_nchw, params["ws"], stride, 0), params["bns"])
    else:
        sc = x_nchw
    return jax.nn.relu(out + sc)


if __name__ == "__main__":
    N, H, W = 2, 16, 16
    # (in_planes, planes, stride): identity shortcut, projection, strided projection
    configs = [(8, 8, 1), (4, 8, 1), (4, 8, 2)]

    key = jax.random.PRNGKey(0)
    for (cin, planes, stride) in configs:
        key, kx, kp = jax.random.split(key, 3)
        x = jax.random.normal(kx, (N, cin, H, W), jnp.float32)
        params = init_basic_block_params(kp, cin, planes, stride)

        out = jax.block_until_ready(basic_block_forward(x, params, stride=stride))
        ref = reference_forward(x, params, stride=stride)

        assert out.shape == ref.shape == (N, planes, H // stride, W // stride)
        max_err = float(jnp.max(jnp.abs(out - ref)))
        # Tolerance covers the intentional bf16 MXU inputs vs the f32 reference.
        if not bool(jnp.allclose(out, ref, atol=5e-2, rtol=5e-2)):
            raise AssertionError(
                f"Pallas BasicBlock mismatch (cin={cin}, planes={planes}, "
                f"stride={stride}): max abs err = {max_err}")

    print("KERNEL_OK")
</pallas_src>

<mosaic_0001>
module attributes {stable_mosaic.version = 11 : i64} {
  func.func @_basic_block_kernel(%arg0: i32, %arg1: memref<1x1x342x8xbf16, #tpu.memory_space<vmem>>, %arg2: memref<9x8x8xbf16, #tpu.memory_space<vmem>>, %arg3: memref<1x8xf32, #tpu.memory_space<vmem>>, %arg4: memref<9x8x8xbf16, #tpu.memory_space<vmem>>, %arg5: memref<1x8xf32, #tpu.memory_space<vmem>>, %arg6: memref<288x1xf32, #tpu.memory_space<vmem>>, %arg7: memref<1x288x8xf32, #tpu.memory_space<vmem>>, %arg8: memref<342x8xbf16, #tpu.memory_space<vmem>>) attributes {dimension_semantics = [#tpu.dimension_semantics<parallel>], iteration_bounds = array<i64: 2>, scalar_prefetch = 0 : i64, scratch_operands = 1 : i64, tpu.core_type = #tpu.core_type<tc>, window_params = [{transform_indices = @transform_0, window_bounds = array<i64: 1, 1, 342, 8>}, {pipeline_mode = #tpu.pipeline_mode<synchronous>, transform_indices = @transform_1, window_bounds = array<i64: 9, 8, 8>}, {pipeline_mode = #tpu.pipeline_mode<synchronous>, transform_indices = @transform_2, window_bounds = array<i64: 1, 8>}, {pipeline_mode = #tpu.pipeline_mode<synchronous>, transform_indices = @transform_3, window_bounds = array<i64: 9, 8, 8>}, {pipeline_mode = #tpu.pipeline_mode<synchronous>, transform_indices = @transform_4, window_bounds = array<i64: 1, 8>}, {pipeline_mode = #tpu.pipeline_mode<synchronous>, transform_indices = @transform_5, window_bounds = array<i64: 288, 1>}, {transform_indices = @transform_6, window_bounds = array<i64: 1, 288, 8>}]} {
    %c0 = arith.constant 0 : index
    %c0_0 = arith.constant 0 : index
    %0 = vector.load %arg6[%c0, %c0_0] : memref<288x1xf32, #tpu.memory_space<vmem>>, vector<288x1xf32>
    %cst = arith.constant 0.000000e+00 : f32
    %1 = vector.broadcast %cst : f32 to vector<288x8xf32>
    %c0_1 = arith.constant 0 : index
    %c0_2 = arith.constant 0 : index
    %c0_3 = arith.constant 0 : index
    %c0_4 = arith.constant 0 : index
    %2 = vector.load %arg1[%c0_1, %c0_2, %c0_3, %c0_4] : memref<1x1x342x8xbf16, #tpu.memory_space<vmem>>, vector<1x1x288x8xbf16>
    %3 = vector.shape_cast %2 : vector<1x1x288x8xbf16> to vector<288x8xbf16>
    %c0_5 = arith.constant 0 : index
    %c0_6 = arith.constant 0 : index
    %c0_7 = arith.constant 0 : index
    %4 = vector.load %arg2[%c0_5, %c0_6, %c0_7] : memref<9x8x8xbf16, #tpu.memory_space<vmem>>, vector<1x8x8xbf16>
    %5 = vector.shape_cast %4 : vector<1x8x8xbf16> to vector<8x8xbf16>
    %cst_8 = arith.constant dense<0.000000e+00> : vector<288x8xf32>
    %6 = tpu.matmul %3, %5, %cst_8 {dimension_numbers = #tpu.dot_dimension_numbers<[1], [0], [0], [1], [0, 0, 1, 1], [], []>} : vector<288x8xbf16>, vector<8x8xbf16>, vector<288x8xf32> -> vector<288x8xf32>
    %7 = arith.addf %1, %6 : vector<288x8xf32>
    %c0_9 = arith.constant 0 : index
    %c0_10 = arith.constant 0 : index
    %c1 = arith.constant 1 : index
    %c0_11 = arith.constant 0 : index
    %8 = vector.load %arg1[%c0_9, %c0_10, %c1, %c0_11] : memref<1x1x342x8xbf16, #tpu.memory_space<vmem>>, vector<1x1x288x8xbf16>
    %9 = vector.shape_cast %8 : vector<1x1x288x8xbf16> to vector<288x8xbf16>
    %c1_12 = arith.constant 1 : index
    %c0_13 = arith.constant 0 : index
    %c0_14 = arith.constant 0 : index
    %10 = vector.load %arg2[%c1_12, %c0_13, %c0_14] : memref<9x8x8xbf16, #tpu.memory_space<vmem>>, vector<1x8x8xbf16>
    %11 = vector.shape_cast %10 : vector<1x8x8xbf16> to vector<8x8xbf16>
    %cst_15 = arith.constant dense<0.000000e+00> : vector<288x8xf32>
    %12 = tpu.matmul %9, %11, %cst_15 {dimension_numbers = #tpu.dot_dimension_numbers<[1], [0], [0], [1], [0, 0, 1, 1], [], []>} : vector<288x8xbf16>, vector<8x8xbf16>, vector<288x8xf32> -> vector<288x8xf32>
    %13 = arith.addf %7, %12 : vector<288x8xf32>
    %c0_16 = arith.constant 0 : index
    %c0_17 = arith.constant 0 : index
    %c2 = arith.constant 2 : index
    %c0_18 = arith.constant 0 : index
    %14 = vector.load %arg1[%c0_16, %c0_17, %c2, %c0_18] : memref<1x1x342x8xbf16, #tpu.memory_space<vmem>>, vector<1x1x288x8xbf16>
    %15 = vector.shape_cast %14 : vector<1x1x288x8xbf16> to vector<288x8xbf16>
    %c2_19 = arith.constant 2 : index
    %c0_20 = arith.constant 0 : index
    %c0_21 = arith.constant 0 : index
    %16 = vector.load %arg2[%c2_19, %c0_20, %c0_21] : memref<9x8x8xbf16, #tpu.memory_space<vmem>>, vector<1x8x8xbf16>
    %17 = vector.shape_cast %16 : vector<1x8x8xbf16> to vector<8x8xbf16>
    %cst_22 = arith.constant dense<0.000000e+00> : vector<288x8xf32>
    %18 = tpu.matmul %15, %17, %cst_22 {dimension_numbers = #tpu.dot_dimension_numbers<[1], [0], [0], [1], [0, 0, 1, 1], [], []>} : vector<288x8xbf16>, vector<8x8xbf16>, vector<288x8xf32> -> vector<288x8xf32>
    %19 = arith.addf %13, %18 : vector<288x8xf32>
    %c0_23 = arith.constant 0 : index
    %c0_24 = arith.constant 0 : index
    %c18 = arith.constant 18 : index
    %c0_25 = arith.constant 0 : index
    %20 = vector.load %arg1[%c0_23, %c0_24, %c18, %c0_25] : memref<1x1x342x8xbf16, #tpu.memory_space<vmem>>, vector<1x1x288x8xbf16>
    %21 = vector.shape_cast %20 : vector<1x1x288x8xbf16> to vector<288x8xbf16>
    %c3 = arith.constant 3 : index
    %c0_26 = arith.constant 0 : index
    %c0_27 = arith.constant 0 : index
    %22 = vector.load %arg2[%c3, %c0_26, %c0_27] : memref<9x8x8xbf16, #tpu.memory_space<vmem>>, vector<1x8x8xbf16>
    %23 = vector.shape_cast %22 : vector<1x8x8xbf16> to vector<8x8xbf16>
    %cst_28 = arith.constant dense<0.000000e+00> : vector<288x8xf32>
    %24 = tpu.matmul %21, %23, %cst_28 {dimension_numbers = #tpu.dot_dimension_numbers<[1], [0], [0], [1], [0, 0, 1, 1], [], []>} : vector<288x8xbf16>, vector<8x8xbf16>, vector<288x8xf32> -> vector<288x8xf32>
    %25 = arith.addf %19, %24 : vector<288x8xf32>
    %c0_29 = arith.constant 0 : index
    %c0_30 = arith.constant 0 : index
    %c19 = arith.constant 19 : index
    %c0_31 = arith.constant 0 : index
    %26 = vector.load %arg1[%c0_29, %c0_30, %c19, %c0_31] : memref<1x1x342x8xbf16, #tpu.memory_space<vmem>>, vector<1x1x288x8xbf16>
    %27 = vector.shape_cast %26 : vector<1x1x288x8xbf16> to vector<288x8xbf16>
    %c4 = arith.constant 4 : index
    %c0_32 = arith.constant 0 : index
    %c0_33 = arith.constant 0 : index
    %28 = vector.load %arg2[%c4, %c0_32, %c0_33] : memref<9x8x8xbf16, #tpu.memory_space<vmem>>, vector<1x8x8xbf16>
    %29 = vector.shape_cast %28 : vector<1x8x8xbf16> to vector<8x8xbf16>
    %cst_34 = arith.constant dense<0.000000e+00> : vector<288x8xf32>
    %30 = tpu.matmul %27, %29, %cst_34 {dimension_numbers = #tpu.dot_dimension_numbers<[1], [0], [0], [1], [0, 0, 1, 1], [], []>} : vector<288x8xbf16>, vector<8x8xbf16>, vector<288x8xf32> -> vector<288x8xf32>
    %31 = arith.addf %25, %30 : vector<288x8xf32>
    %c0_35 = arith.constant 0 : index
    %c0_36 = arith.constant 0 : index
    %c20 = arith.constant 20 : index
    %c0_37 = arith.constant 0 : index
    %32 = vector.load %arg1[%c0_35, %c0_36, %c20, %c0_37] : memref<1x1x342x8xbf16, #tpu.memory_space<vmem>>, vector<1x1x288x8xbf16>
    %33 = vector.shape_cast %32 : vector<1x1x288x8xbf16> to vector<288x8xbf16>
    %c5 = arith.constant 5 : index
    %c0_38 = arith.constant 0 : index
    %c0_39 = arith.constant 0 : index
    %34 = vector.load %arg2[%c5, %c0_38, %c0_39] : memref<9x8x8xbf16, #tpu.memory_space<vmem>>, vector<1x8x8xbf16>
    %35 = vector.shape_cast %34 : vector<1x8x8xbf16> to vector<8x8xbf16>
    %cst_40 = arith.constant dense<0.000000e+00> : vector<288x8xf32>
    %36 = tpu.matmul %33, %35, %cst_40 {dimension_numbers = #tpu.dot_dimension_numbers<[1], [0], [0], [1], [0, 0, 1, 1], [], []>} : vector<288x8xbf16>, vector<8x8xbf16>, vector<288x8xf32> -> vector<288x8xf32>
    %37 = arith.addf %31, %36 : vector<288x8xf32>
    %c0_41 = arith.constant 0 : index
    %c0_42 = arith.constant 0 : index
    %c36 = arith.constant 36 : index
    %c0_43 = arith.constant 0 : index
    %38 = vector.load %arg1[%c0_41, %c0_42, %c36, %c0_43] : memref<1x1x342x8xbf16, #tpu.memory_space<vmem>>, vector<1x1x288x8xbf16>
    %39 = vector.shape_cast %38 : vector<1x1x288x8xbf16> to vector<288x8xbf16>
    %c6 = arith.constant 6 : index
    %c0_44 = arith.constant 0 : index
    %c0_45 = arith.constant 0 : index
    %40 = vector.load %arg2[%c6, %c0_44, %c0_45] : memref<9x8x8xbf16, #tpu.memory_space<vmem>>, vector<1x8x8xbf16>
    %41 = vector.shape_cast %40 : vector<1x8x8xbf16> to vector<8x8xbf16>
    %cst_46 = arith.constant dense<0.000000e+00> : vector<288x8xf32>
    %42 = tpu.matmul %39, %41, %cst_46 {dimension_numbers = #tpu.dot_dimension_numbers<[1], [0], [0], [1], [0, 0, 1, 1], [], []>} : vector<288x8xbf16>, vector<8x8xbf16>, vector<288x8xf32> -> vector<288x8xf32>
    %43 = arith.addf %37, %42 : vector<288x8xf32>
    %c0_47 = arith.constant 0 : index
    %c0_48 = arith.constant 0 : index
    %c37 = arith.constant 37 : index
    %c0_49 = arith.constant 0 : index
    %44 = vector.load %arg1[%c0_47, %c0_48, %c37, %c0_49] : memref<1x1x342x8xbf16, #tpu.memory_space<vmem>>, vector<1x1x288x8xbf16>
    %45 = vector.shape_cast %44 : vector<1x1x288x8xbf16> to vector<288x8xbf16>
    %c7 = arith.constant 7 : index
    %c0_50 = arith.constant 0 : index
    %c0_51 = arith.constant 0 : index
    %46 = vector.load %arg2[%c7, %c0_50, %c0_51] : memref<9x8x8xbf16, #tpu.memory_space<vmem>>, vector<1x8x8xbf16>
    %47 = vector.shape_cast %46 : vector<1x8x8xbf16> to vector<8x8xbf16>
    %cst_52 = arith.constant dense<0.000000e+00> : vector<288x8xf32>
    %48 = tpu.matmul %45, %47, %cst_52 {dimension_numbers = #tpu.dot_dimension_numbers<[1], [0], [0], [1], [0, 0, 1, 1], [], []>} : vector<288x8xbf16>, vector<8x8xbf16>, vector<288x8xf32> -> vector<288x8xf32>
    %49 = arith.addf %43, %48 : vector<288x8xf32>
    %c0_53 = arith.constant 0 : index
    %c0_54 = arith.constant 0 : index
    %c38 = arith.constant 38 : index
    %c0_55 = arith.constant 0 : index
    %50 = vector.load %arg1[%c0_53, %c0_54, %c38, %c0_55] : memref<1x1x342x8xbf16, #tpu.memory_space<vmem>>, vector<1x1x288x8xbf16>
    %51 = vector.shape_cast %50 : vector<1x1x288x8xbf16> to vector<288x8xbf16>
    %c8 = arith.constant 8 : index
    %c0_56 = arith.constant 0 : index
    %c0_57 = arith.constant 0 : index
    %52 = vector.load %arg2[%c8, %c0_56, %c0_57] : memref<9x8x8xbf16, #tpu.memory_space<vmem>>, vector<1x8x8xbf16>
    %53 = vector.shape_cast %52 : vector<1x8x8xbf16> to vector<8x8xbf16>
    %cst_58 = arith.constant dense<0.000000e+00> : vector<288x8xf32>
    %54 = tpu.matmul %51, %53, %cst_58 {dimension_numbers = #tpu.dot_dimension_numbers<[1], [0], [0], [1], [0, 0, 1, 1], [], []>} : vector<288x8xbf16>, vector<8x8xbf16>, vector<288x8xf32> -> vector<288x8xf32>
    %55 = arith.addf %49, %54 : vector<288x8xf32>
    %c0_59 = arith.constant 0 : index
    %c0_60 = arith.constant 0 : index
    %56 = vector.load %arg3[%c0_59, %c0_60] : memref<1x8xf32, #tpu.memory_space<vmem>>, vector<1x8xf32>
    %57 = vector.broadcast %56 : vector<1x8xf32> to vector<288x8xf32>
    %58 = arith.addf %55, %57 : vector<288x8xf32>
    %cst_61 = arith.constant 0.000000e+00 : f32
    %59 = vector.broadcast %cst_61 : f32 to vector<288x8xf32>
    %60 = arith.maximumf %58, %59 : vector<288x8xf32>
    %61 = vector.broadcast %0 : vector<288x1xf32> to vector<288x8xf32>
    %62 = arith.mulf %60, %61 : vector<288x8xf32>
    %cst_62 = arith.constant 0.000000e+00 : bf16
    %63 = vector.broadcast %cst_62 : bf16 to vector<342x8xbf16>
    %c0_63 = arith.constant 0 : index
    %c0_64 = arith.constant 0 : index
    %64 = vector.load %arg8[%c0_63, %c0_64] : memref<342x8xbf16, #tpu.memory_space<vmem>>, vector<342x8xbf16>
    tpu.vector_store %arg8[%c0_63, %c0_64], %63 {strides = array<i32>} : memref<342x8xbf16, #tpu.memory_space<vmem>>, vector<342x8xbf16>,
    %65 = arith.truncf %62 : vector<288x8xf32> to vector<288x8xbf16>
    %c19_65 = arith.constant 19 : index
    %c0_66 = arith.constant 0 : index
    %66 = vector.load %arg8[%c19_65, %c0_66] : memref<342x8xbf16, #tpu.memory_space<vmem>>, vector<288x8xbf16>
    tpu.vector_store %arg8[%c19_65, %c0_66], %65 {strides = array<i32>} : memref<342x8xbf16, #tpu.memory_space<vmem>>, vector<288x8xbf16>,
    %cst_67 = arith.constant 0.000000e+00 : f32
    %67 = vector.broadcast %cst_67 : f32 to vector<288x8xf32>
    %c0_68 = arith.constant 0 : index
    %c0_69 = arith.constant 0 : index
    %68 = vector.load %arg8[%c0_68, %c0_69] : memref<342x8xbf16, #tpu.memory_space<vmem>>, vector<288x8xbf16>
    %c0_70 = arith.constant 0 : index
    %c0_71 = arith.constant 0 : index
    %c0_72 = arith.constant 0 : index
    %69 = vector.load %arg4[%c0_70, %c0_71, %c0_72] : memref<9x8x8xbf16, #tpu.memory_space<vmem>>, vector<1x8x8xbf16>
    %70 = vector.shape_cast %69 : vector<1x8x8xbf16> to vector<8x8xbf16>
    %cst_73 = arith.constant dense<0.000000e+00> : vector<288x8xf32>
    %71 = tpu.matmul %68, %70, %cst_73 {dimension_numbers = #tpu.dot_dimension_numbers<[1], [0], [0], [1], [0, 0, 1, 1], [], []>} : vector<288x8xbf16>, vector<8x8xbf16>, vector<288x8xf32> -> vector<288x8xf32>
    %72 = arith.addf %67, %71 : vector<288x8xf32>
    %c1_74 = arith.constant 1 : index
    %c0_75 = arith.constant 0 : index
    %73 = vector.load %arg8[%c1_74, %c0_75] : memref<342x8xbf16, #tpu.memory_space<vmem>>, vector<288x8xbf16>
    %c1_76 = arith.constant 1 : index
    %c0_77 = arith.constant 0 : index
    %c0_78 = arith.constant 0 : index
    %74 = vector.load %arg4[%c1_76, %c0_77, %c0_78] : memref<9x8x8xbf16, #tpu.memory_space<vmem>>, vector<1x8x8xbf16>
    %75 = vector.shape_cast %74 : vector<1x8x8xbf16> to vector<8x8xbf16>
    %cst_79 = arith.constant dense<0.000000e+00> : vector<288x8xf32>
    %76 = tpu.matmul %73, %75, %cst_79 {dimension_numbers = #tpu.dot_dimension_numbers<[1], [0], [0], [1], [0, 0, 1, 1], [], []>} : vector<288x8xbf16>, vector<8x8xbf16>, vector<288x8xf32> -> vector<288x8xf32>
    %77 = arith.addf %72, %76 : vector<288x8xf32>
    %c2_80 = arith.constant 2 : index
    %c0_81 = arith.constant 0 : index
    %78 = vector.load %arg8[%c2_80, %c0_81] : memref<342x8xbf16, #tpu.memory_space<vmem>>, vector<288x8xbf16>
    %c2_82 = arith.constant 2 : index
    %c0_83 = arith.constant 0 : index
    %c0_84 = arith.constant 0 : index
    %79 = vector.load %arg4[%c2_82, %c0_83, %c0_84] : memref<9x8x8xbf16, #tpu.memory_space<vmem>>, vector<1x8x8xbf16>
    %80 = vector.shape_cast %79 : vector<1x8x8xbf16> to vector<8x8xbf16>
    %cst_85 = arith.constant dense<0.000000e+00> : vector<288x8xf32>
    %81 = tpu.matmul %78, %80, %cst_85 {dimension_numbers = #tpu.dot_dimension_numbers<[1], [0], [0], [1], [0, 0, 1, 1], [], []>} : vector<288x8xbf16>, vector<8x8xbf16>, vector<288x8xf32> -> vector<288x8xf32>
    %82 = arith.addf %77, %81 : vector<288x8xf32>
    %c18_86 = arith.constant 18 : index
    %c0_87 = arith.constant 0 : index
    %83 = vector.load %arg8[%c18_86, %c0_87] : memref<342x8xbf16, #tpu.memory_space<vmem>>, vector<288x8xbf16>
    %c3_88 = arith.constant 3 : index
    %c0_89 = arith.constant 0 : index
    %c0_90 = arith.constant 0 : index
    %84 = vector.load %arg4[%c3_88, %c0_89, %c0_90] : memref<9x8x8xbf16, #tpu.memory_space<vmem>>, vector<1x8x8xbf16>
    %85 = vector.shape_cast %84 : vector<1x8x8xbf16> to vector<8x8xbf16>
    %cst_91 = arith.constant dense<0.000000e+00> : vector<288x8xf32>
    %86 = tpu.matmul %83, %85, %cst_91 {dimension_numbers = #tpu.dot_dimension_numbers<[1], [0], [0], [1], [0, 0, 1, 1], [], []>} : vector<288x8xbf16>, vector<8x8xbf16>, vector<288x8xf32> -> vector<288x8xf32>
    %87 = arith.addf %82, %86 : vector<288x8xf32>
    %c19_92 = arith.constant 19 : index
    %c0_93 = arith.constant 0 : index
    %88 = vector.load %arg8[%c19_92, %c0_93] : memref<342x8xbf16, #tpu.memory_space<vmem>>, vector<288x8xbf16>
    %c4_94 = arith.constant 4 : index
    %c0_95 = arith.constant 0 : index
    %c0_96 = arith.constant 0 : index
    %89 = vector.load %arg4[%c4_94, %c0_95, %c0_96] : memref<9x8x8xbf16, #tpu.memory_space<vmem>>, vector<1x8x8xbf16>
    %90 = vector.shape_cast %89 : vector<1x8x8xbf16> to vector<8x8xbf16>
    %cst_97 = arith.constant dense<0.000000e+00> : vector<288x8xf32>
    %91 = tpu.matmul %88, %90, %cst_97 {dimension_numbers = #tpu.dot_dimension_numbers<[1], [0], [0], [1], [0, 0, 1, 1], [], []>} : vector<288x8xbf16>, vector<8x8xbf16>, vector<288x8xf32> -> vector<288x8xf32>
    %92 = arith.addf %87, %91 : vector<288x8xf32>
    %c20_98 = arith.constant 20 : index
    %c0_99 = arith.constant 0 : index
    %93 = vector.load %arg8[%c20_98, %c0_99] : memref<342x8xbf16, #tpu.memory_space<vmem>>, vector<288x8xbf16>
    %c5_100 = arith.constant 5 : index
    %c0_101 = arith.constant 0 : index
    %c0_102 = arith.constant 0 : index
    %94 = vector.load %arg4[%c5_100, %c0_101, %c0_102] : memref<9x8x8xbf16, #tpu.memory_space<vmem>>, vector<1x8x8xbf16>
    %95 = vector.shape_cast %94 : vector<1x8x8xbf16> to vector<8x8xbf16>
    %cst_103 = arith.constant dense<0.000000e+00> : vector<288x8xf32>
    %96 = tpu.matmul %93, %95, %cst_103 {dimension_numbers = #tpu.dot_dimension_numbers<[1], [0], [0], [1], [0, 0, 1, 1], [], []>} : vector<288x8xbf16>, vector<8x8xbf16>, vector<288x8xf32> -> vector<288x8xf32>
    %97 = arith.addf %92, %96 : vector<288x8xf32>
    %c36_104 = arith.constant 36 : index
    %c0_105 = arith.constant 0 : index
    %98 = vector.load %arg8[%c36_104, %c0_105] : memref<342x8xbf16, #tpu.memory_space<vmem>>, vector<288x8xbf16>
    %c6_106 = arith.constant 6 : index
    %c0_107 = arith.constant 0 : index
    %c0_108 = arith.constant 0 : index
    %99 = vector.load %arg4[%c6_106, %c0_107, %c0_108] : memref<9x8x8xbf16, #tpu.memory_space<vmem>>, vector<1x8x8xbf16>
    %100 = vector.shape_cast %99 : vector<1x8x8xbf16> to vector<8x8xbf16>
    %cst_109 = arith.constant dense<0.000000e+00> : vector<288x8xf32>
    %101 = tpu.matmul %98, %100, %cst_109 {dimension_numbers = #tpu.dot_dimension_numbers<[1], [0], [0], [1], [0, 0, 1, 1], [], []>} : vector<288x8xbf16>, vector<8x8xbf16>, vector<288x8xf32> -> vector<288x8xf32>
    %102 = arith.addf %97, %101 : vector<288x8xf32>
    %c37_110 = arith.constant 37 : index
    %c0_111 = arith.constant 0 : index
    %103 = vector.load %arg8[%c37_110, %c0_111] : memref<342x8xbf16, #tpu.memory_space<vmem>>, vector<288x8xbf16>
    %c7_112 = arith.constant 7 : index
    %c0_113 = arith.constant 0 : index
    %c0_114 = arith.constant 0 : index
    %104 = vector.load %arg4[%c7_112, %c0_113, %c0_114] : memref<9x8x8xbf16, #tpu.memory_space<vmem>>, vector<1x8x8xbf16>
    %105 = vector.shape_cast %104 : vector<1x8x8xbf16> to vector<8x8xbf16>
    %cst_115 = arith.constant dense<0.000000e+00> : vector<288x8xf32>
    %106 = tpu.matmul %103, %105, %cst_115 {dimension_numbers = #tpu.dot_dimension_numbers<[1], [0], [0], [1], [0, 0, 1, 1], [], []>} : vector<288x8xbf16>, vector<8x8xbf16>, vector<288x8xf32> -> vector<288x8xf32>
    %107 = arith.addf %102, %106 : vector<288x8xf32>
    %c38_116 = arith.constant 38 : index
    %c0_117 = arith.constant 0 : index
    %108 = vector.load %arg8[%c38_116, %c0_117] : memref<342x8xbf16, #tpu.memory_space<vmem>>, vector<288x8xbf16>
    %c8_118 = arith.constant 8 : index
    %c0_119 = arith.constant 0 : index
    %c0_120 = arith.constant 0 : index
    %109 = vector.load %arg4[%c8_118, %c0_119, %c0_120] : memref<9x8x8xbf16, #tpu.memory_space<vmem>>, vector<1x8x8xbf16>
    %110 = vector.shape_cast %109 : vector<1x8x8xbf16> to vector<8x8xbf16>
    %cst_121 = arith.constant dense<0.000000e+00> : vector<288x8xf32>
    %111 = tpu.matmul %108, %110, %cst_121 {dimension_numbers = #tpu.dot_dimension_numbers<[1], [0], [0], [1], [0, 0, 1, 1], [], []>} : vector<288x8xbf16>, vector<8x8xbf16>, vector<288x8xf32> -> vector<288x8xf32>
    %112 = arith.addf %107, %111 : vector<288x8xf32>
    %c0_122 = arith.constant 0 : index
    %c0_123 = arith.constant 0 : index
    %113 = vector.load %arg5[%c0_122, %c0_123] : memref<1x8xf32, #tpu.memory_space<vmem>>, vector<1x8xf32>
    %114 = vector.broadcast %113 : vector<1x8xf32> to vector<288x8xf32>
    %115 = arith.addf %112, %114 : vector<288x8xf32>
    %c0_124 = arith.constant 0 : index
    %c0_125 = arith.constant 0 : index
    %c19_126 = arith.constant 19 : index
    %c0_127 = arith.constant 0 : index
    %116 = vector.load %arg1[%c0_124, %c0_125, %c19_126, %c0_127] : memref<1x1x342x8xbf16, #tpu.memory_space<vmem>>, vector<1x1x288x8xbf16>
    %117 = vector.shape_cast %116 : vector<1x1x288x8xbf16> to vector<288x8xbf16>
    %118 = arith.extf %117 : vector<288x8xbf16> to vector<288x8xf32>
    %119 = arith.addf %115, %118 : vector<288x8xf32>
    %cst_128 = arith.constant 0.000000e+00 : f32
    %120 = vector.broadcast %cst_128 : f32 to vector<288x8xf32>
    %121 = arith.maximumf %119, %120 : vector<288x8xf32>
    %c0_129 = arith.constant 0 : index
    %c0_130 = arith.constant 0 : index
    %c0_131 = arith.constant 0 : index
    %122 = vector.load %arg7[%c0_129, %c0_130, %c0_131] : memref<1x288x8xf32, #tpu.memory_space<vmem>>, vector<1x288x8xf32>
    %123 = vector.shape_cast %122 : vector<1x288x8xf32> to vector<288x8xf32>
    %124 = vector.shape_cast %121 : vector<288x8xf32> to vector<1x288x8xf32>
    tpu.vector_store %arg7[%c0_129, %c0_130, %c0_131], %124 {strides = array<i32>} : memref<1x288x8xf32, #tpu.memory_space<vmem>>, vector<1x288x8xf32>,
    return
  }
  func.func @transform_0(%arg0: i32) -> (i32, i32, i32, i32) {
    %c0_i32 = arith.constant 0 : i32
    %c0_i32_0 = arith.constant 0 : i32
    %c0_i32_1 = arith.constant 0 : i32
    %c0_i32_2 = arith.constant 0 : i32
    return %arg0, %c0_i32, %c0_i32_0, %c0_i32_1 : i32, i32, i32, i32
  }
  func.func @transform_1(%arg0: i32) -> (i32, i32, i32) {
    %c0_i32 = arith.constant 0 : i32
    %c0_i32_0 = arith.constant 0 : i32
    %c0_i32_1 = arith.constant 0 : i32
    %c0_i32_2 = arith.constant 0 : i32
    return %c0_i32, %c0_i32_0, %c0_i32_1 : i32, i32, i32
  }
  func.func @transform_2(%arg0: i32) -> (i32, i32) {
    %c0_i32 = arith.constant 0 : i32
    %c0_i32_0 = arith.constant 0 : i32
    %c0_i32_1 = arith.constant 0 : i32
    return %c0_i32, %c0_i32_0 : i32, i32
  }
  func.func @transform_3(%arg0: i32) -> (i32, i32, i32) {
    %c0_i32 = arith.constant 0 : i32
    %c0_i32_0 = arith.constant 0 : i32
    %c0_i32_1 = arith.constant 0 : i32
    %c0_i32_2 = arith.constant 0 : i32
    return %c0_i32, %c0_i32_0, %c0_i32_1 : i32, i32, i32
  }
  func.func @transform_4(%arg0: i32) -> (i32, i32) {
    %c0_i32 = arith.constant 0 : i32
    %c0_i32_0 = arith.constant 0 : i32
    %c0_i32_1 = arith.constant 0 : i32
    return %c0_i32, %c0_i32_0 : i32, i32
  }
  func.func @transform_5(%arg0: i32) -> (i32, i32) {
    %c0_i32 = arith.constant 0 : i32
    %c0_i32_0 = arith.constant 0 : i32
    %c0_i32_1 = arith.constant 0 : i32
    return %c0_i32, %c0_i32_0 : i32, i32
  }
  func.func @transform_6(%arg0: i32) -> (i32, i32, i32) {
    %c0_i32 = arith.constant 0 : i32
    %c0_i32_0 = arith.constant 0 : i32
    %c0_i32_1 = arith.constant 0 : i32
    return %arg0, %c0_i32, %c0_i32_0 : i32, i32, i32
  }
}

</mosaic_0001>

<llo_original>
// kernel: tpu_custom_call.1
$region0: #{tpu_custom_call.1}
  #allocation0 [shape = 'u32[]', space=smem, size = 0x4, offset = 0x4, fixed_abs, tag = 'smem constant byte address 0x4 - core index']
  #allocation1 [shape = 'u32[72,128]{1,0:T(1,128)}', space=vmem, size = 0x9000, scoped, tag = 'internal scratch']
  #allocation2 [shape = 'bf16[342,8]{1,0:T(8,128)(2,1)}', space=vmem, size = 0x15800, scoped, tag = 'scratch operand']
  %s0 = inlined_call_operand.vmem [shape: bf16[2,1,342,8], index: 0, kind: input, shape index: {}]
  %s1 = inlined_call_operand.vmem [shape: bf16[9,8,8], index: 1, kind: input, shape index: {}]
  %s2 = inlined_call_operand.vmem [shape: f32[1,8], index: 2, kind: input, shape index: {}]
  %s3 = inlined_call_operand.vmem [shape: bf16[9,8,8], index: 3, kind: input, shape index: {}]
  %s4 = inlined_call_operand.vmem [shape: f32[1,8], index: 4, kind: input, shape index: {}]
  %s5 = inlined_call_operand.vmem [shape: f32[288,1], index: 5, kind: input, shape index: {}]
  %s6 = inlined_call_operand.vmem [shape: f32[2,288,8], index: 6, kind: output, shape index: {}]
  %s7 = sld [smem:[#allocation0]]
  $region57: #{tpu_custom_call.1} parent=0
    _
  %s9 = ssub.s32 1, %s7
  %s10 = scalar_select 0, %s9, %s7
  loop: start=0, step=1, limit=4
  $region2: #{tpu_custom_call.1} parent=0 // loop_pre_header
    _
  $region3: #{tpu_custom_call.1} parent=0 // loop_header
    %s12 = sphi 0, %s16
    %p13 = scmp.ge.s32.totalorder %s12, 4
    %s22 = sphi 0, %s24
    %s25 = sphi 0, %s22
    %s26 = sphi 0, %s25
    %s42 = sphi 0, %s26
    %s46 = sphi 0, %s46
    %s48 = sphi 0, %s46
    %s49 = sphi 0, %s48
    %s63 = sphi 0, %s49
    %s67 = sphi 0, %s67
    %s69 = sphi 0, %s67
    %s70 = sphi 0, %s69
    %s84 = sphi 0, %s70
    %s88 = sphi 0, %s88
    %s90 = sphi 0, %s88
    %s91 = sphi 0, %s90
    %s105 = sphi 0, %s91
    %s109 = sphi 0, %s109
    %s111 = sphi 0, %s109
    %s112 = sphi 0, %s111
    %s126 = sphi 0, %s112
    %s130 = sphi 0, %s130
    %s132 = sphi 0, %s130
    %s133 = sphi 0, %s132
    %s147 = sphi 0, %s133
    %s153 = sphi 0, %s155
    %s156 = sphi 0, %s153
    %s157 = sphi 0, %s156
    %s173 = sphi 0, %s157
  $region4: #{tpu_custom_call.1} parent=0 // loop_header_branch
    %15 = sbr.rel (%p13) target = $region8
  $region5: #{tpu_custom_call.1} parent=0 // loop_body
    %s17 = ssub.s32 %s12, 1
    %s18 = ssub.s32 %s12, 2
    %s19 = sadd.s32 %s12, 1
    %s20 = ssub.s32 %s12, %s19
    %p21 = scmp.eq.s32.totalorder %s20, 0
    %s23 = sadd.s32 %s22, 1
    %s24 = scalar_select %p21, %s22, %s23
    %p27 = pneg %p21
    %p28 = scmp.eq.s32.totalorder %s12, 1
    %p29 = por %p27, %p28
    %p30 = scmp.ne.s32.totalorder %s22, %s25
    %p31 = scmp.eq.s32.totalorder %s12, 0
    %p32 = por %p30, %p31
    %p33 = scmp.ne.s32.totalorder %s22, %s25
    %p34 = scmp.eq.s32.totalorder %s17, 1
    %p35 = por %p33, %p34
    %p36 = scmp.ne.s32.totalorder %s25, %s26
    %p37 = scmp.eq.s32.totalorder %s17, 0
    %p38 = por %p36, %p37
    %p39 = scmp.ne.s32.totalorder %s25, %s26
    %p40 = scmp.eq.s32.totalorder %s18, 1
    %p41 = por %p39, %p40
    %p43 = scmp.ne.s32.totalorder %s26, %s42
    %p44 = scmp.eq.s32.totalorder %s18, 0
    %p45 = por %p43, %p44
    %s47 = sadd.s32 %s46, 1
    %p50 = scmp.eq.s32.totalorder %s12, 1
    %p51 = scmp.ne.s32.totalorder %s46, %s48
    %p52 = scmp.eq.s32.totalorder %s12, 0
    %p53 = por %p51, %p52
    %p54 = scmp.ne.s32.totalorder %s46, %s48
    %p55 = scmp.eq.s32.totalorder %s17, 1
    %p56 = por %p54, %p55
    %p57 = scmp.ne.s32.totalorder %s48, %s49
    %p58 = scmp.eq.s32.totalorder %s17, 0
    %p59 = por %p57, %p58
    %p60 = scmp.ne.s32.totalorder %s48, %s49
    %p61 = scmp.eq.s32.totalorder %s18, 1
    %p62 = por %p60, %p61
    %p64 = scmp.ne.s32.totalorder %s49, %s63
    %p65 = scmp.eq.s32.totalorder %s18, 0
    %p66 = por %p64, %p65
    %s68 = sadd.s32 %s67, 1
    %p71 = scmp.eq.s32.totalorder %s12, 1
    %p72 = scmp.ne.s32.totalorder %s67, %s69
    %p73 = scmp.eq.s32.totalorder %s12, 0
    %p74 = por %p72, %p73
    %p75 = scmp.ne.s32.totalorder %s67, %s69
    %p76 = scmp.eq.s32.totalorder %s17, 1
    %p77 = por %p75, %p76
    %p78 = scmp.ne.s32.totalorder %s69, %s70
    %p79 = scmp.eq.s32.totalorder %s17, 0
    %p80 = por %p78, %p79
    %p81 = scmp.ne.s32.totalorder %s69, %s70
    %p82 = scmp.eq.s32.totalorder %s18, 1
    %p83 = por %p81, %p82
    %p85 = scmp.ne.s32.totalorder %s70, %s84
    %p86 = scmp.eq.s32.totalorder %s18, 0
    %p87 = por %p85, %p86
    %s89 = sadd.s32 %s88, 1
    %p92 = scmp.eq.s32.totalorder %s12, 1
    %p93 = scmp.ne.s32.totalorder %s88, %s90
    %p94 = scmp.eq.s32.totalorder %s12, 0
    %p95 = por %p93, %p94
    %p96 = scmp.ne.s32.totalorder %s88, %s90
    %p97 = scmp.eq.s32.totalorder %s17, 1
    %p98 = por %p96, %p97
    %p99 = scmp.ne.s32.totalorder %s90, %s91
    %p100 = scmp.eq.s32.totalorder %s17, 0
    %p101 = por %p99, %p100
    %p102 = scmp.ne.s32.totalorder %s90, %s91
    %p103 = scmp.eq.s32.totalorder %s18, 1
    %p104 = por %p102, %p103
    %p106 = scmp.ne.s32.totalorder %s91, %s105
    %p107 = scmp.eq.s32.totalorder %s18, 0
    %p108 = por %p106, %p107
    %s110 = sadd.s32 %s109, 1
    %p113 = scmp.eq.s32.totalorder %s12, 1
    %p114 = scmp.ne.s32.totalorder %s109, %s111
    %p115 = scmp.eq.s32.totalorder %s12, 0
    %p116 = por %p114, %p115
    %p117 = scmp.ne.s32.totalorder %s109, %s111
    %p118 = scmp.eq.s32.totalorder %s17, 1
    %p119 = por %p117, %p118
    %p120 = scmp.ne.s32.totalorder %s111, %s112
    %p121 = scmp.eq.s32.totalorder %s17, 0
    %p122 = por %p120, %p121
    %p123 = scmp.ne.s32.totalorder %s111, %s112
    %p124 = scmp.eq.s32.totalorder %s18, 1
    %p125 = por %p123, %p124
    %p127 = scmp.ne.s32.totalorder %s112, %s126
    %p128 = scmp.eq.s32.totalorder %s18, 0
    %p129 = por %p127, %p128
    %s131 = sadd.s32 %s130, 1
    %p134 = scmp.eq.s32.totalorder %s12, 1
    %p135 = scmp.ne.s32.totalorder %s130, %s132
    %p136 = scmp.eq.s32.totalorder %s12, 0
    %p137 = por %p135, %p136
    %p138 = scmp.ne.s32.totalorder %s130, %s132
    %p139 = scmp.eq.s32.totalorder %s17, 1
    %p140 = por %p138, %p139
    %p141 = scmp.ne.s32.totalorder %s132, %s133
    %p142 = scmp.eq.s32.totalorder %s17, 0
    %p143 = por %p141, %p142
    %p144 = scmp.ne.s32.totalorder %s132, %s133
    %p145 = scmp.eq.s32.totalorder %s18, 1
    %p146 = por %p144, %p145
    %p148 = scmp.ne.s32.totalorder %s133, %s147
    %p149 = scmp.eq.s32.totalorder %s18, 0
    %p150 = por %p148, %p149
    %s151 = ssub.s32 %s12, %s19
    %p152 = scmp.eq.s32.totalorder %s151, 0
    %s154 = sadd.s32 %s153, 1
    %s155 = scalar_select %p152, %s153, %s154
    %p158 = pneg %p152
    %p159 = scmp.eq.s32.totalorder %s12, 1
    %p160 = por %p158, %p159
    %p161 = scmp.ne.s32.totalorder %s153, %s156
    %p162 = scmp.eq.s32.totalorder %s12, 0
    %p163 = por %p161, %p162
    %p164 = scmp.ne.s32.totalorder %s153, %s156
    %p165 = scmp.eq.s32.totalorder %s17, 1
    %p166 = por %p164, %p165
    %p167 = scmp.ne.s32.totalorder %s156, %s157
    %p168 = scmp.eq.s32.totalorder %s17, 0
    %p169 = por %p167, %p168
    %p170 = scmp.ne.s32.totalorder %s156, %s157
    %p171 = scmp.eq.s32.totalorder %s18, 1
    %p172 = por %p170, %p171
    %p174 = scmp.ne.s32.totalorder %s157, %s173
    %p175 = scmp.eq.s32.totalorder %s18, 0
    %p176 = por %p174, %p175
    %p177 = scmp.le.s32.totalorder 1, %s12
    %p178 = scmp.lt.s32.totalorder %s12, 3
    %p179 = pnand %p177, %p178
    %p180 = pneg %p179
    // Predicated region
    $region9: #{tpu_custom_call.1} parent=5 // pred_check
      _
    $region10: #{tpu_custom_call.1} parent=5 // pred_check_branch
      %182 = sbr.rel (%p179) target = $region12
    $region11: #{tpu_custom_call.1} parent=5 // pred_region
      %s183 = ssub.s32 %s12, 1
      // Predicated region
      $region13: #{tpu_custom_call.1} parent=11 // pred_check
        %p184 = pneg %p59
      $region14: #{tpu_custom_call.1} parent=11 // pred_check_branch
        %186 = sbr.rel (%p184) target = $region16
      $region15: #{tpu_custom_call.1} parent=11 // pred_region
        _
      $region16: #{tpu_custom_call.1} parent=11 // pred_fallthru
        _
      // Predicated region
      $region17: #{tpu_custom_call.1} parent=11 // pred_check
        %p187 = pneg %p80
      $region18: #{tpu_custom_call.1} parent=11 // pred_check_branch
        %189 = sbr.rel (%p187) target = $region20
      $region19: #{tpu_custom_call.1} parent=11 // pred_region
        _
      $region20: #{tpu_custom_call.1} parent=11 // pred_fallthru
        _
      // Predicated region
      $region21: #{tpu_custom_call.1} parent=11 // pred_check
        %p190 = pneg %p101
      $region22: #{tpu_custom_call.1} parent=11 // pred_check_branch
        %192 = sbr.rel (%p190) target = $region24
      $region23: #{tpu_custom_call.1} parent=11 // pred_region
        _
      $region24: #{tpu_custom_call.1} parent=11 // pred_fallthru
        _
      // Predicated region
      $region25: #{tpu_custom_call.1} parent=11 // pred_check
        %p193 = pneg %p122
      $region26: #{tpu_custom_call.1} parent=11 // pred_check_branch
        %195 = sbr.rel (%p193) target = $region28
      $region27: #{tpu_custom_call.1} parent=11 // pred_region
        _
      $region28: #{tpu_custom_call.1} parent=11 // pred_fallthru
        _
      // Predicated region
      $region29: #{tpu_custom_call.1} parent=11 // pred_check
        %p196 = pneg %p143
      $region30: #{tpu_custom_call.1} parent=11 // pred_check_branch
        %198 = sbr.rel (%p196) target = $region32
      $region31: #{tpu_custom_call.1} parent=11 // pred_region
        _
      $region32: #{tpu_custom_call.1} parent=11 // pred_fallthru
        _
    $region12: #{tpu_custom_call.1} parent=5 // pred_fallthru
      _
    %p199 = scmp.lt.s32.totalorder %s12, 2
    // Predicated region
    $region33: #{tpu_custom_call.1} parent=5 // pred_check
      %p200 = pneg %p199
    $region34: #{tpu_custom_call.1} parent=5 // pred_check_branch
      %202 = sbr.rel (%p200) target = $region36
    $region35: #{tpu_custom_call.1} parent=5 // pred_region
      // Predicated region
      $region37: #{tpu_custom_call.1} parent=35 // pred_check
        %p203 = pneg %p32
      $region38: #{tpu_custom_call.1} parent=35 // pred_check_branch
        %205 = sbr.rel (%p203) target = $region40
      $region39: #{tpu_custom_call.1} parent=35 // pred_region
        %p206 = scmp.lt.s32.totalorder %s12, 1
        %s207 = scalar_select %p206, %s12, 1
        %s208 = smul.addr %s207, 43
        %s209 = smul.addr %s208, 4
        %s210 = scalar_lea.vmem %s0, %s209
      $region40: #{tpu_custom_call.1} parent=35 // pred_fallthru
        _
    $region36: #{tpu_custom_call.1} parent=5 // pred_fallthru
      _
    %p211 = scmp.le.s32.totalorder 1, %s12
    %p212 = scmp.lt.s32.totalorder %s12, 3
    %p213 = pnand %p211, %p212
    %p214 = pneg %p213
    // Predicated region
    $region41: #{tpu_custom_call.1} parent=5 // pred_check
      _
    $region42: #{tpu_custom_call.1} parent=5 // pred_check_branch
      %216 = sbr.rel (%p213) target = $region44
    $region43: #{tpu_custom_call.1} parent=5 // pred_region
      %s217 = ssub.s32 %s12, 1
      %p218 = scmp.lt.s32.totalorder %s17, 1
      %s219 = scalar_select %p218, %s17, 1
      %s220 = smul.addr %s219, 43
      %s221 = smul.addr %s220, 4
      %s222 = scalar_lea.vmem %s0, %s221
      %p223 = pneg %p38
      %p224 = pneg %p35
      %p225 = pneg %p59
      %p226 = pneg %p56
      %p227 = pneg %p80
      %p228 = pneg %p77
      %p229 = pneg %p101
      %p230 = pneg %p98
      %p231 = pneg %p122
      %p232 = pneg %p119
      %p233 = pneg %p143
      %p234 = pneg %p140
      %p235 = pneg %p169
      %p236 = pneg %p166
      %p237 = scmp.lt.s32.totalorder %s17, 1
      %s238 = scalar_select %p237, %s17, 1
      %s239 = smul.addr %s238, 36
      %s240 = smul.addr %s239, 8
      %s241 = scalar_lea.vmem %s6, %s240
      %p242 = scmp.lt.s32.totalorder %s17, 1
      %s243 = scalar_select %p242, %s17, 1
      %s244 = smul.addr %s243, 43
      %s245 = smul.addr %s244, 4
      %s246 = scalar_lea.vmem %s0, %s245
      %p247 = scmp.lt.s32.totalorder %s17, 1
      %s248 = scalar_select %p247, %s17, 1
      %s249 = smul.addr %s248, 36
      %s250 = smul.addr %s249, 8
      %s251 = scalar_lea.vmem %s6, %s250
      %v253 = vld [vmem:[%s5] sm:$0xff]
      %v254 = vld [vmem:[%s5 + $0x8] sm:$0xff]
      %v255 = vld [vmem:[%s5 + $0x10] sm:$0xff]
      %v256 = vld [vmem:[%s5 + $0x18] sm:$0xff]
      %v257 = vld [vmem:[%s5 + $0x20] sm:$0xff]
      %v258 = vld [vmem:[%s5 + $0x28] sm:$0xff]
      %v259 = vld [vmem:[%s5 + $0x30] sm:$0xff]
      %v260 = vld [vmem:[%s5 + $0x38] sm:$0xff]
      %v261 = vld [vmem:[%s5 + $0x40] sm:$0xff]
      %v262 = vld [vmem:[%s5 + $0x48] sm:$0xff]
      %v263 = vld [vmem:[%s5 + $0x50] sm:$0xff]
      %v264 = vld [vmem:[%s5 + $0x58] sm:$0xff]
      %v265 = vld [vmem:[%s5 + $0x60] sm:$0xff]
      %v266 = vld [vmem:[%s5 + $0x68] sm:$0xff]
      %v267 = vld [vmem:[%s5 + $0x70] sm:$0xff]
      %v268 = vld [vmem:[%s5 + $0x78] sm:$0xff]
      %v269 = vld [vmem:[%s5 + $0x80] sm:$0xff]
      %v270 = vld [vmem:[%s5 + $0x88] sm:$0xff]
      %v271 = vld [vmem:[%s5 + $0x90] sm:$0xff]
      %v272 = vld [vmem:[%s5 + $0x98] sm:$0xff]
      %v273 = vld [vmem:[%s5 + $0xa0] sm:$0xff]
      %v274 = vld [vmem:[%s5 + $0xa8] sm:$0xff]
      %v275 = vld [vmem:[%s5 + $0xb0] sm:$0xff]
      %v276 = vld [vmem:[%s5 + $0xb8] sm:$0xff]
      %v277 = vld [vmem:[%s5 + $0xc0] sm:$0xff]
      %v278 = vld [vmem:[%s5 + $0xc8] sm:$0xff]
      %v279 = vld [vmem:[%s5 + $0xd0] sm:$0xff]
      %v280 = vld [vmem:[%s5 + $0xd8] sm:$0xff]
      %v281 = vld [vmem:[%s5 + $0xe0] sm:$0xff]
      %v282 = vld [vmem:[%s5 + $0xe8] sm:$0xff]
      %v283 = vld [vmem:[%s5 + $0xf0] sm:$0xff]
      %v284 = vld [vmem:[%s5 + $0xf8] sm:$0xff]
      %v285 = vld [vmem:[%s5 + $0x100] sm:$0xff]
      %v286 = vld [vmem:[%s5 + $0x108] sm:$0xff]
      %v287 = vld [vmem:[%s5 + $0x110] sm:$0xff]
      %v288 = vld [vmem:[%s5 + $0x118] sm:$0xff]
      %v289 = vld [vmem:[%s246] sm:$0xf]
      %v290 = vld [vmem:[%s246 + $0x4] sm:$0xf]
      %v291 = vld [vmem:[%s246 + $0x8] sm:$0xf]
      %v292 = vld [vmem:[%s246 + $0xc] sm:$0xf]
      %v293 = vld [vmem:[%s246 + $0x10] sm:$0xf]
      %v294 = vld [vmem:[%s246 + $0x14] sm:$0xf]
      %v295 = vld [vmem:[%s246 + $0x18] sm:$0xf]
      %v296 = vld [vmem:[%s246 + $0x1c] sm:$0xf]
      %v297 = vld [vmem:[%s246 + $0x20] sm:$0xf]
      %v298 = vld [vmem:[%s246 + $0x24] sm:$0xf]
      %v299 = vld [vmem:[%s246 + $0x28] sm:$0xf]
      %v300 = vld [vmem:[%s246 + $0x2c] sm:$0xf]
      %v301 = vld [vmem:[%s246 + $0x30] sm:$0xf]
      %v302 = vld [vmem:[%s246 + $0x34] sm:$0xf]
      %v303 = vld [vmem:[%s246 + $0x38] sm:$0xf]
      %v304 = vld [vmem:[%s246 + $0x3c] sm:$0xf]
      %v305 = vld [vmem:[%s246 + $0x40] sm:$0xf]
      %v306 = vld [vmem:[%s246 + $0x44] sm:$0xf]
      %v307 = vld [vmem:[%s246 + $0x48] sm:$0xf]
      %v308 = vld [vmem:[%s246 + $0x4c] sm:$0xf]
      %v309 = vld [vmem:[%s246 + $0x50] sm:$0xf]
      %v310 = vld [vmem:[%s246 + $0x54] sm:$0xf]
      %v311 = vld [vmem:[%s246 + $0x58] sm:$0xf]
      %v312 = vld [vmem:[%s246 + $0x5c] sm:$0xf]
      %v313 = vld [vmem:[%s246 + $0x60] sm:$0xf]
      %v314 = vld [vmem:[%s246 + $0x64] sm:$0xf]
      %v315 = vld [vmem:[%s246 + $0x68] sm:$0xf]
      %v316 = vld [vmem:[%s246 + $0x6c] sm:$0xf]
      %v317 = vld [vmem:[%s246 + $0x70] sm:$0xf]
      %v318 = vld [vmem:[%s246 + $0x74] sm:$0xf]
      %v319 = vld [vmem:[%s246 + $0x78] sm:$0xf]
      %v320 = vld [vmem:[%s246 + $0x7c] sm:$0xf]
      %v321 = vld [vmem:[%s246 + $0x80] sm:$0xf]
      %v322 = vld [vmem:[%s246 + $0x84] sm:$0xf]
      %v323 = vld [vmem:[%s246 + $0x88] sm:$0xf]
      %v324 = vld [vmem:[%s246 + $0x8c] sm:$0xf]
      %v325 = vld [vmem:[%s1] sm:$0xf]
      %v326 = vld [vmem:[%s246 + $0x90] sm:$0x1]
      %s327 = scalar_lea.vmem %s1, 4
      %v328 = vld [vmem:[%s327] sm:$0xf]
      %v366 = vunpack.c.l.b16 %v289
      %v367 = vunpack.c.l.b16 %v290
      %v368 = vunpack.c.l.b16 %v291
      %v369 = vunpack.c.l.b16 %v292
      %v370 = vunpack.c.l.b16 %v293
      %v371 = vunpack.c.l.b16 %v294
      %v372 = vunpack.c.l.b16 %v295
      %v373 = vunpack.c.l.b16 %v296
      %v374 = vunpack.c.l.b16 %v297
      %v375 = vunpack.c.l.b16 %v298
      %v376 = vunpack.c.l.b16 %v299
      %v377 = vunpack.c.l.b16 %v300
      %v378 = vunpack.c.l.b16 %v301
      %v379 = vunpack.c.l.b16 %v302
      %v380 = vunpack.c.l.b16 %v303
      %v381 = vunpack.c.l.b16 %v304
      %v382 = vunpack.c.l.b16 %v305
      %v383 = vunpack.c.l.b16 %v306
      %v384 = vunpack.c.l.b16 %v307
      %v385 = vunpack.c.l.b16 %v308
      %v386 = vunpack.c.l.b16 %v309
      %v387 = vunpack.c.l.b16 %v310
      %v388 = vunpack.c.l.b16 %v311
      %v389 = vunpack.c.l.b16 %v312
      %v390 = vunpack.c.l.b16 %v313
      %v391 = vunpack.c.l.b16 %v314
      %v392 = vunpack.c.l.b16 %v315
      %v393 = vunpack.c.l.b16 %v316
      %v394 = vunpack.c.l.b16 %v317
      %v395 = vunpack.c.l.b16 %v318
      %v396 = vunpack.c.l.b16 %v319
      %v397 = vunpack.c.l.b16 %v320
      %v398 = vunpack.c.l.b16 %v321
      %v399 = vunpack.c.l.b16 %v322
      %v400 = vunpack.c.l.b16 %v323
      %v401 = vunpack.c.l.b16 %v324
      %v402 = vunpack.c.l.b16 %v326
      %v403 = vpack.c.b16 %v367, %v366
      %v404 = vpack.c.b16 %v369, %v368
      %v405 = vpack.c.b16 %v371, %v370
      %v406 = vpack.c.b16 %v373, %v372
      %v407 = vpack.c.b16 %v375, %v374
      %v408 = vpack.c.b16 %v377, %v376
      %v409 = vpack.c.b16 %v379, %v378
      %v410 = vpack.c.b16 %v381, %v380
      %v411 = vpack.c.b16 %v383, %v382
      %v412 = vpack.c.b16 %v385, %v384
      %v413 = vpack.c.b16 %v387, %v386
      %v414 = vpack.c.b16 %v389, %v388
      %v415 = vpack.c.b16 %v391, %v390
      %v416 = vpack.c.b16 %v393, %v392
      %v417 = vpack.c.b16 %v395, %v394
      %v418 = vpack.c.b16 %v397, %v396
      %v419 = vpack.c.b16 %v399, %v398
      %v420 = vpack.c.b16 %v401, %v400
      %v421 = vpack.c.b16 %v402, %v402
      %vm422 = vsmask.f32 7424
      %v424 = vshrl.u32 %v403, 16
      %v426 = vshll.u32 %v403, 16
      %v428 = vrot.slane %v426, 1
      %v429 = vor.u32 %v424, %v428
      %v431 = vshll.u32 %v404, 16
      %v433 = vrot.slane %v431, 1
      %v434 = vsel %vm422, %v429, %v433
      %v435 = vshrl.u32 %v404, 16
      %v437 = vor.u32 %v435, %v433
      %v439 = vshll.u32 %v405, 16
      %v441 = vrot.slane %v439, 1
      %v442 = vsel %vm422, %v437, %v441
      %v443 = vshrl.u32 %v405, 16
      %v445 = vor.u32 %v443, %v441
      %v447 = vshll.u32 %v406, 16
      %v449 = vrot.slane %v447, 1
      %v450 = vsel %vm422, %v445, %v449
      %v451 = vshrl.u32 %v406, 16
      %v453 = vor.u32 %v451, %v449
      %v455 = vshll.u32 %v407, 16
      %v457 = vrot.slane %v455, 1
      %v458 = vsel %vm422, %v453, %v457
      %v459 = vshrl.u32 %v407, 16
      %v461 = vor.u32 %v459, %v457
      %v463 = vshll.u32 %v408, 16
      %v465 = vrot.slane %v463, 1
      %v466 = vsel %vm422, %v461, %v465
      %v467 = vshrl.u32 %v408, 16
      %v469 = vor.u32 %v467, %v465
      %v471 = vshll.u32 %v409, 16
      %v473 = vrot.slane %v471, 1
      %v474 = vsel %vm422, %v469, %v473
      %v475 = vshrl.u32 %v409, 16
      %v477 = vor.u32 %v475, %v473
      %v479 = vshll.u32 %v410, 16
      %v481 = vrot.slane %v479, 1
      %v482 = vsel %vm422, %v477, %v481
      %v483 = vshrl.u32 %v410, 16
      %v485 = vor.u32 %v483, %v481
      %v487 = vshll.u32 %v411, 16
      %v489 = vrot.slane %v487, 1
      %v490 = vsel %vm422, %v485, %v489
      %v491 = vshrl.u32 %v411, 16
      %v493 = vor.u32 %v491, %v489
      %v495 = vshll.u32 %v412, 16
      %v497 = vrot.slane %v495, 1
      %v498 = vsel %vm422, %v493, %v497
      %v499 = vshrl.u32 %v412, 16
      %v501 = vor.u32 %v499, %v497
      %v503 = vshll.u32 %v413, 16
      %v505 = vrot.slane %v503, 1
      %v506 = vsel %vm422, %v501, %v505
      %v507 = vshrl.u32 %v413, 16
      %v509 = vor.u32 %v507, %v505
      %v511 = vshll.u32 %v414, 16
      %v513 = vrot.slane %v511, 1
      %v514 = vsel %vm422, %v509, %v513
      %v515 = vshrl.u32 %v414, 16
      %v517 = vor.u32 %v515, %v513
      %v519 = vshll.u32 %v415, 16
      %v521 = vrot.slane %v519, 1
      %v522 = vsel %vm422, %v517, %v521
      %v523 = vshrl.u32 %v415, 16
      %v525 = vor.u32 %v523, %v521
      %v527 = vshll.u32 %v416, 16
      %v529 = vrot.slane %v527, 1
      %v530 = vsel %vm422, %v525, %v529
      %v531 = vshrl.u32 %v416, 16
      %v533 = vor.u32 %v531, %v529
      %v535 = vshll.u32 %v417, 16
      %v537 = vrot.slane %v535, 1
      %v538 = vsel %vm422, %v533, %v537
      %v539 = vshrl.u32 %v417, 16
      %v541 = vor.u32 %v539, %v537
      %v543 = vshll.u32 %v418, 16
      %v545 = vrot.slane %v543, 1
      %v546 = vsel %vm422, %v541, %v545
      %v547 = vshrl.u32 %v418, 16
      %v549 = vor.u32 %v547, %v545
      %v551 = vshll.u32 %v419, 16
      %v553 = vrot.slane %v551, 1
      %v554 = vsel %vm422, %v549, %v553
      %v555 = vshrl.u32 %v419, 16
      %v557 = vor.u32 %v555, %v553
      %v559 = vshll.u32 %v420, 16
      %v561 = vrot.slane %v559, 1
      %v562 = vsel %vm422, %v557, %v561
      %v563 = vshrl.u32 %v420, 16
      %v565 = vor.u32 %v563, %v561
      %v567 = vshll.u32 %v421, 16
      %v569 = vrot.slane %v567, 1
      %v570 = vsel %vm422, %v565, %v569
      %vm571 = vcmask 64512
      %v573 = vsel %vm571, %v434, 0
      %v576 = vsel %vm571, %v442, 0
      %v579 = vsel %vm571, %v450, 0
      %v582 = vsel %vm571, %v458, 0
      %v585 = vsel %vm571, %v466, 0
      %v588 = vsel %vm571, %v474, 0
      %v591 = vsel %vm571, %v482, 0
      %v594 = vsel %vm571, %v490, 0
      %v597 = vsel %vm571, %v498, 0
      %v600 = vsel %vm571, %v506, 0
      %v603 = vsel %vm571, %v514, 0
      %v606 = vsel %vm571, %v522, 0
      %v609 = vsel %vm571, %v530, 0
      %v612 = vsel %vm571, %v538, 0
      %v615 = vsel %vm571, %v546, 0
      %v618 = vsel %vm571, %v554, 0
      %v621 = vsel %vm571, %v562, 0
      %v624 = vsel %vm571, %v570, 0
      %vm626 = vcmask 1043456
      %v628 = vsel %vm626, %v328, 0
      %630 = vmatpush.bf16.msra.mxu0 0
      %631 = vmatpush.bf16.msra.mxu0 0
      %632 = vmatpush.bf16.msra.mxu0 0
      %633 = vmatpush.bf16.msra.mxu0 0
      %634 = vmatpush.bf16.msra.mxu0 0
      %635 = vmatpush.bf16.msra.mxu0 0
      %636 = vmatpush.bf16.msra.mxu0 0
      %637 = vmatpush.bf16.msra.mxu0 %v628
      %638 = vmatmul.bf16.gmra.mxu0 %v573
      %v639 = vpop.f32.mrf.mxu0
      %v640 = vadd.f32 0.0, %v639
      %v641 = vpop.f32.mrf.mxu0
      %v642 = vadd.f32 0.0, %v641
      %643 = vmatmul.bf16.gmra.mxu0 %v576
      %v644 = vpop.f32.mrf.mxu0
      %v645 = vadd.f32 0.0, %v644
      %v646 = vpop.f32.mrf.mxu0
      %v647 = vadd.f32 0.0, %v646
      %648 = vmatmul.bf16.gmra.mxu0 %v579
      %v649 = vpop.f32.mrf.mxu0
      %v650 = vadd.f32 0.0, %v649
      %v651 = vpop.f32.mrf.mxu0
      %v652 = vadd.f32 0.0, %v651
      %653 = vmatmul.bf16.gmra.mxu0 %v582
      %v654 = vpop.f32.mrf.mxu0
      %v655 = vadd.f32 0.0, %v654
      %v656 = vpop.f32.mrf.mxu0
      %v657 = vadd.f32 0.0, %v656
      %658 = vmatmul.bf16.gmra.mxu0 %v585
      %v659 = vpop.f32.mrf.mxu0
      %v660 = vadd.f32 0.0, %v659
      %v661 = vpop.f32.mrf.mxu0
      %v662 = vadd.f32 0.0, %v661
      %663 = vmatmul.bf16.gmra.mxu0 %v588
      %v664 = vpop.f32.mrf.mxu0
      %v665 = vadd.f32 0.0, %v664
      %v666 = vpop.f32.mrf.mxu0
      %v667 = vadd.f32 0.0, %v666
      %668 = vmatmul.bf16.gmra.mxu0 %v591
      %v669 = vpop.f32.mrf.mxu0
      %v670 = vadd.f32 0.0, %v669
      %v671 = vpop.f32.mrf.mxu0
      %v672 = vadd.f32 0.0, %v671
      %673 = vmatmul.bf16.gmra.mxu0 %v594
      %v674 = vpop.f32.mrf.mxu0
      %v675 = vadd.f32 0.0, %v674
      %v676 = vpop.f32.mrf.mxu0
      %v677 = vadd.f32 0.0, %v676
      %678 = vmatmul.bf16.gmra.mxu0 %v597
      %v679 = vpop.f32.mrf.mxu0
      %v680 = vadd.f32 0.0, %v679
      %v681 = vpop.f32.mrf.mxu0
      %v682 = vadd.f32 0.0, %v681
      %683 = vmatmul.bf16.gmra.mxu0 %v600
      %v684 = vpop.f32.mrf.mxu0
      %v685 = vadd.f32 0.0, %v684
      %v686 = vpop.f32.mrf.mxu0
      %v687 = vadd.f32 0.0, %v686
      %688 = vmatmul.bf16.gmra.mxu0 %v603
      %v689 = vpop.f32.mrf.mxu0
      %v690 = vadd.f32 0.0, %v689
      %v691 = vpop.f32.mrf.mxu0
      %v692 = vadd.f32 0.0, %v691
      %693 = vmatmul.bf16.gmra.mxu0 %v606
      %v694 = vpop.f32.mrf.mxu0
      %v695 = vadd.f32 0.0, %v694
      %v696 = vpop.f32.mrf.mxu0
      %v697 = vadd.f32 0.0, %v696
      %698 = vmatmul.bf16.gmra.mxu0 %v609
      %v699 = vpop.f32.mrf.mxu0
      %v700 = vadd.f32 0.0, %v699
      %v701 = vpop.f32.mrf.mxu0
      %v702 = vadd.f32 0.0, %v701
      %703 = vmatmul.bf16.gmra.mxu0 %v612
      %v704 = vpop.f32.mrf.mxu0
      %v705 = vadd.f32 0.0, %v704
      %v706 = vpop.f32.mrf.mxu0
      %v707 = vadd.f32 0.0, %v706
      %708 = vmatmul.bf16.gmra.mxu0 %v615
      %v709 = vpop.f32.mrf.mxu0
      %v710 = vadd.f32 0.0, %v709
      %v711 = vpop.f32.mrf.mxu0
      %v712 = vadd.f32 0.0, %v711
      %713 = vmatmul.bf16.gmra.mxu0 %v618
      %v714 = vpop.f32.mrf.mxu0
      %v715 = vadd.f32 0.0, %v714
      %v716 = vpop.f32.mrf.mxu0
      %v717 = vadd.f32 0.0, %v716
      %718 = vmatmul.bf16.gmra.mxu0 %v621
      %v719 = vpop.f32.mrf.mxu0
      %v720 = vadd.f32 0.0, %v719
      %v721 = vpop.f32.mrf.mxu0
      %v722 = vadd.f32 0.0, %v721
      %723 = vmatmul.bf16.gmra.mxu0 %v624
      %v724 = vpop.f32.mrf.mxu0
      %v725 = vadd.f32 0.0, %v724
      %v726 = vpop.f32.mrf.mxu0
      %v727 = vadd.f32 0.0, %v726
      %728 = vdwg.mxu0
      %v729 = vsel %vm571, %v403, 0
      %v731 = vsel %vm571, %v404, 0
      %v733 = vsel %vm571, %v405, 0
      %v735 = vsel %vm571, %v406, 0
      %v737 = vsel %vm571, %v407, 0
      %v739 = vsel %vm571, %v408, 0
      %v741 = vsel %vm571, %v409, 0
      %v743 = vsel %vm571, %v410, 0
      %v745 = vsel %vm571, %v411, 0
      %v747 = vsel %vm571, %v412, 0
      %v749 = vsel %vm571, %v413, 0
      %v751 = vsel %vm571, %v414, 0
      %v753 = vsel %vm571, %v415, 0
      %v755 = vsel %vm571, %v416, 0
      %v757 = vsel %vm571, %v417, 0
      %v759 = vsel %vm571, %v418, 0
      %v761 = vsel %vm571, %v419, 0
      %v763 = vsel %vm571, %v420, 0
      %v766 = vsel %vm626, %v325, 0
      %768 = vmatpush.bf16.msra.mxu0 0
      %769 = vmatpush.bf16.msra.mxu0 0
      %770 = vmatpush.bf16.msra.mxu0 0
      %771 = vmatpush.bf16.msra.mxu0 0
      %772 = vmatpush.bf16.msra.mxu0 0
      %773 = vmatpush.bf16.msra.mxu0 0
      %774 = vmatpush.bf16.msra.mxu0 0
      %775 = vmatpush.bf16.msra.mxu0 %v766
      %776 = vmatmul.bf16.gmra.mxu0 %v729
      %v777 = vpop.f32.mrf.mxu0
      %v778 = vadd.f32 %v640, %v777
      %v779 = vpop.f32.mrf.mxu0
      %v780 = vadd.f32 %v642, %v779
      %781 = vmatmul.bf16.gmra.mxu0 %v731
      %v782 = vpop.f32.mrf.mxu0
      %v783 = vadd.f32 %v645, %v782
      %v784 = vpop.f32.mrf.mxu0
      %v785 = vadd.f32 %v647, %v784
      %786 = vmatmul.bf16.gmra.mxu0 %v733
      %v787 = vpop.f32.mrf.mxu0
      %v788 = vadd.f32 %v650, %v787
      %v789 = vpop.f32.mrf.mxu0
      %v790 = vadd.f32 %v652, %v789
      %791 = vmatmul.bf16.gmra.mxu0 %v735
      %v792 = vpop.f32.mrf.mxu0
      %v793 = vadd.f32 %v655, %v792
      %v794 = vpop.f32.mrf.mxu0
      %v795 = vadd.f32 %v657, %v794
      %796 = vmatmul.bf16.gmra.mxu0 %v737
      %v797 = vpop.f32.mrf.mxu0
      %v798 = vadd.f32 %v660, %v797
      %v799 = vpop.f32.mrf.mxu0
      %v800 = vadd.f32 %v662, %v799
      %801 = vmatmul.bf16.gmra.mxu0 %v739
      %v802 = vpop.f32.mrf.mxu0
      %v803 = vadd.f32 %v665, %v802
      %v804 = vpop.f32.mrf.mxu0
      %v805 = vadd.f32 %v667, %v804
      %806 = vmatmul.bf16.gmra.mxu0 %v741
      %v807 = vpop.f32.mrf.mxu0
      %v808 = vadd.f32 %v670, %v807
      %v809 = vpop.f32.mrf.mxu0
      %v810 = vadd.f32 %v672, %v809
      %811 = vmatmul.bf16.gmra.mxu0 %v743
      %v812 = vpop.f32.mrf.mxu0
      %v813 = vadd.f32 %v675, %v812
      %v814 = vpop.f32.mrf.mxu0
      %v815 = vadd.f32 %v677, %v814
      %816 = vmatmul.bf16.gmra.mxu0 %v745
      %v817 = vpop.f32.mrf.mxu0
      %v818 = vadd.f32 %v680, %v817
      %v819 = vpop.f32.mrf.mxu0
      %v820 = vadd.f32 %v682, %v819
      %821 = vmatmul.bf16.gmra.mxu0 %v747
      %v822 = vpop.f32.mrf.mxu0
      %v823 = vadd.f32 %v685, %v822
      %v824 = vpop.f32.mrf.mxu0
      %v825 = vadd.f32 %v687, %v824
      %826 = vmatmul.bf16.gmra.mxu0 %v749
      %v827 = vpop.f32.mrf.mxu0
      %v828 = vadd.f32 %v690, %v827
      %v829 = vpop.f32.mrf.mxu0
      %v830 = vadd.f32 %v692, %v829
      %831 = vmatmul.bf16.gmra.mxu0 %v751
      %v832 = vpop.f32.mrf.mxu0
      %v833 = vadd.f32 %v695, %v832
      %v834 = vpop.f32.mrf.mxu0
      %v835 = vadd.f32 %v697, %v834
      %836 = vmatmul.bf16.gmra.mxu0 %v753
      %v837 = vpop.f32.mrf.mxu0
      %v838 = vadd.f32 %v700, %v837
      %v839 = vpop.f32.mrf.mxu0
      %v840 = vadd.f32 %v702, %v839
      %841 = vmatmul.bf16.gmra.mxu0 %v755
      %v842 = vpop.f32.mrf.mxu0
      %v843 = vadd.f32 %v705, %v842
      %v844 = vpop.f32.mrf.mxu0
      %v845 = vadd.f32 %v707, %v844
      %846 = vmatmul.bf16.gmra.mxu0 %v757
      %v847 = vpop.f32.mrf.mxu0
      %v848 = vadd.f32 %v710, %v847
      %v849 = vpop.f32.mrf.mxu0
      %v850 = vadd.f32 %v712, %v849
      %851 = vmatmul.bf16.gmra.mxu0 %v759
      %v852 = vpop.f32.mrf.mxu0
      %v853 = vadd.f32 %v715, %v852
      %v854 = vpop.f32.mrf.mxu0
      %v855 = vadd.f32 %v717, %v854
      %856 = vmatmul.bf16.gmra.mxu0 %v761
      %v857 = vpop.f32.mrf.mxu0
      %v858 = vadd.f32 %v720, %v857
      %v859 = vpop.f32.mrf.mxu0
      %v860 = vadd.f32 %v722, %v859
      %861 = vmatmul.bf16.gmra.mxu0 %v763
      %v862 = vpop.f32.mrf.mxu0
      %v863 = vadd.f32 %v725, %v862
      %v864 = vpop.f32.mrf.mxu0
      %v865 = vadd.f32 %v727, %v864
      %866 = vdwg.mxu0
      %v867 = vld [vmem:[%s246] sm:$0xe]
      %s868 = scalar_lea.vmem %s1, 8
      %v869 = vld [vmem:[%s868] sm:$0xf]
      %v871 = vunpack.c.l.b16 %v867
      %v872 = vpack.c.b16 %v367, %v871
      %vm873 = vcmask 1046528
      %v874 = vrot.slane %v872, 1
      %v875 = vrot.slane %v404, 1
      %v876 = vsel %vm873, %v874, %v875
      %v877 = vrot.slane %v405, 1
      %v878 = vsel %vm873, %v875, %v877
      %v879 = vrot.slane %v406, 1
      %v880 = vsel %vm873, %v877, %v879
      %v881 = vrot.slane %v407, 1
      %v882 = vsel %vm873, %v879, %v881
      %v883 = vrot.slane %v408, 1
      %v884 = vsel %vm873, %v881, %v883
      %v885 = vrot.slane %v409, 1
      %v886 = vsel %vm873, %v883, %v885
      %v887 = vrot.slane %v410, 1
      %v888 = vsel %vm873, %v885, %v887
      %v889 = vrot.slane %v411, 1
      %v890 = vsel %vm873, %v887, %v889
      %v891 = vrot.slane %v412, 1
      %v892 = vsel %vm873, %v889, %v891
      %v893 = vrot.slane %v413, 1
      %v894 = vsel %vm873, %v891, %v893
      %v895 = vrot.slane %v414, 1
      %v896 = vsel %vm873, %v893, %v895
      %v897 = vrot.slane %v415, 1
      %v898 = vsel %vm873, %v895, %v897
      %v899 = vrot.slane %v416, 1
      %v900 = vsel %vm873, %v897, %v899
      %v901 = vrot.slane %v417, 1
      %v902 = vsel %vm873, %v899, %v901
      %v903 = vrot.slane %v418, 1
      %v904 = vsel %vm873, %v901, %v903
      %v905 = vrot.slane %v419, 1
      %v906 = vsel %vm873, %v903, %v905
      %v907 = vrot.slane %v420, 1
      %v908 = vsel %vm873, %v905, %v907
      %v909 = vrot.slane %v421, 1
      %v910 = vsel %vm873, %v907, %v909
      %v912 = vsel %vm571, %v876, 0
      %v915 = vsel %vm571, %v878, 0
      %v918 = vsel %vm571, %v880, 0
      %v921 = vsel %vm571, %v882, 0
      %v924 = vsel %vm571, %v884, 0
      %v927 = vsel %vm571, %v886, 0
      %v930 = vsel %vm571, %v888, 0
      %v933 = vsel %vm571, %v890, 0
      %v936 = vsel %vm571, %v892, 0
      %v939 = vsel %vm571, %v894, 0
      %v942 = vsel %vm571, %v896, 0
      %v945 = vsel %vm571, %v898, 0
      %v948 = vsel %vm571, %v900, 0
      %v951 = vsel %vm571, %v902, 0
      %v954 = vsel %vm571, %v904, 0
      %v957 = vsel %vm571, %v906, 0
      %v960 = vsel %vm571, %v908, 0
      %v963 = vsel %vm571, %v910, 0
      %v966 = vsel %vm626, %v869, 0
      %968 = vmatpush.bf16.msra.mxu0 0
      %969 = vmatpush.bf16.msra.mxu0 0
      %970 = vmatpush.bf16.msra.mxu0 0
      %971 = vmatpush.bf16.msra.mxu0 0
      %972 = vmatpush.bf16.msra.mxu0 0
      %973 = vmatpush.bf16.msra.mxu0 0
      %974 = vmatpush.bf16.msra.mxu0 0
      %975 = vmatpush.bf16.msra.mxu0 %v966
      %976 = vmatmul.bf16.gmra.mxu0 %v912
      %v977 = vpop.f32.mrf.mxu0
      %v978 = vadd.f32 0.0, %v977
      %v979 = vpop.f32.mrf.mxu0
      %v980 = vadd.f32 0.0, %v979
      %981 = vmatmul.bf16.gmra.mxu0 %v915
      %v982 = vpop.f32.mrf.mxu0
      %v983 = vadd.f32 0.0, %v982
      %v984 = vpop.f32.mrf.mxu0
      %v985 = vadd.f32 0.0, %v984
      %986 = vmatmul.bf16.gmra.mxu0 %v918
      %v987 = vpop.f32.mrf.mxu0
      %v988 = vadd.f32 0.0, %v987
      %v989 = vpop.f32.mrf.mxu0
      %v990 = vadd.f32 0.0, %v989
      %991 = vmatmul.bf16.gmra.mxu0 %v921
      %v992 = vpop.f32.mrf.mxu0
      %v993 = vadd.f32 0.0, %v992
      %v994 = vpop.f32.mrf.mxu0
      %v995 = vadd.f32 0.0, %v994
      %996 = vmatmul.bf16.gmra.mxu0 %v924
      %v997 = vpop.f32.mrf.mxu0
      %v998 = vadd.f32 0.0, %v997
      %v999 = vpop.f32.mrf.mxu0
      %v1000 = vadd.f32 0.0, %v999
      %1001 = vmatmul.bf16.gmra.mxu0 %v927
      %v1002 = vpop.f32.mrf.mxu0
      %v1003 = vadd.f32 0.0, %v1002
      %v1004 = vpop.f32.mrf.mxu0
      %v1005 = vadd.f32 0.0, %v1004
      %1006 = vmatmul.bf16.gmra.mxu0 %v930
      %v1007 = vpop.f32.mrf.mxu0
      %v1008 = vadd.f32 0.0, %v1007
      %v1009 = vpop.f32.mrf.mxu0
      %v1010 = vadd.f32 0.0, %v1009
      %1011 = vmatmul.bf16.gmra.mxu0 %v933
      %v1012 = vpop.f32.mrf.mxu0
      %v1013 = vadd.f32 0.0, %v1012
      %v1014 = vpop.f32.mrf.mxu0
      %v1015 = vadd.f32 0.0, %v1014
      %1016 = vmatmul.bf16.gmra.mxu0 %v936
      %v1017 = vpop.f32.mrf.mxu0
      %v1018 = vadd.f32 0.0, %v1017
      %v1019 = vpop.f32.mrf.mxu0
      %v1020 = vadd.f32 0.0, %v1019
      %1021 = vmatmul.bf16.gmra.mxu0 %v939
      %v1022 = vpop.f32.mrf.mxu0
      %v1023 = vadd.f32 0.0, %v1022
      %v1024 = vpop.f32.mrf.mxu0
      %v1025 = vadd.f32 0.0, %v1024
      %1026 = vmatmul.bf16.gmra.mxu0 %v942
      %v1027 = vpop.f32.mrf.mxu0
      %v1028 = vadd.f32 0.0, %v1027
      %v1029 = vpop.f32.mrf.mxu0
      %v1030 = vadd.f32 0.0, %v1029
      %1031 = vmatmul.bf16.gmra.mxu0 %v945
      %v1032 = vpop.f32.mrf.mxu0
      %v1033 = vadd.f32 0.0, %v1032
      %v1034 = vpop.f32.mrf.mxu0
      %v1035 = vadd.f32 0.0, %v1034
      %1036 = vmatmul.bf16.gmra.mxu0 %v948
      %v1037 = vpop.f32.mrf.mxu0
      %v1038 = vadd.f32 0.0, %v1037
      %v1039 = vpop.f32.mrf.mxu0
      %v1040 = vadd.f32 0.0, %v1039
      %1041 = vmatmul.bf16.gmra.mxu0 %v951
      %v1042 = vpop.f32.mrf.mxu0
      %v1043 = vadd.f32 0.0, %v1042
      %v1044 = vpop.f32.mrf.mxu0
      %v1045 = vadd.f32 0.0, %v1044
      %1046 = vmatmul.bf16.gmra.mxu0 %v954
      %v1047 = vpop.f32.mrf.mxu0
      %v1048 = vadd.f32 0.0, %v1047
      %v1049 = vpop.f32.mrf.mxu0
      %v1050 = vadd.f32 0.0, %v1049
      %1051 = vmatmul.bf16.gmra.mxu0 %v957
      %v1052 = vpop.f32.mrf.mxu0
      %v1053 = vadd.f32 0.0, %v1052
      %v1054 = vpop.f32.mrf.mxu0
      %v1055 = vadd.f32 0.0, %v1054
      %1056 = vmatmul.bf16.gmra.mxu0 %v960
      %v1057 = vpop.f32.mrf.mxu0
      %v1058 = vadd.f32 0.0, %v1057
      %v1059 = vpop.f32.mrf.mxu0
      %v1060 = vadd.f32 0.0, %v1059
      %1061 = vmatmul.bf16.gmra.mxu0 %v963
      %v1062 = vpop.f32.mrf.mxu0
      %v1063 = vadd.f32 0.0, %v1062
      %v1064 = vpop.f32.mrf.mxu0
      %v1065 = vadd.f32 0.0, %v1064
      %1066 = vdwg.mxu0
      %v1067 = vadd.f32 %v778, %v978
      %v1068 = vadd.f32 %v780, %v980
      %v1069 = vadd.f32 %v783, %v983
      %v1070 = vadd.f32 %v785, %v985
      %v1071 = vadd.f32 %v788, %v988
      %v1072 = vadd.f32 %v790, %v990
      %v1073 = vadd.f32 %v793, %v993
      %v1074 = vadd.f32 %v795, %v995
      %v1075 = vadd.f32 %v798, %v998
      %v1076 = vadd.f32 %v800, %v1000
      %v1077 = vadd.f32 %v803, %v1003
      %v1078 = vadd.f32 %v805, %v1005
      %v1079 = vadd.f32 %v808, %v1008
      %v1080 = vadd.f32 %v810, %v1010
      %v1081 = vadd.f32 %v813, %v1013
      %v1082 = vadd.f32 %v815, %v1015
      %v1083 = vadd.f32 %v818, %v1018
      %v1084 = vadd.f32 %v820, %v1020
      %v1085 = vadd.f32 %v823, %v1023
      %v1086 = vadd.f32 %v825, %v1025
      %v1087 = vadd.f32 %v828, %v1028
      %v1088 = vadd.f32 %v830, %v1030
      %v1089 = vadd.f32 %v833, %v1033
      %v1090 = vadd.f32 %v835, %v1035
      %v1091 = vadd.f32 %v838, %v1038
      %v1092 = vadd.f32 %v840, %v1040
      %v1093 = vadd.f32 %v843, %v1043
      %v1094 = vadd.f32 %v845, %v1045
      %v1095 = vadd.f32 %v848, %v1048
      %v1096 = vadd.f32 %v850, %v1050
      %v1097 = vadd.f32 %v853, %v1053
      %v1098 = vadd.f32 %v855, %v1055
      %v1099 = vadd.f32 %v858, %v1058
      %v1100 = vadd.f32 %v860, %v1060
      %v1101 = vadd.f32 %v863, %v1063
      %v1102 = vadd.f32 %v865, %v1065
      %v1103 = vld [vmem:[%s246 + $0x8] sm:$0xe]
      %v1104 = vld [vmem:[%s246 + $0xc] sm:$0xf]
      %v1105 = vld [vmem:[%s246 + $0x10] sm:$0xf]
      %v1106 = vld [vmem:[%s246 + $0x14] sm:$0xf]
      %v1107 = vld [vmem:[%s246 + $0x18] sm:$0xf]
      %v1108 = vld [vmem:[%s246 + $0x1c] sm:$0xf]
      %v1109 = vld [vmem:[%s246 + $0x20] sm:$0xf]
      %v1110 = vld [vmem:[%s246 + $0x24] sm:$0xf]
      %v1111 = vld [vmem:[%s246 + $0x28] sm:$0xf]
      %v1112 = vld [vmem:[%s246 + $0x2c] sm:$0xf]
      %v1113 = vld [vmem:[%s246 + $0x30] sm:$0xf]
      %v1114 = vld [vmem:[%s246 + $0x34] sm:$0xf]
      %v1115 = vld [vmem:[%s246 + $0x38] sm:$0xf]
      %v1116 = vld [vmem:[%s246 + $0x3c] sm:$0xf]
      %v1117 = vld [vmem:[%s246 + $0x40] sm:$0xf]
      %v1118 = vld [vmem:[%s246 + $0x44] sm:$0xf]
      %v1119 = vld [vmem:[%s246 + $0x48] sm:$0xf]
      %v1120 = vld [vmem:[%s246 + $0x4c] sm:$0xf]
      %v1121 = vld [vmem:[%s246 + $0x50] sm:$0xf]
      %v1122 = vld [vmem:[%s246 + $0x54] sm:$0xf]
      %v1123 = vld [vmem:[%s246 + $0x58] sm:$0xf]
      %v1124 = vld [vmem:[%s246 + $0x5c] sm:$0xf]
      %v1125 = vld [vmem:[%s246 + $0x60] sm:$0xf]
      %v1126 = vld [vmem:[%s246 + $0x64] sm:$0xf]
      %v1127 = vld [vmem:[%s246 + $0x68] sm:$0xf]
      %v1128 = vld [vmem:[%s246 + $0x6c] sm:$0xf]
      %v1129 = vld [vmem:[%s246 + $0x70] sm:$0xf]
      %v1130 = vld [vmem:[%s246 + $0x74] sm:$0xf]
      %v1131 = vld [vmem:[%s246 + $0x78] sm:$0xf]
      %v1132 = vld [vmem:[%s246 + $0x7c] sm:$0xf]
      %v1133 = vld [vmem:[%s246 + $0x80] sm:$0xf]
      %v1134 = vld [vmem:[%s246 + $0x84] sm:$0xf]
      %v1135 = vld [vmem:[%s246 + $0x88] sm:$0xf]
      %v1136 = vld [vmem:[%s246 + $0x8c] sm:$0xf]
      %v1137 = vld [vmem:[%s246 + $0x90] sm:$0xf]
      %v1138 = vld [vmem:[%s246 + $0x94] sm:$0xf]
      %v1139 = vld [vmem:[%s246 + $0x98] sm:$0x1]
      %s1140 = scalar_lea.vmem %s1, 12
      %v1141 = vld [vmem:[%s1140] sm:$0xf]
      %v1179 = vunpack.c.l.b16 %v1103
      %v1180 = vunpack.c.l.b16 %v1104
      %v1181 = vunpack.c.l.b16 %v1105
      %v1182 = vunpack.c.l.b16 %v1106
      %v1183 = vunpack.c.l.b16 %v1107
      %v1184 = vunpack.c.l.b16 %v1108
      %v1185 = vunpack.c.l.b16 %v1109
      %v1186 = vunpack.c.l.b16 %v1110
      %v1187 = vunpack.c.l.b16 %v1111
      %v1188 = vunpack.c.l.b16 %v1112
      %v1189 = vunpack.c.l.b16 %v1113
      %v1190 = vunpack.c.l.b16 %v1114
      %v1191 = vunpack.c.l.b16 %v1115
      %v1192 = vunpack.c.l.b16 %v1116
      %v1193 = vunpack.c.l.b16 %v1117
      %v1194 = vunpack.c.l.b16 %v1118
      %v1195 = vunpack.c.l.b16 %v1119
      %v1196 = vunpack.c.l.b16 %v1120
      %v1197 = vunpack.c.l.b16 %v1121
      %v1198 = vunpack.c.l.b16 %v1122
      %v1199 = vunpack.c.l.b16 %v1123
      %v1200 = vunpack.c.l.b16 %v1124
      %v1201 = vunpack.c.l.b16 %v1125
      %v1202 = vunpack.c.l.b16 %v1126
      %v1203 = vunpack.c.l.b16 %v1127
      %v1204 = vunpack.c.l.b16 %v1128
      %v1205 = vunpack.c.l.b16 %v1129
      %v1206 = vunpack.c.l.b16 %v1130
      %v1207 = vunpack.c.l.b16 %v1131
      %v1208 = vunpack.c.l.b16 %v1132
      %v1209 = vunpack.c.l.b16 %v1133
      %v1210 = vunpack.c.l.b16 %v1134
      %v1211 = vunpack.c.l.b16 %v1135
      %v1212 = vunpack.c.l.b16 %v1136
      %v1213 = vunpack.c.l.b16 %v1137
      %v1214 = vunpack.c.l.b16 %v1138
      %v1215 = vunpack.c.l.b16 %v1139
      %v1216 = vpack.c.b16 %v1180, %v1179
      %v1217 = vpack.c.b16 %v1182, %v1181
      %v1218 = vpack.c.b16 %v1184, %v1183
      %v1219 = vpack.c.b16 %v1186, %v1185
      %v1220 = vpack.c.b16 %v1188, %v1187
      %v1221 = vpack.c.b16 %v1190, %v1189
      %v1222 = vpack.c.b16 %v1192, %v1191
      %v1223 = vpack.c.b16 %v1194, %v1193
      %v1224 = vpack.c.b16 %v1196, %v1195
      %v1225 = vpack.c.b16 %v1198, %v1197
      %v1226 = vpack.c.b16 %v1200, %v1199
      %v1227 = vpack.c.b16 %v1202, %v1201
      %v1228 = vpack.c.b16 %v1204, %v1203
      %v1229 = vpack.c.b16 %v1206, %v1205
      %v1230 = vpack.c.b16 %v1208, %v1207
      %v1231 = vpack.c.b16 %v1210, %v1209
      %v1232 = vpack.c.b16 %v1212, %v1211
      %v1233 = vpack.c.b16 %v1214, %v1213
      %v1234 = vpack.c.b16 %v1215, %v1215
      %v1235 = vrot.slane %v1216, 1
      %v1236 = vrot.slane %v1217, 1
      %v1237 = vsel %vm873, %v1235, %v1236
      %v1238 = vrot.slane %v1218, 1
      %v1239 = vsel %vm873, %v1236, %v1238
      %v1240 = vrot.slane %v1219, 1
      %v1241 = vsel %vm873, %v1238, %v1240
      %v1242 = vrot.slane %v1220, 1
      %v1243 = vsel %vm873, %v1240, %v1242
      %v1244 = vrot.slane %v1221, 1
      %v1245 = vsel %vm873, %v1242, %v1244
      %v1246 = vrot.slane %v1222, 1
      %v1247 = vsel %vm873, %v1244, %v1246
      %v1248 = vrot.slane %v1223, 1
      %v1249 = vsel %vm873, %v1246, %v1248
      %v1250 = vrot.slane %v1224, 1
      %v1251 = vsel %vm873, %v1248, %v1250
      %v1252 = vrot.slane %v1225, 1
      %v1253 = vsel %vm873, %v1250, %v1252
      %v1254 = vrot.slane %v1226, 1
      %v1255 = vsel %vm873, %v1252, %v1254
      %v1256 = vrot.slane %v1227, 1
      %v1257 = vsel %vm873, %v1254, %v1256
      %v1258 = vrot.slane %v1228, 1
      %v1259 = vsel %vm873, %v1256, %v1258
      %v1260 = vrot.slane %v1229, 1
      %v1261 = vsel %vm873, %v1258, %v1260
      %v1262 = vrot.slane %v1230, 1
      %v1263 = vsel %vm873, %v1260, %v1262
      %v1264 = vrot.slane %v1231, 1
      %v1265 = vsel %vm873, %v1262, %v1264
      %v1266 = vrot.slane %v1232, 1
      %v1267 = vsel %vm873, %v1264, %v1266
      %v1268 = vrot.slane %v1233, 1
      %v1269 = vsel %vm873, %v1266, %v1268
      %v1270 = vrot.slane %v1234, 1
      %v1271 = vsel %vm873, %v1268, %v1270
      %v1273 = vsel %vm571, %v1237, 0
      %v1276 = vsel %vm571, %v1239, 0
      %v1279 = vsel %vm571, %v1241, 0
      %v1282 = vsel %vm571, %v1243, 0
      %v1285 = vsel %vm571, %v1245, 0
      %v1288 = vsel %vm571, %v1247, 0
      %v1291 = vsel %vm571, %v1249, 0
      %v1294 = vsel %vm571, %v1251, 0
      %v1297 = vsel %vm571, %v1253, 0
      %v1300 = vsel %vm571, %v1255, 0
      %v1303 = vsel %vm571, %v1257, 0
      %v1306 = vsel %vm571, %v1259, 0
      %v1309 = vsel %vm571, %v1261, 0
      %v1312 = vsel %vm571, %v1263, 0
      %v1315 = vsel %vm571, %v1265, 0
      %v1318 = vsel %vm571, %v1267, 0
      %v1321 = vsel %vm571, %v1269, 0
      %v1324 = vsel %vm571, %v1271, 0
      %v1327 = vsel %vm626, %v1141, 0
      %1329 = vmatpush.bf16.msra.mxu0 0
      %1330 = vmatpush.bf16.msra.mxu0 0
      %1331 = vmatpush.bf16.msra.mxu0 0
      %1332 = vmatpush.bf16.msra.mxu0 0
      %1333 = vmatpush.bf16.msra.mxu0 0
      %1334 = vmatpush.bf16.msra.mxu0 0
      %1335 = vmatpush.bf16.msra.mxu0 0
      %1336 = vmatpush.bf16.msra.mxu0 %v1327
      %1337 = vmatmul.bf16.gmra.mxu0 %v1273
      %v1338 = vpop.f32.mrf.mxu0
      %v1339 = vadd.f32 0.0, %v1338
      %v1340 = vpop.f32.mrf.mxu0
      %v1341 = vadd.f32 0.0, %v1340
      %1342 = vmatmul.bf16.gmra.mxu0 %v1276
      %v1343 = vpop.f32.mrf.mxu0
      %v1344 = vadd.f32 0.0, %v1343
      %v1345 = vpop.f32.mrf.mxu0
      %v1346 = vadd.f32 0.0, %v1345
      %1347 = vmatmul.bf16.gmra.mxu0 %v1279
      %v1348 = vpop.f32.mrf.mxu0
      %v1349 = vadd.f32 0.0, %v1348
      %v1350 = vpop.f32.mrf.mxu0
      %v1351 = vadd.f32 0.0, %v1350
      %1352 = vmatmul.bf16.gmra.mxu0 %v1282
      %v1353 = vpop.f32.mrf.mxu0
      %v1354 = vadd.f32 0.0, %v1353
      %v1355 = vpop.f32.mrf.mxu0
      %v1356 = vadd.f32 0.0, %v1355
      %1357 = vmatmul.bf16.gmra.mxu0 %v1285
      %v1358 = vpop.f32.mrf.mxu0
      %v1359 = vadd.f32 0.0, %v1358
      %v1360 = vpop.f32.mrf.mxu0
      %v1361 = vadd.f32 0.0, %v1360
      %1362 = vmatmul.bf16.gmra.mxu0 %v1288
      %v1363 = vpop.f32.mrf.mxu0
      %v1364 = vadd.f32 0.0, %v1363
      %v1365 = vpop.f32.mrf.mxu0
      %v1366 = vadd.f32 0.0, %v1365
      %1367 = vmatmul.bf16.gmra.mxu0 %v1291
      %v1368 = vpop.f32.mrf.mxu0
      %v1369 = vadd.f32 0.0, %v1368
      %v1370 = vpop.f32.mrf.mxu0
      %v1371 = vadd.f32 0.0, %v1370
      %1372 = vmatmul.bf16.gmra.mxu0 %v1294
      %v1373 = vpop.f32.mrf.mxu0
      %v1374 = vadd.f32 0.0, %v1373
      %v1375 = vpop.f32.mrf.mxu0
      %v1376 = vadd.f32 0.0, %v1375
      %1377 = vmatmul.bf16.gmra.mxu0 %v1297
      %v1378 = vpop.f32.mrf.mxu0
      %v1379 = vadd.f32 0.0, %v1378
      %v1380 = vpop.f32.mrf.mxu0
      %v1381 = vadd.f32 0.0, %v1380
      %1382 = vmatmul.bf16.gmra.mxu0 %v1300
      %v1383 = vpop.f32.mrf.mxu0
      %v1384 = vadd.f32 0.0, %v1383
      %v1385 = vpop.f32.mrf.mxu0
      %v1386 = vadd.f32 0.0, %v1385
      %1387 = vmatmul.bf16.gmra.mxu0 %v1303
      %v1388 = vpop.f32.mrf.mxu0
      %v1389 = vadd.f32 0.0, %v1388
      %v1390 = vpop.f32.mrf.mxu0
      %v1391 = vadd.f32 0.0, %v1390
      %1392 = vmatmul.bf16.gmra.mxu0 %v1306
      %v1393 = vpop.f32.mrf.mxu0
      %v1394 = vadd.f32 0.0, %v1393
      %v1395 = vpop.f32.mrf.mxu0
      %v1396 = vadd.f32 0.0, %v1395
      %1397 = vmatmul.bf16.gmra.mxu0 %v1309
      %v1398 = vpop.f32.mrf.mxu0
      %v1399 = vadd.f32 0.0, %v1398
      %v1400 = vpop.f32.mrf.mxu0
      %v1401 = vadd.f32 0.0, %v1400
      %1402 = vmatmul.bf16.gmra.mxu0 %v1312
      %v1403 = vpop.f32.mrf.mxu0
      %v1404 = vadd.f32 0.0, %v1403
      %v1405 = vpop.f32.mrf.mxu0
      %v1406 = vadd.f32 0.0, %v1405
      %1407 = vmatmul.bf16.gmra.mxu0 %v1315
      %v1408 = vpop.f32.mrf.mxu0
      %v1409 = vadd.f32 0.0, %v1408
      %v1410 = vpop.f32.mrf.mxu0
      %v1411 = vadd.f32 0.0, %v1410
      %1412 = vmatmul.bf16.gmra.mxu0 %v1318
      %v1413 = vpop.f32.mrf.mxu0
      %v1414 = vadd.f32 0.0, %v1413
      %v1415 = vpop.f32.mrf.mxu0
      %v1416 = vadd.f32 0.0, %v1415
      %1417 = vmatmul.bf16.gmra.mxu0 %v1321
      %v1418 = vpop.f32.mrf.mxu0
      %v1419 = vadd.f32 0.0, %v1418
      %v1420 = vpop.f32.mrf.mxu0
      %v1421 = vadd.f32 0.0, %v1420
      %1422 = vmatmul.bf16.gmra.mxu0 %v1324
      %v1423 = vpop.f32.mrf.mxu0
      %v1424 = vadd.f32 0.0, %v1423
      %v1425 = vpop.f32.mrf.mxu0
      %v1426 = vadd.f32 0.0, %v1425
      %1427 = vdwg.mxu0
      %v1428 = vadd.f32 %v1067, %v1339
      %v1429 = vadd.f32 %v1068, %v1341
      %v1430 = vadd.f32 %v1069, %v1344
      %v1431 = vadd.f32 %v1070, %v1346
      %v1432 = vadd.f32 %v1071, %v1349
      %v1433 = vadd.f32 %v1072, %v1351
      %v1434 = vadd.f32 %v1073, %v1354
      %v1435 = vadd.f32 %v1074, %v1356
      %v1436 = vadd.f32 %v1075, %v1359
      %v1437 = vadd.f32 %v1076, %v1361
      %v1438 = vadd.f32 %v1077, %v1364
      %v1439 = vadd.f32 %v1078, %v1366
      %v1440 = vadd.f32 %v1079, %v1369
      %v1441 = vadd.f32 %v1080, %v1371
      %v1442 = vadd.f32 %v1081, %v1374
      %v1443 = vadd.f32 %v1082, %v1376
      %v1444 = vadd.f32 %v1083, %v1379
      %v1445 = vadd.f32 %v1084, %v1381
      %v1446 = vadd.f32 %v1085, %v1384
      %v1447 = vadd.f32 %v1086, %v1386
      %v1448 = vadd.f32 %v1087, %v1389
      %v1449 = vadd.f32 %v1088, %v1391
      %v1450 = vadd.f32 %v1089, %v1394
      %v1451 = vadd.f32 %v1090, %v1396
      %v1452 = vadd.f32 %v1091, %v1399
      %v1453 = vadd.f32 %v1092, %v1401
      %v1454 = vadd.f32 %v1093, %v1404
      %v1455 = vadd.f32 %v1094, %v1406
      %v1456 = vadd.f32 %v1095, %v1409
      %v1457 = vadd.f32 %v1096, %v1411
      %v1458 = vadd.f32 %v1097, %v1414
      %v1459 = vadd.f32 %v1098, %v1416
      %v1460 = vadd.f32 %v1099, %v1419
      %v1461 = vadd.f32 %v1100, %v1421
      %v1462 = vadd.f32 %v1101, %v1424
      %v1463 = vadd.f32 %v1102, %v1426
      %v1464 = vld [vmem:[%s246 + $0x98] sm:$0x3]
      %s1465 = scalar_lea.vmem %s1, 16
      %v1466 = vld [vmem:[%s1465] sm:$0xf]
      %v1468 = vunpack.c.l.b16 %v1464
      %v1469 = vpack.c.b16 %v1468, %v1468
      %vm1470 = vsmask.f32 6400
      %v1472 = vshrl.u32 %v1216, 16
      %v1474 = vrot.slane %v1472, 1
      %v1475 = vshll.u32 %v1216, 16
      %v1477 = vrot.slane %v1475, 2
      %v1478 = vor.u32 %v1474, %v1477
      %v1480 = vshrl.u32 %v1217, 16
      %v1482 = vrot.slane %v1480, 1
      %v1483 = vshll.u32 %v1217, 16
      %v1485 = vrot.slane %v1483, 2
      %v1486 = vor.u32 %v1482, %v1485
      %v1487 = vsel %vm1470, %v1478, %v1486
      %v1489 = vshrl.u32 %v1218, 16
      %v1491 = vrot.slane %v1489, 1
      %v1492 = vshll.u32 %v1218, 16
      %v1494 = vrot.slane %v1492, 2
      %v1495 = vor.u32 %v1491, %v1494
      %v1496 = vsel %vm1470, %v1486, %v1495
      %v1498 = vshrl.u32 %v1219, 16
      %v1500 = vrot.slane %v1498, 1
      %v1501 = vshll.u32 %v1219, 16
      %v1503 = vrot.slane %v1501, 2
      %v1504 = vor.u32 %v1500, %v1503
      %v1505 = vsel %vm1470, %v1495, %v1504
      %v1507 = vshrl.u32 %v1220, 16
      %v1509 = vrot.slane %v1507, 1
      %v1510 = vshll.u32 %v1220, 16
      %v1512 = vrot.slane %v1510, 2
      %v1513 = vor.u32 %v1509, %v1512
      %v1514 = vsel %vm1470, %v1504, %v1513
      %v1516 = vshrl.u32 %v1221, 16
      %v1518 = vrot.slane %v1516, 1
      %v1519 = vshll.u32 %v1221, 16
      %v1521 = vrot.slane %v1519, 2
      %v1522 = vor.u32 %v1518, %v1521
      %v1523 = vsel %vm1470, %v1513, %v1522
      %v1525 = vshrl.u32 %v1222, 16
      %v1527 = vrot.slane %v1525, 1
      %v1528 = vshll.u32 %v1222, 16
      %v1530 = vrot.slane %v1528, 2
      %v1531 = vor.u32 %v1527, %v1530
      %v1532 = vsel %vm1470, %v1522, %v1531
      %v1534 = vshrl.u32 %v1223, 16
      %v1536 = vrot.slane %v1534, 1
      %v1537 = vshll.u32 %v1223, 16
      %v1539 = vrot.slane %v1537, 2
      %v1540 = vor.u32 %v1536, %v1539
      %v1541 = vsel %vm1470, %v1531, %v1540
      %v1543 = vshrl.u32 %v1224, 16
      %v1545 = vrot.slane %v1543, 1
      %v1546 = vshll.u32 %v1224, 16
      %v1548 = vrot.slane %v1546, 2
      %v1549 = vor.u32 %v1545, %v1548
      %v1550 = vsel %vm1470, %v1540, %v1549
      %v1552 = vshrl.u32 %v1225, 16
      %v1554 = vrot.slane %v1552, 1
      %v1555 = vshll.u32 %v1225, 16
      %v1557 = vrot.slane %v1555, 2
      %v1558 = vor.u32 %v1554, %v1557
      %v1559 = vsel %vm1470, %v1549, %v1558
      %v1561 = vshrl.u32 %v1226, 16
      %v1563 = vrot.slane %v1561, 1
      %v1564 = vshll.u32 %v1226, 16
      %v1566 = vrot.slane %v1564, 2
      %v1567 = vor.u32 %v1563, %v1566
      %v1568 = vsel %vm1470, %v1558, %v1567
      %v1570 = vshrl.u32 %v1227, 16
      %v1572 = vrot.slane %v1570, 1
      %v1573 = vshll.u32 %v1227, 16
      %v1575 = vrot.slane %v1573, 2
      %v1576 = vor.u32 %v1572, %v1575
      %v1577 = vsel %vm1470, %v1567, %v1576
      %v1579 = vshrl.u32 %v1228, 16
      %v1581 = vrot.slane %v1579, 1
      %v1582 = vshll.u32 %v1228, 16
      %v1584 = vrot.slane %v1582, 2
      %v1585 = vor.u32 %v1581, %v1584
      %v1586 = vsel %vm1470, %v1576, %v1585
      %v1588 = vshrl.u32 %v1229, 16
      %v1590 = vrot.slane %v1588, 1
      %v1591 = vshll.u32 %v1229, 16
      %v1593 = vrot.slane %v1591, 2
      %v1594 = vor.u32 %v1590, %v1593
      %v1595 = vsel %vm1470, %v1585, %v1594
      %v1597 = vshrl.u32 %v1230, 16
      %v1599 = vrot.slane %v1597, 1
      %v1600 = vshll.u32 %v1230, 16
      %v1602 = vrot.slane %v1600, 2
      %v1603 = vor.u32 %v1599, %v1602
      %v1604 = vsel %vm1470, %v1594, %v1603
      %v1606 = vshrl.u32 %v1231, 16
      %v1608 = vrot.slane %v1606, 1
      %v1609 = vshll.u32 %v1231, 16
      %v1611 = vrot.slane %v1609, 2
      %v1612 = vor.u32 %v1608, %v1611
      %v1613 = vsel %vm1470, %v1603, %v1612
      %v1615 = vshrl.u32 %v1232, 16
      %v1617 = vrot.slane %v1615, 1
      %v1618 = vshll.u32 %v1232, 16
      %v1620 = vrot.slane %v1618, 2
      %v1621 = vor.u32 %v1617, %v1620
      %v1622 = vsel %vm1470, %v1612, %v1621
      %v1624 = vshrl.u32 %v1233, 16
      %v1626 = vrot.slane %v1624, 1
      %v1627 = vshll.u32 %v1233, 16
      %v1629 = vrot.slane %v1627, 2
      %v1630 = vor.u32 %v1626, %v1629
      %v1631 = vsel %vm1470, %v1621, %v1630
      %v1633 = vshrl.u32 %v1469, 16
      %v1635 = vrot.slane %v1633, 1
      %v1636 = vshll.u32 %v1469, 16
      %v1638 = vrot.slane %v1636, 2
      %v1639 = vor.u32 %v1635, %v1638
      %v1640 = vsel %vm1470, %v1630, %v1639
      %v1642 = vsel %vm571, %v1487, 0
      %v1645 = vsel %vm571, %v1496, 0
      %v1648 = vsel %vm571, %v1505, 0
      %v1651 = vsel %vm571, %v1514, 0
      %v1654 = vsel %vm571, %v1523, 0
      %v1657 = vsel %vm571, %v1532, 0
      %v1660 = vsel %vm571, %v1541, 0
      %v1663 = vsel %vm571, %v1550, 0
      %v1666 = vsel %vm571, %v1559, 0
      %v1669 = vsel %vm571, %v1568, 0
      %v1672 = vsel %vm571, %v1577, 0
      %v1675 = vsel %vm571, %v1586, 0
      %v1678 = vsel %vm571, %v1595, 0
      %v1681 = vsel %vm571, %v1604, 0
      %v1684 = vsel %vm571, %v1613, 0
      %v1687 = vsel %vm571, %v1622, 0
      %v1690 = vsel %vm571, %v1631, 0
      %v1693 = vsel %vm571, %v1640, 0
      %v1696 = vsel %vm626, %v1466, 0
      %1698 = vmatpush.bf16.msra.mxu0 0
      %1699 = vmatpush.bf16.msra.mxu0 0
      %1700 = vmatpush.bf16.msra.mxu0 0
      %1701 = vmatpush.bf16.msra.mxu0 0
      %1702 = vmatpush.bf16.msra.mxu0 0
      %1703 = vmatpush.bf16.msra.mxu0 0
      %1704 = vmatpush.bf16.msra.mxu0 0
      %1705 = vmatpush.bf16.msra.mxu0 %v1696
      %1706 = vmatmul.bf16.gmra.mxu0 %v1642
      %v1707 = vpop.f32.mrf.mxu0
      %v1708 = vadd.f32 0.0, %v1707
      %v1709 = vpop.f32.mrf.mxu0
      %v1710 = vadd.f32 0.0, %v1709
      %1711 = vmatmul.bf16.gmra.mxu0 %v1645
      %v1712 = vpop.f32.mrf.mxu0
      %v1713 = vadd.f32 0.0, %v1712
      %v1714 = vpop.f32.mrf.mxu0
      %v1715 = vadd.f32 0.0, %v1714
      %1716 = vmatmul.bf16.gmra.mxu0 %v1648
      %v1717 = vpop.f32.mrf.mxu0
      %v1718 = vadd.f32 0.0, %v1717
      %v1719 = vpop.f32.mrf.mxu0
      %v1720 = vadd.f32 0.0, %v1719
      %1721 = vmatmul.bf16.gmra.mxu0 %v1651
      %v1722 = vpop.f32.mrf.mxu0
      %v1723 = vadd.f32 0.0, %v1722
      %v1724 = vpop.f32.mrf.mxu0
      %v1725 = vadd.f32 0.0, %v1724
      %1726 = vmatmul.bf16.gmra.mxu0 %v1654
      %v1727 = vpop.f32.mrf.mxu0
      %v1728 = vadd.f32 0.0, %v1727
      %v1729 = vpop.f32.mrf.mxu0
      %v1730 = vadd.f32 0.0, %v1729
      %1731 = vmatmul.bf16.gmra.mxu0 %v1657
      %v1732 = vpop.f32.mrf.mxu0
      %v1733 = vadd.f32 0.0, %v1732
      %v1734 = vpop.f32.mrf.mxu0
      %v1735 = vadd.f32 0.0, %v1734
      %1736 = vmatmul.bf16.gmra.mxu0 %v1660
      %v1737 = vpop.f32.mrf.mxu0
      %v1738 = vadd.f32 0.0, %v1737
      %v1739 = vpop.f32.mrf.mxu0
      %v1740 = vadd.f32 0.0, %v1739
      %1741 = vmatmul.bf16.gmra.mxu0 %v1663
      %v1742 = vpop.f32.mrf.mxu0
      %v1743 = vadd.f32 0.0, %v1742
      %v1744 = vpop.f32.mrf.mxu0
      %v1745 = vadd.f32 0.0, %v1744
      %1746 = vmatmul.bf16.gmra.mxu0 %v1666
      %v1747 = vpop.f32.mrf.mxu0
      %v1748 = vadd.f32 0.0, %v1747
      %v1749 = vpop.f32.mrf.mxu0
      %v1750 = vadd.f32 0.0, %v1749
      %1751 = vmatmul.bf16.gmra.mxu0 %v1669
      %v1752 = vpop.f32.mrf.mxu0
      %v1753 = vadd.f32 0.0, %v1752
      %v1754 = vpop.f32.mrf.mxu0
      %v1755 = vadd.f32 0.0, %v1754
      %1756 = vmatmul.bf16.gmra.mxu0 %v1672
      %v1757 = vpop.f32.mrf.mxu0
      %v1758 = vadd.f32 0.0, %v1757
      %v1759 = vpop.f32.mrf.mxu0
      %v1760 = vadd.f32 0.0, %v1759
      %1761 = vmatmul.bf16.gmra.mxu0 %v1675
      %v1762 = vpop.f32.mrf.mxu0
      %v1763 = vadd.f32 0.0, %v1762
      %v1764 = vpop.f32.mrf.mxu0
      %v1765 = vadd.f32 0.0, %v1764
      %1766 = vmatmul.bf16.gmra.mxu0 %v1678
      %v1767 = vpop.f32.mrf.mxu0
      %v1768 = vadd.f32 0.0, %v1767
      %v1769 = vpop.f32.mrf.mxu0
      %v1770 = vadd.f32 0.0, %v1769
      %1771 = vmatmul.bf16.gmra.mxu0 %v1681
      %v1772 = vpop.f32.mrf.mxu0
      %v1773 = vadd.f32 0.0, %v1772
      %v1774 = vpop.f32.mrf.mxu0
      %v1775 = vadd.f32 0.0, %v1774
      %1776 = vmatmul.bf16.gmra.mxu0 %v1684
      %v1777 = vpop.f32.mrf.mxu0
      %v1778 = vadd.f32 0.0, %v1777
      %v1779 = vpop.f32.mrf.mxu0
      %v1780 = vadd.f32 0.0, %v1779
      %1781 = vmatmul.bf16.gmra.mxu0 %v1687
      %v1782 = vpop.f32.mrf.mxu0
      %v1783 = vadd.f32 0.0, %v1782
      %v1784 = vpop.f32.mrf.mxu0
      %v1785 = vadd.f32 0.0, %v1784
      %1786 = vmatmul.bf16.gmra.mxu0 %v1690
      %v1787 = vpop.f32.mrf.mxu0
      %v1788 = vadd.f32 0.0, %v1787
      %v1789 = vpop.f32.mrf.mxu0
      %v1790 = vadd.f32 0.0, %v1789
      %1791 = vmatmul.bf16.gmra.mxu0 %v1693
      %v1792 = vpop.f32.mrf.mxu0
      %v1793 = vadd.f32 0.0, %v1792
      %v1794 = vpop.f32.mrf.mxu0
      %v1795 = vadd.f32 0.0, %v1794
      %1796 = vdwg.mxu0
      %v1797 = vadd.f32 %v1428, %v1708
      %v1798 = vadd.f32 %v1429, %v1710
      %v1799 = vadd.f32 %v1430, %v1713
      %v1800 = vadd.f32 %v1431, %v1715
      %v1801 = vadd.f32 %v1432, %v1718
      %v1802 = vadd.f32 %v1433, %v1720
      %v1803 = vadd.f32 %v1434, %v1723
      %v1804 = vadd.f32 %v1435, %v1725
      %v1805 = vadd.f32 %v1436, %v1728
      %v1806 = vadd.f32 %v1437, %v1730
      %v1807 = vadd.f32 %v1438, %v1733
      %v1808 = vadd.f32 %v1439, %v1735
      %v1809 = vadd.f32 %v1440, %v1738
      %v1810 = vadd.f32 %v1441, %v1740
      %v1811 = vadd.f32 %v1442, %v1743
      %v1812 = vadd.f32 %v1443, %v1745
      %v1813 = vadd.f32 %v1444, %v1748
      %v1814 = vadd.f32 %v1445, %v1750
      %v1815 = vadd.f32 %v1446, %v1753
      %v1816 = vadd.f32 %v1447, %v1755
      %v1817 = vadd.f32 %v1448, %v1758
      %v1818 = vadd.f32 %v1449, %v1760
      %v1819 = vadd.f32 %v1450, %v1763
      %v1820 = vadd.f32 %v1451, %v1765
      %v1821 = vadd.f32 %v1452, %v1768
      %v1822 = vadd.f32 %v1453, %v1770
      %v1823 = vadd.f32 %v1454, %v1773
      %v1824 = vadd.f32 %v1455, %v1775
      %v1825 = vadd.f32 %v1456, %v1778
      %v1826 = vadd.f32 %v1457, %v1780
      %v1827 = vadd.f32 %v1458, %v1783
      %v1828 = vadd.f32 %v1459, %v1785
      %v1829 = vadd.f32 %v1460, %v1788
      %v1830 = vadd.f32 %v1461, %v1790
      %v1831 = vadd.f32 %v1462, %v1793
      %v1832 = vadd.f32 %v1463, %v1795
      %v1833 = vld [vmem:[%s246 + $0x8] sm:$0xc]
      %s1834 = scalar_lea.vmem %s1, 20
      %v1835 = vld [vmem:[%s1834] sm:$0xf]
      %v1837 = vunpack.c.l.b16 %v1833
      %v1838 = vpack.c.b16 %v1180, %v1837
      %vm1839 = vcmask 1045504
      %v1840 = vrot.slane %v1838, 2
      %v1841 = vrot.slane %v1217, 2
      %v1842 = vsel %vm1839, %v1840, %v1841
      %v1843 = vrot.slane %v1218, 2
      %v1844 = vsel %vm1839, %v1841, %v1843
      %v1845 = vrot.slane %v1219, 2
      %v1846 = vsel %vm1839, %v1843, %v1845
      %v1847 = vrot.slane %v1220, 2
      %v1848 = vsel %vm1839, %v1845, %v1847
      %v1849 = vrot.slane %v1221, 2
      %v1850 = vsel %vm1839, %v1847, %v1849
      %v1851 = vrot.slane %v1222, 2
      %v1852 = vsel %vm1839, %v1849, %v1851
      %v1853 = vrot.slane %v1223, 2
      %v1854 = vsel %vm1839, %v1851, %v1853
      %v1855 = vrot.slane %v1224, 2
      %v1856 = vsel %vm1839, %v1853, %v1855
      %v1857 = vrot.slane %v1225, 2
      %v1858 = vsel %vm1839, %v1855, %v1857
      %v1859 = vrot.slane %v1226, 2
      %v1860 = vsel %vm1839, %v1857, %v1859
      %v1861 = vrot.slane %v1227, 2
      %v1862 = vsel %vm1839, %v1859, %v1861
      %v1863 = vrot.slane %v1228, 2
      %v1864 = vsel %vm1839, %v1861, %v1863
      %v1865 = vrot.slane %v1229, 2
      %v1866 = vsel %vm1839, %v1863, %v1865
      %v1867 = vrot.slane %v1230, 2
      %v1868 = vsel %vm1839, %v1865, %v1867
      %v1869 = vrot.slane %v1231, 2
      %v1870 = vsel %vm1839, %v1867, %v1869
      %v1871 = vrot.slane %v1232, 2
      %v1872 = vsel %vm1839, %v1869, %v1871
      %v1873 = vrot.slane %v1233, 2
      %v1874 = vsel %vm1839, %v1871, %v1873
      %v1875 = vrot.slane %v1469, 2
      %v1876 = vsel %vm1839, %v1873, %v1875
      %v1878 = vsel %vm571, %v1842, 0
      %v1881 = vsel %vm571, %v1844, 0
      %v1884 = vsel %vm571, %v1846, 0
      %v1887 = vsel %vm571, %v1848, 0
      %v1890 = vsel %vm571, %v1850, 0
      %v1893 = vsel %vm571, %v1852, 0
      %v1896 = vsel %vm571, %v1854, 0
      %v1899 = vsel %vm571, %v1856, 0
      %v1902 = vsel %vm571, %v1858, 0
      %v1905 = vsel %vm571, %v1860, 0
      %v1908 = vsel %vm571, %v1862, 0
      %v1911 = vsel %vm571, %v1864, 0
      %v1914 = vsel %vm571, %v1866, 0
      %v1917 = vsel %vm571, %v1868, 0
      %v1920 = vsel %vm571, %v1870, 0
      %v1923 = vsel %vm571, %v1872, 0
      %v1926 = vsel %vm571, %v1874, 0
      %v1929 = vsel %vm571, %v1876, 0
      %v1932 = vsel %vm626, %v1835, 0
      %1934 = vmatpush.bf16.msra.mxu0 0
      %1935 = vmatpush.bf16.msra.mxu0 0
      %1936 = vmatpush.bf16.msra.mxu0 0
      %1937 = vmatpush.bf16.msra.mxu0 0
      %1938 = vmatpush.bf16.msra.mxu0 0
      %1939 = vmatpush.bf16.msra.mxu0 0
      %1940 = vmatpush.bf16.msra.mxu0 0
      %1941 = vmatpush.bf16.msra.mxu0 %v1932
      %1942 = vmatmul.bf16.gmra.mxu0 %v1878
      %v1943 = vpop.f32.mrf.mxu0
      %v1944 = vadd.f32 0.0, %v1943
      %v1945 = vpop.f32.mrf.mxu0
      %v1946 = vadd.f32 0.0, %v1945
      %1947 = vmatmul.bf16.gmra.mxu0 %v1881
      %v1948 = vpop.f32.mrf.mxu0
      %v1949 = vadd.f32 0.0, %v1948
      %v1950 = vpop.f32.mrf.mxu0
      %v1951 = vadd.f32 0.0, %v1950
      %1952 = vmatmul.bf16.gmra.mxu0 %v1884
      %v1953 = vpop.f32.mrf.mxu0
      %v1954 = vadd.f32 0.0, %v1953
      %v1955 = vpop.f32.mrf.mxu0
      %v1956 = vadd.f32 0.0, %v1955
      %1957 = vmatmul.bf16.gmra.mxu0 %v1887
      %v1958 = vpop.f32.mrf.mxu0
      %v1959 = vadd.f32 0.0, %v1958
      %v1960 = vpop.f32.mrf.mxu0
      %v1961 = vadd.f32 0.0, %v1960
      %1962 = vmatmul.bf16.gmra.mxu0 %v1890
      %v1963 = vpop.f32.mrf.mxu0
      %v1964 = vadd.f32 0.0, %v1963
      %v1965 = vpop.f32.mrf.mxu0
      %v1966 = vadd.f32 0.0, %v1965
      %1967 = vmatmul.bf16.gmra.mxu0 %v1893
      %v1968 = vpop.f32.mrf.mxu0
      %v1969 = vadd.f32 0.0, %v1968
      %v1970 = vpop.f32.mrf.mxu0
      %v1971 = vadd.f32 0.0, %v1970
      %1972 = vmatmul.bf16.gmra.mxu0 %v1896
      %v1973 = vpop.f32.mrf.mxu0
      %v1974 = vadd.f32 0.0, %v1973
      %v1975 = vpop.f32.mrf.mxu0
      %v1976 = vadd.f32 0.0, %v1975
      %1977 = vmatmul.bf16.gmra.mxu0 %v1899
      %v1978 = vpop.f32.mrf.mxu0
      %v1979 = vadd.f32 0.0, %v1978
      %v1980 = vpop.f32.mrf.mxu0
      %v1981 = vadd.f32 0.0, %v1980
      %1982 = vmatmul.bf16.gmra.mxu0 %v1902
      %v1983 = vpop.f32.mrf.mxu0
      %v1984 = vadd.f32 0.0, %v1983
      %v1985 = vpop.f32.mrf.mxu0
      %v1986 = vadd.f32 0.0, %v1985
      %1987 = vmatmul.bf16.gmra.mxu0 %v1905
      %v1988 = vpop.f32.mrf.mxu0
      %v1989 = vadd.f32 0.0, %v1988
      %v1990 = vpop.f32.mrf.mxu0
      %v1991 = vadd.f32 0.0, %v1990
      %1992 = vmatmul.bf16.gmra.mxu0 %v1908
      %v1993 = vpop.f32.mrf.mxu0
      %v1994 = vadd.f32 0.0, %v1993
      %v1995 = vpop.f32.mrf.mxu0
      %v1996 = vadd.f32 0.0, %v1995
      %1997 = vmatmul.bf16.gmra.mxu0 %v1911
      %v1998 = vpop.f32.mrf.mxu0
      %v1999 = vadd.f32 0.0, %v1998
      %v2000 = vpop.f32.mrf.mxu0
      %v2001 = vadd.f32 0.0, %v2000
      %2002 = vmatmul.bf16.gmra.mxu0 %v1914
      %v2003 = vpop.f32.mrf.mxu0
      %v2004 = vadd.f32 0.0, %v2003
      %v2005 = vpop.f32.mrf.mxu0
      %v2006 = vadd.f32 0.0, %v2005
      %2007 = vmatmul.bf16.gmra.mxu0 %v1917
      %v2008 = vpop.f32.mrf.mxu0
      %v2009 = vadd.f32 0.0, %v2008
      %v2010 = vpop.f32.mrf.mxu0
      %v2011 = vadd.f32 0.0, %v2010
      %2012 = vmatmul.bf16.gmra.mxu0 %v1920
      %v2013 = vpop.f32.mrf.mxu0
      %v2014 = vadd.f32 0.0, %v2013
      %v2015 = vpop.f32.mrf.mxu0
      %v2016 = vadd.f32 0.0, %v2015
      %2017 = vmatmul.bf16.gmra.mxu0 %v1923
      %v2018 = vpop.f32.mrf.mxu0
      %v2019 = vadd.f32 0.0, %v2018
      %v2020 = vpop.f32.mrf.mxu0
      %v2021 = vadd.f32 0.0, %v2020
      %2022 = vmatmul.bf16.gmra.mxu0 %v1926
      %v2023 = vpop.f32.mrf.mxu0
      %v2024 = vadd.f32 0.0, %v2023
      %v2025 = vpop.f32.mrf.mxu0
      %v2026 = vadd.f32 0.0, %v2025
      %2027 = vmatmul.bf16.gmra.mxu0 %v1929
      %v2028 = vpop.f32.mrf.mxu0
      %v2029 = vadd.f32 0.0, %v2028
      %v2030 = vpop.f32.mrf.mxu0
      %v2031 = vadd.f32 0.0, %v2030
      %2032 = vdwg.mxu0
      %v2033 = vadd.f32 %v1797, %v1944
      %v2034 = vadd.f32 %v1798, %v1946
      %v2035 = vadd.f32 %v1799, %v1949
      %v2036 = vadd.f32 %v1800, %v1951
      %v2037 = vadd.f32 %v1801, %v1954
      %v2038 = vadd.f32 %v1802, %v1956
      %v2039 = vadd.f32 %v1803, %v1959
      %v2040 = vadd.f32 %v1804, %v1961
      %v2041 = vadd.f32 %v1805, %v1964
      %v2042 = vadd.f32 %v1806, %v1966
      %v2043 = vadd.f32 %v1807, %v1969
      %v2044 = vadd.f32 %v1808, %v1971
      %v2045 = vadd.f32 %v1809, %v1974
      %v2046 = vadd.f32 %v1810, %v1976
      %v2047 = vadd.f32 %v1811, %v1979
      %v2048 = vadd.f32 %v1812, %v1981
      %v2049 = vadd.f32 %v1813, %v1984
      %v2050 = vadd.f32 %v1814, %v1986
      %v2051 = vadd.f32 %v1815, %v1989
      %v2052 = vadd.f32 %v1816, %v1991
      %v2053 = vadd.f32 %v1817, %v1994
      %v2054 = vadd.f32 %v1818, %v1996
      %v2055 = vadd.f32 %v1819, %v1999
      %v2056 = vadd.f32 %v1820, %v2001
      %v2057 = vadd.f32 %v1821, %v2004
      %v2058 = vadd.f32 %v1822, %v2006
      %v2059 = vadd.f32 %v1823, %v2009
      %v2060 = vadd.f32 %v1824, %v2011
      %v2061 = vadd.f32 %v1825, %v2014
      %v2062 = vadd.f32 %v1826, %v2016
      %v2063 = vadd.f32 %v1827, %v2019
      %v2064 = vadd.f32 %v1828, %v2021
      %v2065 = vadd.f32 %v1829, %v2024
      %v2066 = vadd.f32 %v1830, %v2026
      %v2067 = vadd.f32 %v1831, %v2029
      %v2068 = vadd.f32 %v1832, %v2031
      %v2069 = vld [vmem:[%s246 + $0x10] sm:$0xc]
      %v2070 = vld [vmem:[%s246 + $0x14] sm:$0xf]
      %v2071 = vld [vmem:[%s246 + $0x18] sm:$0xf]
      %v2072 = vld [vmem:[%s246 + $0x1c] sm:$0xf]
      %v2073 = vld [vmem:[%s246 + $0x20] sm:$0xf]
      %v2074 = vld [vmem:[%s246 + $0x24] sm:$0xf]
      %v2075 = vld [vmem:[%s246 + $0x28] sm:$0xf]
      %v2076 = vld [vmem:[%s246 + $0x2c] sm:$0xf]
      %v2077 = vld [vmem:[%s246 + $0x30] sm:$0xf]
      %v2078 = vld [vmem:[%s246 + $0x34] sm:$0xf]
      %v2079 = vld [vmem:[%s246 + $0x38] sm:$0xf]
      %v2080 = vld [vmem:[%s246 + $0x3c] sm:$0xf]
      %v2081 = vld [vmem:[%s246 + $0x40] sm:$0xf]
      %v2082 = vld [vmem:[%s246 + $0x44] sm:$0xf]
      %v2083 = vld [vmem:[%s246 + $0x48] sm:$0xf]
      %v2084 = vld [vmem:[%s246 + $0x4c] sm:$0xf]
      %v2085 = vld [vmem:[%s246 + $0x50] sm:$0xf]
      %v2086 = vld [vmem:[%s246 + $0x54] sm:$0xf]
      %v2087 = vld [vmem:[%s246 + $0x58] sm:$0xf]
      %v2088 = vld [vmem:[%s246 + $0x5c] sm:$0xf]
      %v2089 = vld [vmem:[%s246 + $0x60] sm:$0xf]
      %v2090 = vld [vmem:[%s246 + $0x64] sm:$0xf]
      %v2091 = vld [vmem:[%s246 + $0x68] sm:$0xf]
      %v2092 = vld [vmem:[%s246 + $0x6c] sm:$0xf]
      %v2093 = vld [vmem:[%s246 + $0x70] sm:$0xf]
      %v2094 = vld [vmem:[%s246 + $0x74] sm:$0xf]
      %v2095 = vld [vmem:[%s246 + $0x78] sm:$0xf]
      %v2096 = vld [vmem:[%s246 + $0x7c] sm:$0xf]
      %v2097 = vld [vmem:[%s246 + $0x80] sm:$0xf]
      %v2098 = vld [vmem:[%s246 + $0x84] sm:$0xf]
      %v2099 = vld [vmem:[%s246 + $0x88] sm:$0xf]
      %v2100 = vld [vmem:[%s246 + $0x8c] sm:$0xf]
      %v2101 = vld [vmem:[%s246 + $0x90] sm:$0xf]
      %v2102 = vld [vmem:[%s246 + $0x94] sm:$0xf]
      %v2103 = vld [vmem:[%s246 + $0x98] sm:$0xf]
      %v2104 = vld [vmem:[%s246 + $0x9c] sm:$0xf]
      %v2105 = vld [vmem:[%s246 + $0xa0] sm:$0x3]
      %s2106 = scalar_lea.vmem %s1, 24
      %v2107 = vld [vmem:[%s2106] sm:$0xf]
      %v2145 = vunpack.c.l.b16 %v2069
      %v2146 = vunpack.c.l.b16 %v2070
      %v2147 = vunpack.c.l.b16 %v2071
      %v2148 = vunpack.c.l.b16 %v2072
      %v2149 = vunpack.c.l.b16 %v2073
      %v2150 = vunpack.c.l.b16 %v2074
      %v2151 = vunpack.c.l.b16 %v2075
      %v2152 = vunpack.c.l.b16 %v2076
      %v2153 = vunpack.c.l.b16 %v2077
      %v2154 = vunpack.c.l.b16 %v2078
      %v2155 = vunpack.c.l.b16 %v2079
      %v2156 = vunpack.c.l.b16 %v2080
      %v2157 = vunpack.c.l.b16 %v2081
      %v2158 = vunpack.c.l.b16 %v2082
      %v2159 = vunpack.c.l.b16 %v2083
      %v2160 = vunpack.c.l.b16 %v2084
      %v2161 = vunpack.c.l.b16 %v2085
      %v2162 = vunpack.c.l.b16 %v2086
      %v2163 = vunpack.c.l.b16 %v2087
      %v2164 = vunpack.c.l.b16 %v2088
      %v2165 = vunpack.c.l.b16 %v2089
      %v2166 = vunpack.c.l.b16 %v2090
      %v2167 = vunpack.c.l.b16 %v2091
      %v2168 = vunpack.c.l.b16 %v2092
      %v2169 = vunpack.c.l.b16 %v2093
      %v2170 = vunpack.c.l.b16 %v2094
      %v2171 = vunpack.c.l.b16 %v2095
      %v2172 = vunpack.c.l.b16 %v2096
      %v2173 = vunpack.c.l.b16 %v2097
      %v2174 = vunpack.c.l.b16 %v2098
      %v2175 = vunpack.c.l.b16 %v2099
      %v2176 = vunpack.c.l.b16 %v2100
      %v2177 = vunpack.c.l.b16 %v2101
      %v2178 = vunpack.c.l.b16 %v2102
      %v2179 = vunpack.c.l.b16 %v2103
      %v2180 = vunpack.c.l.b16 %v2104
      %v2181 = vunpack.c.l.b16 %v2105
      %v2182 = vpack.c.b16 %v2146, %v2145
      %v2183 = vpack.c.b16 %v2148, %v2147
      %v2184 = vpack.c.b16 %v2150, %v2149
      %v2185 = vpack.c.b16 %v2152, %v2151
      %v2186 = vpack.c.b16 %v2154, %v2153
      %v2187 = vpack.c.b16 %v2156, %v2155
      %v2188 = vpack.c.b16 %v2158, %v2157
      %v2189 = vpack.c.b16 %v2160, %v2159
      %v2190 = vpack.c.b16 %v2162, %v2161
      %v2191 = vpack.c.b16 %v2164, %v2163
      %v2192 = vpack.c.b16 %v2166, %v2165
      %v2193 = vpack.c.b16 %v2168, %v2167
      %v2194 = vpack.c.b16 %v2170, %v2169
      %v2195 = vpack.c.b16 %v2172, %v2171
      %v2196 = vpack.c.b16 %v2174, %v2173
      %v2197 = vpack.c.b16 %v2176, %v2175
      %v2198 = vpack.c.b16 %v2178, %v2177
      %v2199 = vpack.c.b16 %v2180, %v2179
      %v2200 = vpack.c.b16 %v2181, %v2181
      %v2201 = vrot.slane %v2182, 2
      %v2202 = vrot.slane %v2183, 2
      %v2203 = vsel %vm1839, %v2201, %v2202
      %v2204 = vrot.slane %v2184, 2
      %v2205 = vsel %vm1839, %v2202, %v2204
      %v2206 = vrot.slane %v2185, 2
      %v2207 = vsel %vm1839, %v2204, %v2206
      %v2208 = vrot.slane %v2186, 2
      %v2209 = vsel %vm1839, %v2206, %v2208
      %v2210 = vrot.slane %v2187, 2
      %v2211 = vsel %vm1839, %v2208, %v2210
      %v2212 = vrot.slane %v2188, 2
      %v2213 = vsel %vm1839, %v2210, %v2212
      %v2214 = vrot.slane %v2189, 2
      %v2215 = vsel %vm1839, %v2212, %v2214
      %v2216 = vrot.slane %v2190, 2
      %v2217 = vsel %vm1839, %v2214, %v2216
      %v2218 = vrot.slane %v2191, 2
      %v2219 = vsel %vm1839, %v2216, %v2218
      %v2220 = vrot.slane %v2192, 2
      %v2221 = vsel %vm1839, %v2218, %v2220
      %v2222 = vrot.slane %v2193, 2
      %v2223 = vsel %vm1839, %v2220, %v2222
      %v2224 = vrot.slane %v2194, 2
      %v2225 = vsel %vm1839, %v2222, %v2224
      %v2226 = vrot.slane %v2195, 2
      %v2227 = vsel %vm1839, %v2224, %v2226
      %v2228 = vrot.slane %v2196, 2
      %v2229 = vsel %vm1839, %v2226, %v2228
      %v2230 = vrot.slane %v2197, 2
      %v2231 = vsel %vm1839, %v2228, %v2230
      %v2232 = vrot.slane %v2198, 2
      %v2233 = vsel %vm1839, %v2230, %v2232
      %v2234 = vrot.slane %v2199, 2
      %v2235 = vsel %vm1839, %v2232, %v2234
      %v2236 = vrot.slane %v2200, 2
      %v2237 = vsel %vm1839, %v2234, %v2236
      %v2239 = vsel %vm571, %v2203, 0
      %v2242 = vsel %vm571, %v2205, 0
      %v2245 = vsel %vm571, %v2207, 0
      %v2248 = vsel %vm571, %v2209, 0
      %v2251 = vsel %vm571, %v2211, 0
      %v2254 = vsel %vm571, %v2213, 0
      %v2257 = vsel %vm571, %v2215, 0
      %v2260 = vsel %vm571, %v2217, 0
      %v2263 = vsel %vm571, %v2219, 0
      %v2266 = vsel %vm571, %v2221, 0
      %v2269 = vsel %vm571, %v2223, 0
      %v2272 = vsel %vm571, %v2225, 0
      %v2275 = vsel %vm571, %v2227, 0
      %v2278 = vsel %vm571, %v2229, 0
      %v2281 = vsel %vm571, %v2231, 0
      %v2284 = vsel %vm571, %v2233, 0
      %v2287 = vsel %vm571, %v2235, 0
      %v2290 = vsel %vm571, %v2237, 0
      %v2293 = vsel %vm626, %v2107, 0
      %2295 = vmatpush.bf16.msra.mxu0 0
      %2296 = vmatpush.bf16.msra.mxu0 0
      %2297 = vmatpush.bf16.msra.mxu0 0
      %2298 = vmatpush.bf16.msra.mxu0 0
      %2299 = vmatpush.bf16.msra.mxu0 0
      %2300 = vmatpush.bf16.msra.mxu0 0
      %2301 = vmatpush.bf16.msra.mxu0 0
      %2302 = vmatpush.bf16.msra.mxu0 %v2293
      %2303 = vmatmul.bf16.gmra.mxu0 %v2239
      %v2304 = vpop.f32.mrf.mxu0
      %v2305 = vadd.f32 0.0, %v2304
      %v2306 = vpop.f32.mrf.mxu0
      %v2307 = vadd.f32 0.0, %v2306
      %2308 = vmatmul.bf16.gmra.mxu0 %v2242
      %v2309 = vpop.f32.mrf.mxu0
      %v2310 = vadd.f32 0.0, %v2309
      %v2311 = vpop.f32.mrf.mxu0
      %v2312 = vadd.f32 0.0, %v2311
      %2313 = vmatmul.bf16.gmra.mxu0 %v2245
      %v2314 = vpop.f32.mrf.mxu0
      %v2315 = vadd.f32 0.0, %v2314
      %v2316 = vpop.f32.mrf.mxu0
      %v2317 = vadd.f32 0.0, %v2316
      %2318 = vmatmul.bf16.gmra.mxu0 %v2248
      %v2319 = vpop.f32.mrf.mxu0
      %v2320 = vadd.f32 0.0, %v2319
      %v2321 = vpop.f32.mrf.mxu0
      %v2322 = vadd.f32 0.0, %v2321
      %2323 = vmatmul.bf16.gmra.mxu0 %v2251
      %v2324 = vpop.f32.mrf.mxu0
      %v2325 = vadd.f32 0.0, %v2324
      %v2326 = vpop.f32.mrf.mxu0
      %v2327 = vadd.f32 0.0, %v2326
      %2328 = vmatmul.bf16.gmra.mxu0 %v2254
      %v2329 = vpop.f32.mrf.mxu0
      %v2330 = vadd.f32 0.0, %v2329
      %v2331 = vpop.f32.mrf.mxu0
      %v2332 = vadd.f32 0.0, %v2331
      %2333 = vmatmul.bf16.gmra.mxu0 %v2257
      %v2334 = vpop.f32.mrf.mxu0
      %v2335 = vadd.f32 0.0, %v2334
      %v2336 = vpop.f32.mrf.mxu0
      %v2337 = vadd.f32 0.0, %v2336
      %2338 = vmatmul.bf16.gmra.mxu0 %v2260
      %v2339 = vpop.f32.mrf.mxu0
      %v2340 = vadd.f32 0.0, %v2339
      %v2341 = vpop.f32.mrf.mxu0
      %v2342 = vadd.f32 0.0, %v2341
      %2343 = vmatmul.bf16.gmra.mxu0 %v2263
      %v2344 = vpop.f32.mrf.mxu0
      %v2345 = vadd.f32 0.0, %v2344
      %v2346 = vpop.f32.mrf.mxu0
      %v2347 = vadd.f32 0.0, %v2346
      %2348 = vmatmul.bf16.gmra.mxu0 %v2266
      %v2349 = vpop.f32.mrf.mxu0
      %v2350 = vadd.f32 0.0, %v2349
      %v2351 = vpop.f32.mrf.mxu0
      %v2352 = vadd.f32 0.0, %v2351
      %2353 = vmatmul.bf16.gmra.mxu0 %v2269
      %v2354 = vpop.f32.mrf.mxu0
      %v2355 = vadd.f32 0.0, %v2354
      %v2356 = vpop.f32.mrf.mxu0
      %v2357 = vadd.f32 0.0, %v2356
      %2358 = vmatmul.bf16.gmra.mxu0 %v2272
      %v2359 = vpop.f32.mrf.mxu0
      %v2360 = vadd.f32 0.0, %v2359
      %v2361 = vpop.f32.mrf.mxu0
      %v2362 = vadd.f32 0.0, %v2361
      %2363 = vmatmul.bf16.gmra.mxu0 %v2275
      %v2364 = vpop.f32.mrf.mxu0
      %v2365 = vadd.f32 0.0, %v2364
      %v2366 = vpop.f32.mrf.mxu0
      %v2367 = vadd.f32 0.0, %v2366
      %2368 = vmatmul.bf16.gmra.mxu0 %v2278
      %v2369 = vpop.f32.mrf.mxu0
      %v2370 = vadd.f32 0.0, %v2369
      %v2371 = vpop.f32.mrf.mxu0
      %v2372 = vadd.f32 0.0, %v2371
      %2373 = vmatmul.bf16.gmra.mxu0 %v2281
      %v2374 = vpop.f32.mrf.mxu0
      %v2375 = vadd.f32 0.0, %v2374
      %v2376 = vpop.f32.mrf.mxu0
      %v2377 = vadd.f32 0.0, %v2376
      %2378 = vmatmul.bf16.gmra.mxu0 %v2284
      %v2379 = vpop.f32.mrf.mxu0
      %v2380 = vadd.f32 0.0, %v2379
      %v2381 = vpop.f32.mrf.mxu0
      %v2382 = vadd.f32 0.0, %v2381
      %2383 = vmatmul.bf16.gmra.mxu0 %v2287
      %v2384 = vpop.f32.mrf.mxu0
      %v2385 = vadd.f32 0.0, %v2384
      %v2386 = vpop.f32.mrf.mxu0
      %v2387 = vadd.f32 0.0, %v2386
      %2388 = vmatmul.bf16.gmra.mxu0 %v2290
      %v2389 = vpop.f32.mrf.mxu0
      %v2390 = vadd.f32 0.0, %v2389
      %v2391 = vpop.f32.mrf.mxu0
      %v2392 = vadd.f32 0.0, %v2391
      %2393 = vdwg.mxu0
      %v2394 = vadd.f32 %v2033, %v2305
      %v2395 = vadd.f32 %v2034, %v2307
      %v2396 = vadd.f32 %v2035, %v2310
      %v2397 = vadd.f32 %v2036, %v2312
      %v2398 = vadd.f32 %v2037, %v2315
      %v2399 = vadd.f32 %v2038, %v2317
      %v2400 = vadd.f32 %v2039, %v2320
      %v2401 = vadd.f32 %v2040, %v2322
      %v2402 = vadd.f32 %v2041, %v2325
      %v2403 = vadd.f32 %v2042, %v2327
      %v2404 = vadd.f32 %v2043, %v2330
      %v2405 = vadd.f32 %v2044, %v2332
      %v2406 = vadd.f32 %v2045, %v2335
      %v2407 = vadd.f32 %v2046, %v2337
      %v2408 = vadd.f32 %v2047, %v2340
      %v2409 = vadd.f32 %v2048, %v2342
      %v2410 = vadd.f32 %v2049, %v2345
      %v2411 = vadd.f32 %v2050, %v2347
      %v2412 = vadd.f32 %v2051, %v2350
      %v2413 = vadd.f32 %v2052, %v2352
      %v2414 = vadd.f32 %v2053, %v2355
      %v2415 = vadd.f32 %v2054, %v2357
      %v2416 = vadd.f32 %v2055, %v2360
      %v2417 = vadd.f32 %v2056, %v2362
      %v2418 = vadd.f32 %v2057, %v2365
      %v2419 = vadd.f32 %v2058, %v2367
      %v2420 = vadd.f32 %v2059, %v2370
      %v2421 = vadd.f32 %v2060, %v2372
      %v2422 = vadd.f32 %v2061, %v2375
      %v2423 = vadd.f32 %v2062, %v2377
      %v2424 = vadd.f32 %v2063, %v2380
      %v2425 = vadd.f32 %v2064, %v2382
      %v2426 = vadd.f32 %v2065, %v2385
      %v2427 = vadd.f32 %v2066, %v2387
      %v2428 = vadd.f32 %v2067, %v2390
      %v2429 = vadd.f32 %v2068, %v2392
      %v2430 = vld [vmem:[%s246 + $0xa0] sm:$0x7]
      %s2431 = scalar_lea.vmem %s1, 28
      %v2432 = vld [vmem:[%s2431] sm:$0xf]
      %v2434 = vunpack.c.l.b16 %v2430
      %v2435 = vpack.c.b16 %v2434, %v2434
      %vm2436 = vsmask.f32 5376
      %v2438 = vshrl.u32 %v2182, 16
      %v2440 = vrot.slane %v2438, 2
      %v2441 = vshll.u32 %v2182, 16
      %v2443 = vrot.slane %v2441, 3
      %v2444 = vor.u32 %v2440, %v2443
      %v2446 = vshrl.u32 %v2183, 16
      %v2448 = vrot.slane %v2446, 2
      %v2449 = vshll.u32 %v2183, 16
      %v2451 = vrot.slane %v2449, 3
      %v2452 = vor.u32 %v2448, %v2451
      %v2453 = vsel %vm2436, %v2444, %v2452
      %v2455 = vshrl.u32 %v2184, 16
      %v2457 = vrot.slane %v2455, 2
      %v2458 = vshll.u32 %v2184, 16
      %v2460 = vrot.slane %v2458, 3
      %v2461 = vor.u32 %v2457, %v2460
      %v2462 = vsel %vm2436, %v2452, %v2461
      %v2464 = vshrl.u32 %v2185, 16
      %v2466 = vrot.slane %v2464, 2
      %v2467 = vshll.u32 %v2185, 16
      %v2469 = vrot.slane %v2467, 3
      %v2470 = vor.u32 %v2466, %v2469
      %v2471 = vsel %vm2436, %v2461, %v2470
      %v2473 = vshrl.u32 %v2186, 16
      %v2475 = vrot.slane %v2473, 2
      %v2476 = vshll.u32 %v2186, 16
      %v2478 = vrot.slane %v2476, 3
      %v2479 = vor.u32 %v2475, %v2478
      %v2480 = vsel %vm2436, %v2470, %v2479
      %v2482 = vshrl.u32 %v2187, 16
      %v2484 = vrot.slane %v2482, 2
      %v2485 = vshll.u32 %v2187, 16
      %v2487 = vrot.slane %v2485, 3
      %v2488 = vor.u32 %v2484, %v2487
      %v2489 = vsel %vm2436, %v2479, %v2488
      %v2491 = vshrl.u32 %v2188, 16
      %v2493 = vrot.slane %v2491, 2
      %v2494 = vshll.u32 %v2188, 16
      %v2496 = vrot.slane %v2494, 3
      %v2497 = vor.u32 %v2493, %v2496
      %v2498 = vsel %vm2436, %v2488, %v2497
      %v2500 = vshrl.u32 %v2189, 16
      %v2502 = vrot.slane %v2500, 2
      %v2503 = vshll.u32 %v2189, 16
      %v2505 = vrot.slane %v2503, 3
      %v2506 = vor.u32 %v2502, %v2505
      %v2507 = vsel %vm2436, %v2497, %v2506
      %v2509 = vshrl.u32 %v2190, 16
      %v2511 = vrot.slane %v2509, 2
      %v2512 = vshll.u32 %v2190, 16
      %v2514 = vrot.slane %v2512, 3
      %v2515 = vor.u32 %v2511, %v2514
      %v2516 = vsel %vm2436, %v2506, %v2515
      %v2518 = vshrl.u32 %v2191, 16
      %v2520 = vrot.slane %v2518, 2
      %v2521 = vshll.u32 %v2191, 16
      %v2523 = vrot.slane %v2521, 3
      %v2524 = vor.u32 %v2520, %v2523
      %v2525 = vsel %vm2436, %v2515, %v2524
      %v2527 = vshrl.u32 %v2192, 16
      %v2529 = vrot.slane %v2527, 2
      %v2530 = vshll.u32 %v2192, 16
      %v2532 = vrot.slane %v2530, 3
      %v2533 = vor.u32 %v2529, %v2532
      %v2534 = vsel %vm2436, %v2524, %v2533
      %v2536 = vshrl.u32 %v2193, 16
      %v2538 = vrot.slane %v2536, 2
      %v2539 = vshll.u32 %v2193, 16
      %v2541 = vrot.slane %v2539, 3
      %v2542 = vor.u32 %v2538, %v2541
      %v2543 = vsel %vm2436, %v2533, %v2542
      %v2545 = vshrl.u32 %v2194, 16
      %v2547 = vrot.slane %v2545, 2
      %v2548 = vshll.u32 %v2194, 16
      %v2550 = vrot.slane %v2548, 3
      %v2551 = vor.u32 %v2547, %v2550
      %v2552 = vsel %vm2436, %v2542, %v2551
      %v2554 = vshrl.u32 %v2195, 16
      %v2556 = vrot.slane %v2554, 2
      %v2557 = vshll.u32 %v2195, 16
      %v2559 = vrot.slane %v2557, 3
      %v2560 = vor.u32 %v2556, %v2559
      %v2561 = vsel %vm2436, %v2551, %v2560
      %v2563 = vshrl.u32 %v2196, 16
      %v2565 = vrot.slane %v2563, 2
      %v2566 = vshll.u32 %v2196, 16
      %v2568 = vrot.slane %v2566, 3
      %v2569 = vor.u32 %v2565, %v2568
      %v2570 = vsel %vm2436, %v2560, %v2569
      %v2572 = vshrl.u32 %v2197, 16
      %v2574 = vrot.slane %v2572, 2
      %v2575 = vshll.u32 %v2197, 16
      %v2577 = vrot.slane %v2575, 3
      %v2578 = vor.u32 %v2574, %v2577
      %v2579 = vsel %vm2436, %v2569, %v2578
      %v2581 = vshrl.u32 %v2198, 16
      %v2583 = vrot.slane %v2581, 2
      %v2584 = vshll.u32 %v2198, 16
      %v2586 = vrot.slane %v2584, 3
      %v2587 = vor.u32 %v2583, %v2586
      %v2588 = vsel %vm2436, %v2578, %v2587
      %v2590 = vshrl.u32 %v2199, 16
      %v2592 = vrot.slane %v2590, 2
      %v2593 = vshll.u32 %v2199, 16
      %v2595 = vrot.slane %v2593, 3
      %v2596 = vor.u32 %v2592, %v2595
      %v2597 = vsel %vm2436, %v2587, %v2596
      %v2599 = vshrl.u32 %v2435, 16
      %v2601 = vrot.slane %v2599, 2
      %v2602 = vshll.u32 %v2435, 16
      %v2604 = vrot.slane %v2602, 3
      %v2605 = vor.u32 %v2601, %v2604
      %v2606 = vsel %vm2436, %v2596, %v2605
      %v2608 = vsel %vm571, %v2453, 0
      %v2611 = vsel %vm571, %v2462, 0
      %v2614 = vsel %vm571, %v2471, 0
      %v2617 = vsel %vm571, %v2480, 0
      %v2620 = vsel %vm571, %v2489, 0
      %v2623 = vsel %vm571, %v2498, 0
      %v2626 = vsel %vm571, %v2507, 0
      %v2629 = vsel %vm571, %v2516, 0
      %v2632 = vsel %vm571, %v2525, 0
      %v2635 = vsel %vm571, %v2534, 0
      %v2638 = vsel %vm571, %v2543, 0
      %v2641 = vsel %vm571, %v2552, 0
      %v2644 = vsel %vm571, %v2561, 0
      %v2647 = vsel %vm571, %v2570, 0
      %v2650 = vsel %vm571, %v2579, 0
      %v2653 = vsel %vm571, %v2588, 0
      %v2656 = vsel %vm571, %v2597, 0
      %v2659 = vsel %vm571, %v2606, 0
      %v2662 = vsel %vm626, %v2432, 0
      %2664 = vmatpush.bf16.msra.mxu0 0
      %2665 = vmatpush.bf16.msra.mxu0 0
      %2666 = vmatpush.bf16.msra.mxu0 0
      %2667 = vmatpush.bf16.msra.mxu0 0
      %2668 = vmatpush.bf16.msra.mxu0 0
      %2669 = vmatpush.bf16.msra.mxu0 0
      %2670 = vmatpush.bf16.msra.mxu0 0
      %2671 = vmatpush.bf16.msra.mxu0 %v2662
      %2672 = vmatmul.bf16.gmra.mxu0 %v2608
      %v2673 = vpop.f32.mrf.mxu0
      %v2674 = vadd.f32 0.0, %v2673
      %v2675 = vpop.f32.mrf.mxu0
      %v2676 = vadd.f32 0.0, %v2675
      %2677 = vmatmul.bf16.gmra.mxu0 %v2611
      %v2678 = vpop.f32.mrf.mxu0
      %v2679 = vadd.f32 0.0, %v2678
      %v2680 = vpop.f32.mrf.mxu0
      %v2681 = vadd.f32 0.0, %v2680
      %2682 = vmatmul.bf16.gmra.mxu0 %v2614
      %v2683 = vpop.f32.mrf.mxu0
      %v2684 = vadd.f32 0.0, %v2683
      %v2685 = vpop.f32.mrf.mxu0
      %v2686 = vadd.f32 0.0, %v2685
      %2687 = vmatmul.bf16.gmra.mxu0 %v2617
      %v2688 = vpop.f32.mrf.mxu0
      %v2689 = vadd.f32 0.0, %v2688
      %v2690 = vpop.f32.mrf.mxu0
      %v2691 = vadd.f32 0.0, %v2690
      %2692 = vmatmul.bf16.gmra.mxu0 %v2620
      %v2693 = vpop.f32.mrf.mxu0
      %v2694 = vadd.f32 0.0, %v2693
      %v2695 = vpop.f32.mrf.mxu0
      %v2696 = vadd.f32 0.0, %v2695
      %2697 = vmatmul.bf16.gmra.mxu0 %v2623
      %v2698 = vpop.f32.mrf.mxu0
      %v2699 = vadd.f32 0.0, %v2698
      %v2700 = vpop.f32.mrf.mxu0
      %v2701 = vadd.f32 0.0, %v2700
      %2702 = vmatmul.bf16.gmra.mxu0 %v2626
      %v2703 = vpop.f32.mrf.mxu0
      %v2704 = vadd.f32 0.0, %v2703
      %v2705 = vpop.f32.mrf.mxu0
      %v2706 = vadd.f32 0.0, %v2705
      %2707 = vmatmul.bf16.gmra.mxu0 %v2629
      %v2708 = vpop.f32.mrf.mxu0
      %v2709 = vadd.f32 0.0, %v2708
      %v2710 = vpop.f32.mrf.mxu0
      %v2711 = vadd.f32 0.0, %v2710
      %2712 = vmatmul.bf16.gmra.mxu0 %v2632
      %v2713 = vpop.f32.mrf.mxu0
      %v2714 = vadd.f32 0.0, %v2713
      %v2715 = vpop.f32.mrf.mxu0
      %v2716 = vadd.f32 0.0, %v2715
      %2717 = vmatmul.bf16.gmra.mxu0 %v2635
      %v2718 = vpop.f32.mrf.mxu0
      %v2719 = vadd.f32 0.0, %v2718
      %v2720 = vpop.f32.mrf.mxu0
      %v2721 = vadd.f32 0.0, %v2720
      %2722 = vmatmul.bf16.gmra.mxu0 %v2638
      %v2723 = vpop.f32.mrf.mxu0
      %v2724 = vadd.f32 0.0, %v2723
      %v2725 = vpop.f32.mrf.mxu0
      %v2726 = vadd.f32 0.0, %v2725
      %2727 = vmatmul.bf16.gmra.mxu0 %v2641
      %v2728 = vpop.f32.mrf.mxu0
      %v2729 = vadd.f32 0.0, %v2728
      %v2730 = vpop.f32.mrf.mxu0
      %v2731 = vadd.f32 0.0, %v2730
      %2732 = vmatmul.bf16.gmra.mxu0 %v2644
      %v2733 = vpop.f32.mrf.mxu0
      %v2734 = vadd.f32 0.0, %v2733
      %v2735 = vpop.f32.mrf.mxu0
      %v2736 = vadd.f32 0.0, %v2735
      %2737 = vmatmul.bf16.gmra.mxu0 %v2647
      %v2738 = vpop.f32.mrf.mxu0
      %v2739 = vadd.f32 0.0, %v2738
      %v2740 = vpop.f32.mrf.mxu0
      %v2741 = vadd.f32 0.0, %v2740
      %2742 = vmatmul.bf16.gmra.mxu0 %v2650
      %v2743 = vpop.f32.mrf.mxu0
      %v2744 = vadd.f32 0.0, %v2743
      %v2745 = vpop.f32.mrf.mxu0
      %v2746 = vadd.f32 0.0, %v2745
      %2747 = vmatmul.bf16.gmra.mxu0 %v2653
      %v2748 = vpop.f32.mrf.mxu0
      %v2749 = vadd.f32 0.0, %v2748
      %v2750 = vpop.f32.mrf.mxu0
      %v2751 = vadd.f32 0.0, %v2750
      %2752 = vmatmul.bf16.gmra.mxu0 %v2656
      %v2753 = vpop.f32.mrf.mxu0
      %v2754 = vadd.f32 0.0, %v2753
      %v2755 = vpop.f32.mrf.mxu0
      %v2756 = vadd.f32 0.0, %v2755
      %2757 = vmatmul.bf16.gmra.mxu0 %v2659
      %v2758 = vpop.f32.mrf.mxu0
      %v2759 = vadd.f32 0.0, %v2758
      %v2760 = vpop.f32.mrf.mxu0
      %v2761 = vadd.f32 0.0, %v2760
      %2762 = vdwg.mxu0
      %v2763 = vadd.f32 %v2394, %v2674
      %v2764 = vadd.f32 %v2395, %v2676
      %v2765 = vadd.f32 %v2396, %v2679
      %v2766 = vadd.f32 %v2397, %v2681
      %v2767 = vadd.f32 %v2398, %v2684
      %v2768 = vadd.f32 %v2399, %v2686
      %v2769 = vadd.f32 %v2400, %v2689
      %v2770 = vadd.f32 %v2401, %v2691
      %v2771 = vadd.f32 %v2402, %v2694
      %v2772 = vadd.f32 %v2403, %v2696
      %v2773 = vadd.f32 %v2404, %v2699
      %v2774 = vadd.f32 %v2405, %v2701
      %v2775 = vadd.f32 %v2406, %v2704
      %v2776 = vadd.f32 %v2407, %v2706
      %v2777 = vadd.f32 %v2408, %v2709
      %v2778 = vadd.f32 %v2409, %v2711
      %v2779 = vadd.f32 %v2410, %v2714
      %v2780 = vadd.f32 %v2411, %v2716
      %v2781 = vadd.f32 %v2412, %v2719
      %v2782 = vadd.f32 %v2413, %v2721
      %v2783 = vadd.f32 %v2414, %v2724
      %v2784 = vadd.f32 %v2415, %v2726
      %v2785 = vadd.f32 %v2416, %v2729
      %v2786 = vadd.f32 %v2417, %v2731
      %v2787 = vadd.f32 %v2418, %v2734
      %v2788 = vadd.f32 %v2419, %v2736
      %v2789 = vadd.f32 %v2420, %v2739
      %v2790 = vadd.f32 %v2421, %v2741
      %v2791 = vadd.f32 %v2422, %v2744
      %v2792 = vadd.f32 %v2423, %v2746
      %v2793 = vadd.f32 %v2424, %v2749
      %v2794 = vadd.f32 %v2425, %v2751
      %v2795 = vadd.f32 %v2426, %v2754
      %v2796 = vadd.f32 %v2427, %v2756
      %v2797 = vadd.f32 %v2428, %v2759
      %v2798 = vadd.f32 %v2429, %v2761
      %v2799 = vld [vmem:[%s246 + $0x10] sm:$0x8]
      %s2800 = scalar_lea.vmem %s1, 32
      %v2801 = vld [vmem:[%s2800] sm:$0xf]
      %v2803 = vunpack.c.l.b16 %v2799
      %v2804 = vpack.c.b16 %v2146, %v2803
      %vm2805 = vcmask 1044480
      %v2806 = vrot.slane %v2804, 3
      %v2807 = vrot.slane %v2183, 3
      %v2808 = vsel %vm2805, %v2806, %v2807
      %v2809 = vrot.slane %v2184, 3
      %v2810 = vsel %vm2805, %v2807, %v2809
      %v2811 = vrot.slane %v2185, 3
      %v2812 = vsel %vm2805, %v2809, %v2811
      %v2813 = vrot.slane %v2186, 3
      %v2814 = vsel %vm2805, %v2811, %v2813
      %v2815 = vrot.slane %v2187, 3
      %v2816 = vsel %vm2805, %v2813, %v2815
      %v2817 = vrot.slane %v2188, 3
      %v2818 = vsel %vm2805, %v2815, %v2817
      %v2819 = vrot.slane %v2189, 3
      %v2820 = vsel %vm2805, %v2817, %v2819
      %v2821 = vrot.slane %v2190, 3
      %v2822 = vsel %vm2805, %v2819, %v2821
      %v2823 = vrot.slane %v2191, 3
      %v2824 = vsel %vm2805, %v2821, %v2823
      %v2825 = vrot.slane %v2192, 3
      %v2826 = vsel %vm2805, %v2823, %v2825
      %v2827 = vrot.slane %v2193, 3
      %v2828 = vsel %vm2805, %v2825, %v2827
      %v2829 = vrot.slane %v2194, 3
      %v2830 = vsel %vm2805, %v2827, %v2829
      %v2831 = vrot.slane %v2195, 3
      %v2832 = vsel %vm2805, %v2829, %v2831
      %v2833 = vrot.slane %v2196, 3
      %v2834 = vsel %vm2805, %v2831, %v2833
      %v2835 = vrot.slane %v2197, 3
      %v2836 = vsel %vm2805, %v2833, %v2835
      %v2837 = vrot.slane %v2198, 3
      %v2838 = vsel %vm2805, %v2835, %v2837
      %v2839 = vrot.slane %v2199, 3
      %v2840 = vsel %vm2805, %v2837, %v2839
      %v2841 = vrot.slane %v2435, 3
      %v2842 = vsel %vm2805, %v2839, %v2841
      %v2844 = vsel %vm571, %v2808, 0
      %v2847 = vsel %vm571, %v2810, 0
      %v2850 = vsel %vm571, %v2812, 0
      %v2853 = vsel %vm571, %v2814, 0
      %v2856 = vsel %vm571, %v2816, 0
      %v2859 = vsel %vm571, %v2818, 0
      %v2862 = vsel %vm571, %v2820, 0
      %v2865 = vsel %vm571, %v2822, 0
      %v2868 = vsel %vm571, %v2824, 0
      %v2871 = vsel %vm571, %v2826, 0
      %v2874 = vsel %vm571, %v2828, 0
      %v2877 = vsel %vm571, %v2830, 0
      %v2880 = vsel %vm571, %v2832, 0
      %v2883 = vsel %vm571, %v2834, 0
      %v2886 = vsel %vm571, %v2836, 0
      %v2889 = vsel %vm571, %v2838, 0
      %v2892 = vsel %vm571, %v2840, 0
      %v2895 = vsel %vm571, %v2842, 0
      %v2898 = vsel %vm626, %v2801, 0
      %2900 = vmatpush.bf16.msra.mxu0 0
      %2901 = vmatpush.bf16.msra.mxu0 0
      %2902 = vmatpush.bf16.msra.mxu0 0
      %2903 = vmatpush.bf16.msra.mxu0 0
      %2904 = vmatpush.bf16.msra.mxu0 0
      %2905 = vmatpush.bf16.msra.mxu0 0
      %2906 = vmatpush.bf16.msra.mxu0 0
      %2907 = vmatpush.bf16.msra.mxu0 %v2898
      %2908 = vmatmul.bf16.gmra.mxu0 %v2844
      %v2909 = vpop.f32.mrf.mxu0
      %v2910 = vadd.f32 0.0, %v2909
      %v2911 = vpop.f32.mrf.mxu0
      %v2912 = vadd.f32 0.0, %v2911
      %2913 = vmatmul.bf16.gmra.mxu0 %v2847
      %v2914 = vpop.f32.mrf.mxu0
      %v2915 = vadd.f32 0.0, %v2914
      %v2916 = vpop.f32.mrf.mxu0
      %v2917 = vadd.f32 0.0, %v2916
      %2918 = vmatmul.bf16.gmra.mxu0 %v2850
      %v2919 = vpop.f32.mrf.mxu0
      %v2920 = vadd.f32 0.0, %v2919
      %v2921 = vpop.f32.mrf.mxu0
      %v2922 = vadd.f32 0.0, %v2921
      %2923 = vmatmul.bf16.gmra.mxu0 %v2853
      %v2924 = vpop.f32.mrf.mxu0
      %v2925 = vadd.f32 0.0, %v2924
      %v2926 = vpop.f32.mrf.mxu0
      %v2927 = vadd.f32 0.0, %v2926
      %2928 = vmatmul.bf16.gmra.mxu0 %v2856
      %v2929 = vpop.f32.mrf.mxu0
      %v2930 = vadd.f32 0.0, %v2929
      %v2931 = vpop.f32.mrf.mxu0
      %v2932 = vadd.f32 0.0, %v2931
      %2933 = vmatmul.bf16.gmra.mxu0 %v2859
      %v2934 = vpop.f32.mrf.mxu0
      %v2935 = vadd.f32 0.0, %v2934
      %v2936 = vpop.f32.mrf.mxu0
      %v2937 = vadd.f32 0.0, %v2936
      %2938 = vmatmul.bf16.gmra.mxu0 %v2862
      %v2939 = vpop.f32.mrf.mxu0
      %v2940 = vadd.f32 0.0, %v2939
      %v2941 = vpop.f32.mrf.mxu0
      %v2942 = vadd.f32 0.0, %v2941
      %2943 = vmatmul.bf16.gmra.mxu0 %v2865
      %v2944 = vpop.f32.mrf.mxu0
      %v2945 = vadd.f32 0.0, %v2944
      %v2946 = vpop.f32.mrf.mxu0
      %v2947 = vadd.f32 0.0, %v2946
      %2948 = vmatmul.bf16.gmra.mxu0 %v2868
      %v2949 = vpop.f32.mrf.mxu0
      %v2950 = vadd.f32 0.0, %v2949
      %v2951 = vpop.f32.mrf.mxu0
      %v2952 = vadd.f32 0.0, %v2951
      %2953 = vmatmul.bf16.gmra.mxu0 %v2871
      %v2954 = vpop.f32.mrf.mxu0
      %v2955 = vadd.f32 0.0, %v2954
      %v2956 = vpop.f32.mrf.mxu0
      %v2957 = vadd.f32 0.0, %v2956
      %2958 = vmatmul.bf16.gmra.mxu0 %v2874
      %v2959 = vpop.f32.mrf.mxu0
      %v2960 = vadd.f32 0.0, %v2959
      %v2961 = vpop.f32.mrf.mxu0
      %v2962 = vadd.f32 0.0, %v2961
      %2963 = vmatmul.bf16.gmra.mxu0 %v2877
      %v2964 = vpop.f32.mrf.mxu0
      %v2965 = vadd.f32 0.0, %v2964
      %v2966 = vpop.f32.mrf.mxu0
      %v2967 = vadd.f32 0.0, %v2966
      %2968 = vmatmul.bf16.gmra.mxu0 %v2880
      %v2969 = vpop.f32.mrf.mxu0
      %v2970 = vadd.f32 0.0, %v2969
      %v2971 = vpop.f32.mrf.mxu0
      %v2972 = vadd.f32 0.0, %v2971
      %2973 = vmatmul.bf16.gmra.mxu0 %v2883
      %v2974 = vpop.f32.mrf.mxu0
      %v2975 = vadd.f32 0.0, %v2974
      %v2976 = vpop.f32.mrf.mxu0
      %v2977 = vadd.f32 0.0, %v2976
      %2978 = vmatmul.bf16.gmra.mxu0 %v2886
      %v2979 = vpop.f32.mrf.mxu0
      %v2980 = vadd.f32 0.0, %v2979
      %v2981 = vpop.f32.mrf.mxu0
      %v2982 = vadd.f32 0.0, %v2981
      %2983 = vmatmul.bf16.gmra.mxu0 %v2889
      %v2984 = vpop.f32.mrf.mxu0
      %v2985 = vadd.f32 0.0, %v2984
      %v2986 = vpop.f32.mrf.mxu0
      %v2987 = vadd.f32 0.0, %v2986
      %2988 = vmatmul.bf16.gmra.mxu0 %v2892
      %v2989 = vpop.f32.mrf.mxu0
      %v2990 = vadd.f32 0.0, %v2989
      %v2991 = vpop.f32.mrf.mxu0
      %v2992 = vadd.f32 0.0, %v2991
      %2993 = vmatmul.bf16.gmra.mxu0 %v2895
      %v2994 = vpop.f32.mrf.mxu0
      %v2995 = vadd.f32 0.0, %v2994
      %v2996 = vpop.f32.mrf.mxu0
      %v2997 = vadd.f32 0.0, %v2996
      %2998 = vdwg.mxu0
      %v2999 = vadd.f32 %v2763, %v2910
      %v3000 = vadd.f32 %v2764, %v2912
      %v3001 = vadd.f32 %v2765, %v2915
      %v3002 = vadd.f32 %v2766, %v2917
      %v3003 = vadd.f32 %v2767, %v2920
      %v3004 = vadd.f32 %v2768, %v2922
      %v3005 = vadd.f32 %v2769, %v2925
      %v3006 = vadd.f32 %v2770, %v2927
      %v3007 = vadd.f32 %v2771, %v2930
      %v3008 = vadd.f32 %v2772, %v2932
      %v3009 = vadd.f32 %v2773, %v2935
      %v3010 = vadd.f32 %v2774, %v2937
      %v3011 = vadd.f32 %v2775, %v2940
      %v3012 = vadd.f32 %v2776, %v2942
      %v3013 = vadd.f32 %v2777, %v2945
      %v3014 = vadd.f32 %v2778, %v2947
      %v3015 = vadd.f32 %v2779, %v2950
      %v3016 = vadd.f32 %v2780, %v2952
      %v3017 = vadd.f32 %v2781, %v2955
      %v3018 = vadd.f32 %v2782, %v2957
      %v3019 = vadd.f32 %v2783, %v2960
      %v3020 = vadd.f32 %v2784, %v2962
      %v3021 = vadd.f32 %v2785, %v2965
      %v3022 = vadd.f32 %v2786, %v2967
      %v3023 = vadd.f32 %v2787, %v2970
      %v3024 = vadd.f32 %v2788, %v2972
      %v3025 = vadd.f32 %v2789, %v2975
      %v3026 = vadd.f32 %v2790, %v2977
      %v3027 = vadd.f32 %v2791, %v2980
      %v3028 = vadd.f32 %v2792, %v2982
      %v3029 = vadd.f32 %v2793, %v2985
      %v3030 = vadd.f32 %v2794, %v2987
      %v3031 = vadd.f32 %v2795, %v2990
      %v3032 = vadd.f32 %v2796, %v2992
      %v3033 = vadd.f32 %v2797, %v2995
      %v3034 = vadd.f32 %v2798, %v2997
      %v3035 = vld [vmem:[%s2] sm:$0x1]
      %v3037 = vperm.slane %v3035, 0
      %v3039 = vadd.f32 %v2999, %v3037
      %v3040 = vadd.f32 %v3000, %v3037
      %v3041 = vadd.f32 %v3001, %v3037
      %v3042 = vadd.f32 %v3002, %v3037
      %v3043 = vadd.f32 %v3003, %v3037
      %v3044 = vadd.f32 %v3004, %v3037
      %v3045 = vadd.f32 %v3005, %v3037
      %v3046 = vadd.f32 %v3006, %v3037
      %v3047 = vadd.f32 %v3007, %v3037
      %v3048 = vadd.f32 %v3008, %v3037
      %v3049 = vadd.f32 %v3009, %v3037
      %v3050 = vadd.f32 %v3010, %v3037
      %v3051 = vadd.f32 %v3011, %v3037
      %v3052 = vadd.f32 %v3012, %v3037
      %v3053 = vadd.f32 %v3013, %v3037
      %v3054 = vadd.f32 %v3014, %v3037
      %v3055 = vadd.f32 %v3015, %v3037
      %v3056 = vadd.f32 %v3016, %v3037
      %v3057 = vadd.f32 %v3017, %v3037
      %v3058 = vadd.f32 %v3018, %v3037
      %v3059 = vadd.f32 %v3019, %v3037
      %v3060 = vadd.f32 %v3020, %v3037
      %v3061 = vadd.f32 %v3021, %v3037
      %v3062 = vadd.f32 %v3022, %v3037
      %v3063 = vadd.f32 %v3023, %v3037
      %v3064 = vadd.f32 %v3024, %v3037
      %v3065 = vadd.f32 %v3025, %v3037
      %v3066 = vadd.f32 %v3026, %v3037
      %v3067 = vadd.f32 %v3027, %v3037
      %v3068 = vadd.f32 %v3028, %v3037
      %v3069 = vadd.f32 %v3029, %v3037
      %v3070 = vadd.f32 %v3030, %v3037
      %v3071 = vadd.f32 %v3031, %v3037
      %v3072 = vadd.f32 %v3032, %v3037
      %v3073 = vadd.f32 %v3033, %v3037
      %v3074 = vadd.f32 %v3034, %v3037
      %v3075 = vmax.f32 %v3039, 0.0
      %v3076 = vmax.f32 %v3040, 0.0
      %v3077 = vmax.f32 %v3041, 0.0
      %v3078 = vmax.f32 %v3042, 0.0
      %v3079 = vmax.f32 %v3043, 0.0
      %v3080 = vmax.f32 %v3044, 0.0
      %v3081 = vmax.f32 %v3045, 0.0
      %v3082 = vmax.f32 %v3046, 0.0
      %v3083 = vmax.f32 %v3047, 0.0
      %v3084 = vmax.f32 %v3048, 0.0
      %v3085 = vmax.f32 %v3049, 0.0
      %v3086 = vmax.f32 %v3050, 0.0
      %v3087 = vmax.f32 %v3051, 0.0
      %v3088 = vmax.f32 %v3052, 0.0
      %v3089 = vmax.f32 %v3053, 0.0
      %v3090 = vmax.f32 %v3054, 0.0
      %v3091 = vmax.f32 %v3055, 0.0
      %v3092 = vmax.f32 %v3056, 0.0
      %v3093 = vmax.f32 %v3057, 0.0
      %v3094 = vmax.f32 %v3058, 0.0
      %v3095 = vmax.f32 %v3059, 0.0
      %v3096 = vmax.f32 %v3060, 0.0
      %v3097 = vmax.f32 %v3061, 0.0
      %v3098 = vmax.f32 %v3062, 0.0
      %v3099 = vmax.f32 %v3063, 0.0
      %v3100 = vmax.f32 %v3064, 0.0
      %v3101 = vmax.f32 %v3065, 0.0
      %v3102 = vmax.f32 %v3066, 0.0
      %v3103 = vmax.f32 %v3067, 0.0
      %v3104 = vmax.f32 %v3068, 0.0
      %v3105 = vmax.f32 %v3069, 0.0
      %v3106 = vmax.f32 %v3070, 0.0
      %v3107 = vmax.f32 %v3071, 0.0
      %v3108 = vmax.f32 %v3072, 0.0
      %v3109 = vmax.f32 %v3073, 0.0
      %v3110 = vmax.f32 %v3074, 0.0
      %3112 = vset.pattern.permute.xlu0 0
      %3113 = vperm.xlu0 %3112, %v253
      %v3114 = vpop.permute.xlu0 %3113
      %3117 = vset.pattern.permute.xlu0 0
      %3118 = vperm.xlu0 %3117, %v254
      %v3119 = vpop.permute.xlu0 %3118
      %3122 = vset.pattern.permute.xlu0 0
      %3123 = vperm.xlu0 %3122, %v255
      %v3124 = vpop.permute.xlu0 %3123
      %3127 = vset.pattern.permute.xlu0 0
      %3128 = vperm.xlu0 %3127, %v256
      %v3129 = vpop.permute.xlu0 %3128
      %3132 = vset.pattern.permute.xlu0 0
      %3133 = vperm.xlu0 %3132, %v257
      %v3134 = vpop.permute.xlu0 %3133
      %3137 = vset.pattern.permute.xlu0 0
      %3138 = vperm.xlu0 %3137, %v258
      %v3139 = vpop.permute.xlu0 %3138
      %3142 = vset.pattern.permute.xlu0 0
      %3143 = vperm.xlu0 %3142, %v259
      %v3144 = vpop.permute.xlu0 %3143
      %3147 = vset.pattern.permute.xlu0 0
      %3148 = vperm.xlu0 %3147, %v260
      %v3149 = vpop.permute.xlu0 %3148
      %3152 = vset.pattern.permute.xlu0 0
      %3153 = vperm.xlu0 %3152, %v261
      %v3154 = vpop.permute.xlu0 %3153
      %3157 = vset.pattern.permute.xlu0 0
      %3158 = vperm.xlu0 %3157, %v262
      %v3159 = vpop.permute.xlu0 %3158
      %3162 = vset.pattern.permute.xlu0 0
      %3163 = vperm.xlu0 %3162, %v263
      %v3164 = vpop.permute.xlu0 %3163
      %3167 = vset.pattern.permute.xlu0 0
      %3168 = vperm.xlu0 %3167, %v264
      %v3169 = vpop.permute.xlu0 %3168
      %3172 = vset.pattern.permute.xlu0 0
      %3173 = vperm.xlu0 %3172, %v265
      %v3174 = vpop.permute.xlu0 %3173
      %3177 = vset.pattern.permute.xlu0 0
      %3178 = vperm.xlu0 %3177, %v266
      %v3179 = vpop.permute.xlu0 %3178
      %3182 = vset.pattern.permute.xlu0 0
      %3183 = vperm.xlu0 %3182, %v267
      %v3184 = vpop.permute.xlu0 %3183
      %3187 = vset.pattern.permute.xlu0 0
      %3188 = vperm.xlu0 %3187, %v268
      %v3189 = vpop.permute.xlu0 %3188
      %3192 = vset.pattern.permute.xlu0 0
      %3193 = vperm.xlu0 %3192, %v269
      %v3194 = vpop.permute.xlu0 %3193
      %3197 = vset.pattern.permute.xlu0 0
      %3198 = vperm.xlu0 %3197, %v270
      %v3199 = vpop.permute.xlu0 %3198
      %3202 = vset.pattern.permute.xlu0 0
      %3203 = vperm.xlu0 %3202, %v271
      %v3204 = vpop.permute.xlu0 %3203
      %3207 = vset.pattern.permute.xlu0 0
      %3208 = vperm.xlu0 %3207, %v272
      %v3209 = vpop.permute.xlu0 %3208
      %3212 = vset.pattern.permute.xlu0 0
      %3213 = vperm.xlu0 %3212, %v273
      %v3214 = vpop.permute.xlu0 %3213
      %3217 = vset.pattern.permute.xlu0 0
      %3218 = vperm.xlu0 %3217, %v274
      %v3219 = vpop.permute.xlu0 %3218
      %3222 = vset.pattern.permute.xlu0 0
      %3223 = vperm.xlu0 %3222, %v275
      %v3224 = vpop.permute.xlu0 %3223
      %3227 = vset.pattern.permute.xlu0 0
      %3228 = vperm.xlu0 %3227, %v276
      %v3229 = vpop.permute.xlu0 %3228
      %3232 = vset.pattern.permute.xlu0 0
      %3233 = vperm.xlu0 %3232, %v277
      %v3234 = vpop.permute.xlu0 %3233
      %3237 = vset.pattern.permute.xlu0 0
      %3238 = vperm.xlu0 %3237, %v278
      %v3239 = vpop.permute.xlu0 %3238
      %3242 = vset.pattern.permute.xlu0 0
      %3243 = vperm.xlu0 %3242, %v279
      %v3244 = vpop.permute.xlu0 %3243
      %3247 = vset.pattern.permute.xlu0 0
      %3248 = vperm.xlu0 %3247, %v280
      %v3249 = vpop.permute.xlu0 %3248
      %3252 = vset.pattern.permute.xlu0 0
      %3253 = vperm.xlu0 %3252, %v281
      %v3254 = vpop.permute.xlu0 %3253
      %3257 = vset.pattern.permute.xlu0 0
      %3258 = vperm.xlu0 %3257, %v282
      %v3259 = vpop.permute.xlu0 %3258
      %3262 = vset.pattern.permute.xlu0 0
      %3263 = vperm.xlu0 %3262, %v283
      %v3264 = vpop.permute.xlu0 %3263
      %3267 = vset.pattern.permute.xlu0 0
      %3268 = vperm.xlu0 %3267, %v284
      %v3269 = vpop.permute.xlu0 %3268
      %3272 = vset.pattern.permute.xlu0 0
      %3273 = vperm.xlu0 %3272, %v285
      %v3274 = vpop.permute.xlu0 %3273
      %3277 = vset.pattern.permute.xlu0 0
      %3278 = vperm.xlu0 %3277, %v286
      %v3279 = vpop.permute.xlu0 %3278
      %3282 = vset.pattern.permute.xlu0 0
      %3283 = vperm.xlu0 %3282, %v287
      %v3284 = vpop.permute.xlu0 %3283
      %3287 = vset.pattern.permute.xlu0 0
      %3288 = vperm.xlu0 %3287, %v288
      %v3289 = vpop.permute.xlu0 %3288
      %v3291 = vmul.f32 %v3075, %v3114
      %v3292 = vmul.f32 %v3076, %v3119
      %v3293 = vmul.f32 %v3077, %v3124
      %v3294 = vmul.f32 %v3078, %v3129
      %v3295 = vmul.f32 %v3079, %v3134
      %v3296 = vmul.f32 %v3080, %v3139
      %v3297 = vmul.f32 %v3081, %v3144
      %v3298 = vmul.f32 %v3082, %v3149
      %v3299 = vmul.f32 %v3083, %v3154
      %v3300 = vmul.f32 %v3084, %v3159
      %v3301 = vmul.f32 %v3085, %v3164
      %v3302 = vmul.f32 %v3086, %v3169
      %v3303 = vmul.f32 %v3087, %v3174
      %v3304 = vmul.f32 %v3088, %v3179
      %v3305 = vmul.f32 %v3089, %v3184
      %v3306 = vmul.f32 %v3090, %v3189
      %v3307 = vmul.f32 %v3091, %v3194
      %v3308 = vmul.f32 %v3092, %v3199
      %v3309 = vmul.f32 %v3093, %v3204
      %v3310 = vmul.f32 %v3094, %v3209
      %v3311 = vmul.f32 %v3095, %v3214
      %v3312 = vmul.f32 %v3096, %v3219
      %v3313 = vmul.f32 %v3097, %v3224
      %v3314 = vmul.f32 %v3098, %v3229
      %v3315 = vmul.f32 %v3099, %v3234
      %v3316 = vmul.f32 %v3100, %v3239
      %v3317 = vmul.f32 %v3101, %v3244
      %v3318 = vmul.f32 %v3102, %v3249
      %v3319 = vmul.f32 %v3103, %v3254
      %v3320 = vmul.f32 %v3104, %v3259
      %v3321 = vmul.f32 %v3105, %v3264
      %v3322 = vmul.f32 %v3106, %v3269
      %v3323 = vmul.f32 %v3107, %v3274
      %v3324 = vmul.f32 %v3108, %v3279
      %v3325 = vmul.f32 %v3109, %v3284
      %v3326 = vmul.f32 %v3110, %v3289
      %vm3327 = vcmask 60416
      %3328 = vst.msk [vmem:[#allocation2] sm:$0xf] %vm3327, 0
      %3329 = vst.msk [vmem:[#allocation2 + $0x4] sm:$0xf] %vm3327, 0
      %3330 = vst.msk [vmem:[#allocation2 + $0x8] sm:$0xf] %vm3327, 0
      %3331 = vst.msk [vmem:[#allocation2 + $0xc] sm:$0xf] %vm3327, 0
      %3332 = vst.msk [vmem:[#allocation2 + $0x10] sm:$0xf] %vm3327, 0
      %3333 = vst.msk [vmem:[#allocation2 + $0x14] sm:$0xf] %vm3327, 0
      %3334 = vst.msk [vmem:[#allocation2 + $0x18] sm:$0xf] %vm3327, 0
      %3335 = vst.msk [vmem:[#allocation2 + $0x1c] sm:$0xf] %vm3327, 0
      %3336 = vst.msk [vmem:[#allocation2 + $0x20] sm:$0xf] %vm3327, 0
      %3337 = vst.msk [vmem:[#allocation2 + $0x24] sm:$0xf] %vm3327, 0
      %3338 = vst.msk [vmem:[#allocation2 + $0x28] sm:$0xf] %vm3327, 0
      %3339 = vst.msk [vmem:[#allocation2 + $0x2c] sm:$0xf] %vm3327, 0
      %3340 = vst.msk [vmem:[#allocation2 + $0x30] sm:$0xf] %vm3327, 0
      %3341 = vst.msk [vmem:[#allocation2 + $0x34] sm:$0xf] %vm3327, 0
      %3342 = vst.msk [vmem:[#allocation2 + $0x38] sm:$0xf] %vm3327, 0
      %3343 = vst.msk [vmem:[#allocation2 + $0x3c] sm:$0xf] %vm3327, 0
      %3344 = vst.msk [vmem:[#allocation2 + $0x40] sm:$0xf] %vm3327, 0
      %3345 = vst.msk [vmem:[#allocation2 + $0x44] sm:$0xf] %vm3327, 0
      %3346 = vst.msk [vmem:[#allocation2 + $0x48] sm:$0xf] %vm3327, 0
      %3347 = vst.msk [vmem:[#allocation2 + $0x4c] sm:$0xf] %vm3327, 0
      %3348 = vst.msk [vmem:[#allocation2 + $0x50] sm:$0xf] %vm3327, 0
      %3349 = vst.msk [vmem:[#allocation2 + $0x54] sm:$0xf] %vm3327, 0
      %3350 = vst.msk [vmem:[#allocation2 + $0x58] sm:$0xf] %vm3327, 0
      %3351 = vst.msk [vmem:[#allocation2 + $0x5c] sm:$0xf] %vm3327, 0
      %3352 = vst.msk [vmem:[#allocation2 + $0x60] sm:$0xf] %vm3327, 0
      %3353 = vst.msk [vmem:[#allocation2 + $0x64] sm:$0xf] %vm3327, 0
      %3354 = vst.msk [vmem:[#allocation2 + $0x68] sm:$0xf] %vm3327, 0
      %3355 = vst.msk [vmem:[#allocation2 + $0x6c] sm:$0xf] %vm3327, 0
      %3356 = vst.msk [vmem:[#allocation2 + $0x70] sm:$0xf] %vm3327, 0
      %3357 = vst.msk [vmem:[#allocation2 + $0x74] sm:$0xf] %vm3327, 0
      %3358 = vst.msk [vmem:[#allocation2 + $0x78] sm:$0xf] %vm3327, 0
      %3359 = vst.msk [vmem:[#allocation2 + $0x7c] sm:$0xf] %vm3327, 0
      %3360 = vst.msk [vmem:[#allocation2 + $0x80] sm:$0xf] %vm3327, 0
      %3361 = vst.msk [vmem:[#allocation2 + $0x84] sm:$0xf] %vm3327, 0
      %3362 = vst.msk [vmem:[#allocation2 + $0x88] sm:$0xf] %vm3327, 0
      %3363 = vst.msk [vmem:[#allocation2 + $0x8c] sm:$0xf] %vm3327, 0
      %3364 = vst.msk [vmem:[#allocation2 + $0x90] sm:$0xf] %vm3327, 0
      %3365 = vst.msk [vmem:[#allocation2 + $0x94] sm:$0xf] %vm3327, 0
      %3366 = vst.msk [vmem:[#allocation2 + $0x98] sm:$0xf] %vm3327, 0
      %3367 = vst.msk [vmem:[#allocation2 + $0x9c] sm:$0xf] %vm3327, 0
      %3368 = vst.msk [vmem:[#allocation2 + $0xa0] sm:$0xf] %vm3327, 0
      %3369 = vst.msk [vmem:[#allocation2 + $0xa4] sm:$0xf] %vm3327, 0
      %vm3370 = vcmask 59392
      %3371 = vst.msk [vmem:[#allocation2 + $0xa8] sm:$0x7] %vm3370, 0
      %v3372 = vpack.c.bf16 %v3291, %v3291
      %v3373 = vpack.c.bf16 %v3292, %v3292
      %v3374 = vpack.c.bf16 %v3293, %v3293
      %v3375 = vpack.c.bf16 %v3294, %v3294
      %v3376 = vpack.c.bf16 %v3295, %v3295
      %v3377 = vpack.c.bf16 %v3296, %v3296
      %v3378 = vpack.c.bf16 %v3297, %v3297
      %v3379 = vpack.c.bf16 %v3298, %v3298
      %v3380 = vpack.c.bf16 %v3299, %v3299
      %v3381 = vpack.c.bf16 %v3300, %v3300
      %v3382 = vpack.c.bf16 %v3301, %v3301
      %v3383 = vpack.c.bf16 %v3302, %v3302
      %v3384 = vpack.c.bf16 %v3303, %v3303
      %v3385 = vpack.c.bf16 %v3304, %v3304
      %v3386 = vpack.c.bf16 %v3305, %v3305
      %v3387 = vpack.c.bf16 %v3306, %v3306
      %v3388 = vpack.c.bf16 %v3307, %v3307
      %v3389 = vpack.c.bf16 %v3308, %v3308
      %v3390 = vpack.c.bf16 %v3309, %v3309
      %v3391 = vpack.c.bf16 %v3310, %v3310
      %v3392 = vpack.c.bf16 %v3311, %v3311
      %v3393 = vpack.c.bf16 %v3312, %v3312
      %v3394 = vpack.c.bf16 %v3313, %v3313
      %v3395 = vpack.c.bf16 %v3314, %v3314
      %v3396 = vpack.c.bf16 %v3315, %v3315
      %v3397 = vpack.c.bf16 %v3316, %v3316
      %v3398 = vpack.c.bf16 %v3317, %v3317
      %v3399 = vpack.c.bf16 %v3318, %v3318
      %v3400 = vpack.c.bf16 %v3319, %v3319
      %v3401 = vpack.c.bf16 %v3320, %v3320
      %v3402 = vpack.c.bf16 %v3321, %v3321
      %v3403 = vpack.c.bf16 %v3322, %v3322
      %v3404 = vpack.c.bf16 %v3323, %v3323
      %v3405 = vpack.c.bf16 %v3324, %v3324
      %v3406 = vpack.c.bf16 %v3325, %v3325
      %v3407 = vpack.c.bf16 %v3326, %v3326
      %vm3408 = vsmask.f32 1280
      %vm3409 = vsmask.f32 5392
      %vm3410 = vmor %vm3408, %vm3409
      %v3412 = vshrl.u32 %v3372, 16
      %v3414 = vrot.slane %v3412, 6
      %v3415 = vshll.u32 %v3372, 16
      %v3417 = vrot.slane %v3415, 7
      %v3418 = vor.u32 %v3414, %v3417
      %v3419 = vrot.slane %v3418, 4
      %v3421 = vshrl.u32 %v3373, 16
      %v3423 = vrot.slane %v3421, 6
      %v3424 = vshll.u32 %v3373, 16
      %v3426 = vrot.slane %v3424, 7
      %v3427 = vor.u32 %v3423, %v3426
      %v3428 = vsel %vm3410, %v3419, %v3427
      %v3429 = vrot.slane %v3427, 4
      %v3431 = vshrl.u32 %v3374, 16
      %v3433 = vrot.slane %v3431, 6
      %v3434 = vshll.u32 %v3374, 16
      %v3436 = vrot.slane %v3434, 7
      %v3437 = vor.u32 %v3433, %v3436
      %v3438 = vsel %vm3410, %v3429, %v3437
      %v3439 = vrot.slane %v3437, 4
      %v3441 = vshrl.u32 %v3375, 16
      %v3443 = vrot.slane %v3441, 6
      %v3444 = vshll.u32 %v3375, 16
      %v3446 = vrot.slane %v3444, 7
      %v3447 = vor.u32 %v3443, %v3446
      %v3448 = vsel %vm3410, %v3439, %v3447
      %v3449 = vrot.slane %v3447, 4
      %v3451 = vshrl.u32 %v3376, 16
      %v3453 = vrot.slane %v3451, 6
      %v3454 = vshll.u32 %v3376, 16
      %v3456 = vrot.slane %v3454, 7
      %v3457 = vor.u32 %v3453, %v3456
      %v3458 = vsel %vm3410, %v3449, %v3457
      %v3459 = vrot.slane %v3457, 4
      %v3461 = vshrl.u32 %v3377, 16
      %v3463 = vrot.slane %v3461, 6
      %v3464 = vshll.u32 %v3377, 16
      %v3466 = vrot.slane %v3464, 7
      %v3467 = vor.u32 %v3463, %v3466
      %v3468 = vsel %vm3410, %v3459, %v3467
      %v3469 = vrot.slane %v3467, 4
      %v3471 = vshrl.u32 %v3378, 16
      %v3473 = vrot.slane %v3471, 6
      %v3474 = vshll.u32 %v3378, 16
      %v3476 = vrot.slane %v3474, 7
      %v3477 = vor.u32 %v3473, %v3476
      %v3478 = vsel %vm3410, %v3469, %v3477
      %v3479 = vrot.slane %v3477, 4
      %v3481 = vshrl.u32 %v3379, 16
      %v3483 = vrot.slane %v3481, 6
      %v3484 = vshll.u32 %v3379, 16
      %v3486 = vrot.slane %v3484, 7
      %v3487 = vor.u32 %v3483, %v3486
      %v3488 = vsel %vm3410, %v3479, %v3487
      %v3489 = vrot.slane %v3487, 4
      %v3491 = vshrl.u32 %v3380, 16
      %v3493 = vrot.slane %v3491, 6
      %v3494 = vshll.u32 %v3380, 16
      %v3496 = vrot.slane %v3494, 7
      %v3497 = vor.u32 %v3493, %v3496
      %v3498 = vsel %vm3410, %v3489, %v3497
      %v3499 = vrot.slane %v3497, 4
      %v3501 = vshrl.u32 %v3381, 16
      %v3503 = vrot.slane %v3501, 6
      %v3504 = vshll.u32 %v3381, 16
      %v3506 = vrot.slane %v3504, 7
      %v3507 = vor.u32 %v3503, %v3506
      %v3508 = vsel %vm3410, %v3499, %v3507
      %v3509 = vrot.slane %v3507, 4
      %v3511 = vshrl.u32 %v3382, 16
      %v3513 = vrot.slane %v3511, 6
      %v3514 = vshll.u32 %v3382, 16
      %v3516 = vrot.slane %v3514, 7
      %v3517 = vor.u32 %v3513, %v3516
      %v3518 = vsel %vm3410, %v3509, %v3517
      %v3519 = vrot.slane %v3517, 4
      %v3521 = vshrl.u32 %v3383, 16
      %v3523 = vrot.slane %v3521, 6
      %v3524 = vshll.u32 %v3383, 16
      %v3526 = vrot.slane %v3524, 7
      %v3527 = vor.u32 %v3523, %v3526
      %v3528 = vsel %vm3410, %v3519, %v3527
      %v3529 = vrot.slane %v3527, 4
      %v3531 = vshrl.u32 %v3384, 16
      %v3533 = vrot.slane %v3531, 6
      %v3534 = vshll.u32 %v3384, 16
      %v3536 = vrot.slane %v3534, 7
      %v3537 = vor.u32 %v3533, %v3536
      %v3538 = vsel %vm3410, %v3529, %v3537
      %v3539 = vrot.slane %v3537, 4
      %v3541 = vshrl.u32 %v3385, 16
      %v3543 = vrot.slane %v3541, 6
      %v3544 = vshll.u32 %v3385, 16
      %v3546 = vrot.slane %v3544, 7
      %v3547 = vor.u32 %v3543, %v3546
      %v3548 = vsel %vm3410, %v3539, %v3547
      %v3549 = vrot.slane %v3547, 4
      %v3551 = vshrl.u32 %v3386, 16
      %v3553 = vrot.slane %v3551, 6
      %v3554 = vshll.u32 %v3386, 16
      %v3556 = vrot.slane %v3554, 7
      %v3557 = vor.u32 %v3553, %v3556
      %v3558 = vsel %vm3410, %v3549, %v3557
      %v3559 = vrot.slane %v3557, 4
      %v3561 = vshrl.u32 %v3387, 16
      %v3563 = vrot.slane %v3561, 6
      %v3564 = vshll.u32 %v3387, 16
      %v3566 = vrot.slane %v3564, 7
      %v3567 = vor.u32 %v3563, %v3566
      %v3568 = vsel %vm3410, %v3559, %v3567
      %v3569 = vrot.slane %v3567, 4
      %v3571 = vshrl.u32 %v3388, 16
      %v3573 = vrot.slane %v3571, 6
      %v3574 = vshll.u32 %v3388, 16
      %v3576 = vrot.slane %v3574, 7
      %v3577 = vor.u32 %v3573, %v3576
      %v3578 = vsel %vm3410, %v3569, %v3577
      %v3579 = vrot.slane %v3577, 4
      %v3581 = vshrl.u32 %v3389, 16
      %v3583 = vrot.slane %v3581, 6
      %v3584 = vshll.u32 %v3389, 16
      %v3586 = vrot.slane %v3584, 7
      %v3587 = vor.u32 %v3583, %v3586
      %v3588 = vsel %vm3410, %v3579, %v3587
      %v3589 = vrot.slane %v3587, 4
      %v3591 = vshrl.u32 %v3390, 16
      %v3593 = vrot.slane %v3591, 6
      %v3594 = vshll.u32 %v3390, 16
      %v3596 = vrot.slane %v3594, 7
      %v3597 = vor.u32 %v3593, %v3596
      %v3598 = vsel %vm3410, %v3589, %v3597
      %v3599 = vrot.slane %v3597, 4
      %v3601 = vshrl.u32 %v3391, 16
      %v3603 = vrot.slane %v3601, 6
      %v3604 = vshll.u32 %v3391, 16
      %v3606 = vrot.slane %v3604, 7
      %v3607 = vor.u32 %v3603, %v3606
      %v3608 = vsel %vm3410, %v3599, %v3607
      %v3609 = vrot.slane %v3607, 4
      %v3611 = vshrl.u32 %v3392, 16
      %v3613 = vrot.slane %v3611, 6
      %v3614 = vshll.u32 %v3392, 16
      %v3616 = vrot.slane %v3614, 7
      %v3617 = vor.u32 %v3613, %v3616
      %v3618 = vsel %vm3410, %v3609, %v3617
      %v3619 = vrot.slane %v3617, 4
      %v3621 = vshrl.u32 %v3393, 16
      %v3623 = vrot.slane %v3621, 6
      %v3624 = vshll.u32 %v3393, 16
      %v3626 = vrot.slane %v3624, 7
      %v3627 = vor.u32 %v3623, %v3626
      %v3628 = vsel %vm3410, %v3619, %v3627
      %v3629 = vrot.slane %v3627, 4
      %v3631 = vshrl.u32 %v3394, 16
      %v3633 = vrot.slane %v3631, 6
      %v3634 = vshll.u32 %v3394, 16
      %v3636 = vrot.slane %v3634, 7
      %v3637 = vor.u32 %v3633, %v3636
      %v3638 = vsel %vm3410, %v3629, %v3637
      %v3639 = vrot.slane %v3637, 4
      %v3641 = vshrl.u32 %v3395, 16
      %v3643 = vrot.slane %v3641, 6
      %v3644 = vshll.u32 %v3395, 16
      %v3646 = vrot.slane %v3644, 7
      %v3647 = vor.u32 %v3643, %v3646
      %v3648 = vsel %vm3410, %v3639, %v3647
      %v3649 = vrot.slane %v3647, 4
      %v3651 = vshrl.u32 %v3396, 16
      %v3653 = vrot.slane %v3651, 6
      %v3654 = vshll.u32 %v3396, 16
      %v3656 = vrot.slane %v3654, 7
      %v3657 = vor.u32 %v3653, %v3656
      %v3658 = vsel %vm3410, %v3649, %v3657
      %v3659 = vrot.slane %v3657, 4
      %v3661 = vshrl.u32 %v3397, 16
      %v3663 = vrot.slane %v3661, 6
      %v3664 = vshll.u32 %v3397, 16
      %v3666 = vrot.slane %v3664, 7
      %v3667 = vor.u32 %v3663, %v3666
      %v3668 = vsel %vm3410, %v3659, %v3667
      %v3669 = vrot.slane %v3667, 4
      %v3671 = vshrl.u32 %v3398, 16
      %v3673 = vrot.slane %v3671, 6
      %v3674 = vshll.u32 %v3398, 16
      %v3676 = vrot.slane %v3674, 7
      %v3677 = vor.u32 %v3673, %v3676
      %v3678 = vsel %vm3410, %v3669, %v3677
      %v3679 = vrot.slane %v3677, 4
      %v3681 = vshrl.u32 %v3399, 16
      %v3683 = vrot.slane %v3681, 6
      %v3684 = vshll.u32 %v3399, 16
      %v3686 = vrot.slane %v3684, 7
      %v3687 = vor.u32 %v3683, %v3686
      %v3688 = vsel %vm3410, %v3679, %v3687
      %v3689 = vrot.slane %v3687, 4
      %v3691 = vshrl.u32 %v3400, 16
      %v3693 = vrot.slane %v3691, 6
      %v3694 = vshll.u32 %v3400, 16
      %v3696 = vrot.slane %v3694, 7
      %v3697 = vor.u32 %v3693, %v3696
      %v3698 = vsel %vm3410, %v3689, %v3697
      %v3699 = vrot.slane %v3697, 4
      %v3701 = vshrl.u32 %v3401, 16
      %v3703 = vrot.slane %v3701, 6
      %v3704 = vshll.u32 %v3401, 16
      %v3706 = vrot.slane %v3704, 7
      %v3707 = vor.u32 %v3703, %v3706
      %v3708 = vsel %vm3410, %v3699, %v3707
      %v3709 = vrot.slane %v3707, 4
      %v3711 = vshrl.u32 %v3402, 16
      %v3713 = vrot.slane %v3711, 6
      %v3714 = vshll.u32 %v3402, 16
      %v3716 = vrot.slane %v3714, 7
      %v3717 = vor.u32 %v3713, %v3716
      %v3718 = vsel %vm3410, %v3709, %v3717
      %v3719 = vrot.slane %v3717, 4
      %v3721 = vshrl.u32 %v3403, 16
      %v3723 = vrot.slane %v3721, 6
      %v3724 = vshll.u32 %v3403, 16
      %v3726 = vrot.slane %v3724, 7
      %v3727 = vor.u32 %v3723, %v3726
      %v3728 = vsel %vm3410, %v3719, %v3727
      %v3729 = vrot.slane %v3727, 4
      %v3731 = vshrl.u32 %v3404, 16
      %v3733 = vrot.slane %v3731, 6
      %v3734 = vshll.u32 %v3404, 16
      %v3736 = vrot.slane %v3734, 7
      %v3737 = vor.u32 %v3733, %v3736
      %v3738 = vsel %vm3410, %v3729, %v3737
      %v3739 = vrot.slane %v3737, 4
      %v3741 = vshrl.u32 %v3405, 16
      %v3743 = vrot.slane %v3741, 6
      %v3744 = vshll.u32 %v3405, 16
      %v3746 = vrot.slane %v3744, 7
      %v3747 = vor.u32 %v3743, %v3746
      %v3748 = vsel %vm3410, %v3739, %v3747
      %v3749 = vrot.slane %v3747, 4
      %v3751 = vshrl.u32 %v3406, 16
      %v3753 = vrot.slane %v3751, 6
      %v3754 = vshll.u32 %v3406, 16
      %v3756 = vrot.slane %v3754, 7
      %v3757 = vor.u32 %v3753, %v3756
      %v3758 = vsel %vm3410, %v3749, %v3757
      %v3759 = vrot.slane %v3757, 4
      %v3761 = vshrl.u32 %v3407, 16
      %v3763 = vrot.slane %v3761, 6
      %v3764 = vshll.u32 %v3407, 16
      %v3766 = vrot.slane %v3764, 7
      %v3767 = vor.u32 %v3763, %v3766
      %v3768 = vsel %vm3410, %v3759, %v3767
      %v3769 = vrot.slane %v3767, 4
      %vm3807 = vcmask 60417
      %vm3808 = vsmask.f32 7942
      %vm3809 = vmand %vm3807, %vm3808
      %v3810 = vld [vmem:[#allocation2 + $0x8] sm:$0xe]
      %v3811 = vsel %vm3809, %v3418, %v3810
      %3812 = vst [vmem:[#allocation2 + $0x8] sm:$0xe] %v3811
      %3813 = vst.msk [vmem:[#allocation2 + $0xc] sm:$0xf] %vm3327, %v3428
      %3814 = vst.msk [vmem:[#allocation2 + $0x10] sm:$0xf] %vm3327, %v3438
      %3815 = vst.msk [vmem:[#allocation2 + $0x14] sm:$0xf] %vm3327, %v3448
      %3816 = vst.msk [vmem:[#allocation2 + $0x18] sm:$0xf] %vm3327, %v3458
      %3817 = vst.msk [vmem:[#allocation2 + $0x1c] sm:$0xf] %vm3327, %v3468
      %3818 = vst.msk [vmem:[#allocation2 + $0x20] sm:$0xf] %vm3327, %v3478
      %3819 = vst.msk [vmem:[#allocation2 + $0x24] sm:$0xf] %vm3327, %v3488
      %3820 = vst.msk [vmem:[#allocation2 + $0x28] sm:$0xf] %vm3327, %v3498
      %3821 = vst.msk [vmem:[#allocation2 + $0x2c] sm:$0xf] %vm3327, %v3508
      %3822 = vst.msk [vmem:[#allocation2 + $0x30] sm:$0xf] %vm3327, %v3518
      %3823 = vst.msk [vmem:[#allocation2 + $0x34] sm:$0xf] %vm3327, %v3528
      %3824 = vst.msk [vmem:[#allocation2 + $0x38] sm:$0xf] %vm3327, %v3538
      %3825 = vst.msk [vmem:[#allocation2 + $0x3c] sm:$0xf] %vm3327, %v3548
      %3826 = vst.msk [vmem:[#allocation2 + $0x40] sm:$0xf] %vm3327, %v3558
      %3827 = vst.msk [vmem:[#allocation2 + $0x44] sm:$0xf] %vm3327, %v3568
      %3828 = vst.msk [vmem:[#allocation2 + $0x48] sm:$0xf] %vm3327, %v3578
      %3829 = vst.msk [vmem:[#allocation2 + $0x4c] sm:$0xf] %vm3327, %v3588
      %3830 = vst.msk [vmem:[#allocation2 + $0x50] sm:$0xf] %vm3327, %v3598
      %3831 = vst.msk [vmem:[#allocation2 + $0x54] sm:$0xf] %vm3327, %v3608
      %3832 = vst.msk [vmem:[#allocation2 + $0x58] sm:$0xf] %vm3327, %v3618
      %3833 = vst.msk [vmem:[#allocation2 + $0x5c] sm:$0xf] %vm3327, %v3628
      %3834 = vst.msk [vmem:[#allocation2 + $0x60] sm:$0xf] %vm3327, %v3638
      %3835 = vst.msk [vmem:[#allocation2 + $0x64] sm:$0xf] %vm3327, %v3648
      %3836 = vst.msk [vmem:[#allocation2 + $0x68] sm:$0xf] %vm3327, %v3658
      %3837 = vst.msk [vmem:[#allocation2 + $0x6c] sm:$0xf] %vm3327, %v3668
      %3838 = vst.msk [vmem:[#allocation2 + $0x70] sm:$0xf] %vm3327, %v3678
      %3839 = vst.msk [vmem:[#allocation2 + $0x74] sm:$0xf] %vm3327, %v3688
      %3840 = vst.msk [vmem:[#allocation2 + $0x78] sm:$0xf] %vm3327, %v3698
      %3841 = vst.msk [vmem:[#allocation2 + $0x7c] sm:$0xf] %vm3327, %v3708
      %3842 = vst.msk [vmem:[#allocation2 + $0x80] sm:$0xf] %vm3327, %v3718
      %3843 = vst.msk [vmem:[#allocation2 + $0x84] sm:$0xf] %vm3327, %v3728
      %3844 = vst.msk [vmem:[#allocation2 + $0x88] sm:$0xf] %vm3327, %v3738
      %3845 = vst.msk [vmem:[#allocation2 + $0x8c] sm:$0xf] %vm3327, %v3748
      %3846 = vst.msk [vmem:[#allocation2 + $0x90] sm:$0xf] %vm3327, %v3758
      %3847 = vst.msk [vmem:[#allocation2 + $0x94] sm:$0xf] %vm3327, %v3768
      %vm3848 = vcmask 58368
      %vm3849 = vmand %vm3848, %vm3408
      %v3850 = vld [vmem:[#allocation2 + $0x98] sm:$0x3]
      %v3851 = vsel %vm3849, %v3769, %v3850
      %3852 = vst [vmem:[#allocation2 + $0x98] sm:$0x3] %v3851
      %v3853 = vld [vmem:[#allocation2] sm:$0xf]
      %v3854 = vld [vmem:[#allocation2 + $0x4] sm:$0xf]
      %v3855 = vld [vmem:[#allocation2 + $0x8] sm:$0xf]
      %v3856 = vld [vmem:[#allocation2 + $0xc] sm:$0xf]
      %v3857 = vld [vmem:[#allocation2 + $0x10] sm:$0xf]
      %v3858 = vld [vmem:[#allocation2 + $0x14] sm:$0xf]
      %v3859 = vld [vmem:[#allocation2 + $0x18] sm:$0xf]
      %v3860 = vld [vmem:[#allocation2 + $0x1c] sm:$0xf]
      %v3861 = vld [vmem:[#allocation2 + $0x20] sm:$0xf]
      %v3862 = vld [vmem:[#allocation2 + $0x24] sm:$0xf]
      %v3863 = vld [vmem:[#allocation2 + $0x28] sm:$0xf]
      %v3864 = vld [vmem:[#allocation2 + $0x2c] sm:$0xf]
      %v3865 = vld [vmem:[#allocation2 + $0x30] sm:$0xf]
      %v3866 = vld [vmem:[#allocation2 + $0x34] sm:$0xf]
      %v3867 = vld [vmem:[#allocation2 + $0x38] sm:$0xf]
      %v3868 = vld [vmem:[#allocation2 + $0x3c] sm:$0xf]
      %v3869 = vld [vmem:[#allocation2 + $0x40] sm:$0xf]
      %v3870 = vld [vmem:[#allocation2 + $0x44] sm:$0xf]
      %v3871 = vld [vmem:[#allocation2 + $0x48] sm:$0xf]
      %v3872 = vld [vmem:[#allocation2 + $0x4c] sm:$0xf]
      %v3873 = vld [vmem:[#allocation2 + $0x50] sm:$0xf]
      %v3874 = vld [vmem:[#allocation2 + $0x54] sm:$0xf]
      %v3875 = vld [vmem:[#allocation2 + $0x58] sm:$0xf]
      %v3876 = vld [vmem:[#allocation2 + $0x5c] sm:$0xf]
      %v3877 = vld [vmem:[#allocation2 + $0x60] sm:$0xf]
      %v3878 = vld [vmem:[#allocation2 + $0x64] sm:$0xf]
      %v3879 = vld [vmem:[#allocation2 + $0x68] sm:$0xf]
      %v3880 = vld [vmem:[#allocation2 + $0x6c] sm:$0xf]
      %v3881 = vld [vmem:[#allocation2 + $0x70] sm:$0xf]
      %v3882 = vld [vmem:[#allocation2 + $0x74] sm:$0xf]
      %v3883 = vld [vmem:[#allocation2 + $0x78] sm:$0xf]
      %v3884 = vld [vmem:[#allocation2 + $0x7c] sm:$0xf]
      %v3885 = vld [vmem:[#allocation2 + $0x80] sm:$0xf]
      %v3886 = vld [vmem:[#allocation2 + $0x84] sm:$0xf]
      %v3887 = vld [vmem:[#allocation2 + $0x88] sm:$0xf]
      %v3888 = vld [vmem:[#allocation2 + $0x8c] sm:$0xf]
      %v3889 = vld [vmem:[%s3] sm:$0xf]
      %v3890 = vld [vmem:[#allocation2 + $0x90] sm:$0x1]
      %s3891 = scalar_lea.vmem %s3, 4
      %v3892 = vld [vmem:[%s3891] sm:$0xf]
      %v3930 = vunpack.c.l.b16 %v3853
      %v3931 = vunpack.c.l.b16 %v3854
      %v3932 = vunpack.c.l.b16 %v3855
      %v3933 = vunpack.c.l.b16 %v3856
      %v3934 = vunpack.c.l.b16 %v3857
      %v3935 = vunpack.c.l.b16 %v3858
      %v3936 = vunpack.c.l.b16 %v3859
      %v3937 = vunpack.c.l.b16 %v3860
      %v3938 = vunpack.c.l.b16 %v3861
      %v3939 = vunpack.c.l.b16 %v3862
      %v3940 = vunpack.c.l.b16 %v3863
      %v3941 = vunpack.c.l.b16 %v3864
      %v3942 = vunpack.c.l.b16 %v3865
      %v3943 = vunpack.c.l.b16 %v3866
      %v3944 = vunpack.c.l.b16 %v3867
      %v3945 = vunpack.c.l.b16 %v3868
      %v3946 = vunpack.c.l.b16 %v3869
      %v3947 = vunpack.c.l.b16 %v3870
      %v3948 = vunpack.c.l.b16 %v3871
      %v3949 = vunpack.c.l.b16 %v3872
      %v3950 = vunpack.c.l.b16 %v3873
      %v3951 = vunpack.c.l.b16 %v3874
      %v3952 = vunpack.c.l.b16 %v3875
      %v3953 = vunpack.c.l.b16 %v3876
      %v3954 = vunpack.c.l.b16 %v3877
      %v3955 = vunpack.c.l.b16 %v3878
      %v3956 = vunpack.c.l.b16 %v3879
      %v3957 = vunpack.c.l.b16 %v3880
      %v3958 = vunpack.c.l.b16 %v3881
      %v3959 = vunpack.c.l.b16 %v3882
      %v3960 = vunpack.c.l.b16 %v3883
      %v3961 = vunpack.c.l.b16 %v3884
      %v3962 = vunpack.c.l.b16 %v3885
      %v3963 = vunpack.c.l.b16 %v3886
      %v3964 = vunpack.c.l.b16 %v3887
      %v3965 = vunpack.c.l.b16 %v3888
      %v3966 = vunpack.c.l.b16 %v3890
      %v3967 = vpack.c.b16 %v3931, %v3930
      %v3968 = vpack.c.b16 %v3933, %v3932
      %v3969 = vpack.c.b16 %v3935, %v3934
      %v3970 = vpack.c.b16 %v3937, %v3936
      %v3971 = vpack.c.b16 %v3939, %v3938
      %v3972 = vpack.c.b16 %v3941, %v3940
      %v3973 = vpack.c.b16 %v3943, %v3942
      %v3974 = vpack.c.b16 %v3945, %v3944
      %v3975 = vpack.c.b16 %v3947, %v3946
      %v3976 = vpack.c.b16 %v3949, %v3948
      %v3977 = vpack.c.b16 %v3951, %v3950
      %v3978 = vpack.c.b16 %v3953, %v3952
      %v3979 = vpack.c.b16 %v3955, %v3954
      %v3980 = vpack.c.b16 %v3957, %v3956
      %v3981 = vpack.c.b16 %v3959, %v3958
      %v3982 = vpack.c.b16 %v3961, %v3960
      %v3983 = vpack.c.b16 %v3963, %v3962
      %v3984 = vpack.c.b16 %v3965, %v3964
      %v3985 = vpack.c.b16 %v3966, %v3966
      %v3987 = vshrl.u32 %v3967, 16
      %v3989 = vshll.u32 %v3967, 16
      %v3991 = vrot.slane %v3989, 1
      %v3992 = vor.u32 %v3987, %v3991
      %v3994 = vshll.u32 %v3968, 16
      %v3996 = vrot.slane %v3994, 1
      %v3997 = vsel %vm422, %v3992, %v3996
      %v3998 = vshrl.u32 %v3968, 16
      %v4000 = vor.u32 %v3998, %v3996
      %v4002 = vshll.u32 %v3969, 16
      %v4004 = vrot.slane %v4002, 1
      %v4005 = vsel %vm422, %v4000, %v4004
      %v4006 = vshrl.u32 %v3969, 16
      %v4008 = vor.u32 %v4006, %v4004
      %v4010 = vshll.u32 %v3970, 16
      %v4012 = vrot.slane %v4010, 1
      %v4013 = vsel %vm422, %v4008, %v4012
      %v4014 = vshrl.u32 %v3970, 16
      %v4016 = vor.u32 %v4014, %v4012
      %v4018 = vshll.u32 %v3971, 16
      %v4020 = vrot.slane %v4018, 1
      %v4021 = vsel %vm422, %v4016, %v4020
      %v4022 = vshrl.u32 %v3971, 16
      %v4024 = vor.u32 %v4022, %v4020
      %v4026 = vshll.u32 %v3972, 16
      %v4028 = vrot.slane %v4026, 1
      %v4029 = vsel %vm422, %v4024, %v4028
      %v4030 = vshrl.u32 %v3972, 16
      %v4032 = vor.u32 %v4030, %v4028
      %v4034 = vshll.u32 %v3973, 16
      %v4036 = vrot.slane %v4034, 1
      %v4037 = vsel %vm422, %v4032, %v4036
      %v4038 = vshrl.u32 %v3973, 16
      %v4040 = vor.u32 %v4038, %v4036
      %v4042 = vshll.u32 %v3974, 16
      %v4044 = vrot.slane %v4042, 1
      %v4045 = vsel %vm422, %v4040, %v4044
      %v4046 = vshrl.u32 %v3974, 16
      %v4048 = vor.u32 %v4046, %v4044
      %v4050 = vshll.u32 %v3975, 16
      %v4052 = vrot.slane %v4050, 1
      %v4053 = vsel %vm422, %v4048, %v4052
      %v4054 = vshrl.u32 %v3975, 16
      %v4056 = vor.u32 %v4054, %v4052
      %v4058 = vshll.u32 %v3976, 16
      %v4060 = vrot.slane %v4058, 1
      %v4061 = vsel %vm422, %v4056, %v4060
      %v4062 = vshrl.u32 %v3976, 16
      %v4064 = vor.u32 %v4062, %v4060
      %v4066 = vshll.u32 %v3977, 16
      %v4068 = vrot.slane %v4066, 1
      %v4069 = vsel %vm422, %v4064, %v4068
      %v4070 = vshrl.u32 %v3977, 16
      %v4072 = vor.u32 %v4070, %v4068
      %v4074 = vshll.u32 %v3978, 16
      %v4076 = vrot.slane %v4074, 1
      %v4077 = vsel %vm422, %v4072, %v4076
      %v4078 = vshrl.u32 %v3978, 16
      %v4080 = vor.u32 %v4078, %v4076
      %v4082 = vshll.u32 %v3979, 16
      %v4084 = vrot.slane %v4082, 1
      %v4085 = vsel %vm422, %v4080, %v4084
      %v4086 = vshrl.u32 %v3979, 16
      %v4088 = vor.u32 %v4086, %v4084
      %v4090 = vshll.u32 %v3980, 16
      %v4092 = vrot.slane %v4090, 1
      %v4093 = vsel %vm422, %v4088, %v4092
      %v4094 = vshrl.u32 %v3980, 16
      %v4096 = vor.u32 %v4094, %v4092
      %v4098 = vshll.u32 %v3981, 16
      %v4100 = vrot.slane %v4098, 1
      %v4101 = vsel %vm422, %v4096, %v4100
      %v4102 = vshrl.u32 %v3981, 16
      %v4104 = vor.u32 %v4102, %v4100
      %v4106 = vshll.u32 %v3982, 16
      %v4108 = vrot.slane %v4106, 1
      %v4109 = vsel %vm422, %v4104, %v4108
      %v4110 = vshrl.u32 %v3982, 16
      %v4112 = vor.u32 %v4110, %v4108
      %v4114 = vshll.u32 %v3983, 16
      %v4116 = vrot.slane %v4114, 1
      %v4117 = vsel %vm422, %v4112, %v4116
      %v4118 = vshrl.u32 %v3983, 16
      %v4120 = vor.u32 %v4118, %v4116
      %v4122 = vshll.u32 %v3984, 16
      %v4124 = vrot.slane %v4122, 1
      %v4125 = vsel %vm422, %v4120, %v4124
      %v4126 = vshrl.u32 %v3984, 16
      %v4128 = vor.u32 %v4126, %v4124
      %v4130 = vshll.u32 %v3985, 16
      %v4132 = vrot.slane %v4130, 1
      %v4133 = vsel %vm422, %v4128, %v4132
      %v4135 = vsel %vm571, %v3997, 0
      %v4138 = vsel %vm571, %v4005, 0
      %v4141 = vsel %vm571, %v4013, 0
      %v4144 = vsel %vm571, %v4021, 0
      %v4147 = vsel %vm571, %v4029, 0
      %v4150 = vsel %vm571, %v4037, 0
      %v4153 = vsel %vm571, %v4045, 0
      %v4156 = vsel %vm571, %v4053, 0
      %v4159 = vsel %vm571, %v4061, 0
      %v4162 = vsel %vm571, %v4069, 0
      %v4165 = vsel %vm571, %v4077, 0
      %v4168 = vsel %vm571, %v4085, 0
      %v4171 = vsel %vm571, %v4093, 0
      %v4174 = vsel %vm571, %v4101, 0
      %v4177 = vsel %vm571, %v4109, 0
      %v4180 = vsel %vm571, %v4117, 0
      %v4183 = vsel %vm571, %v4125, 0
      %v4186 = vsel %vm571, %v4133, 0
      %v4189 = vsel %vm626, %v3892, 0
      %4191 = vmatpush.bf16.msra.mxu0 0
      %4192 = vmatpush.bf16.msra.mxu0 0
      %4193 = vmatpush.bf16.msra.mxu0 0
      %4194 = vmatpush.bf16.msra.mxu0 0
      %4195 = vmatpush.bf16.msra.mxu0 0
      %4196 = vmatpush.bf16.msra.mxu0 0
      %4197 = vmatpush.bf16.msra.mxu0 0
      %4198 = vmatpush.bf16.msra.mxu0 %v4189
      %4199 = vmatmul.bf16.gmra.mxu0 %v4135
      %v4200 = vpop.f32.mrf.mxu0
      %v4201 = vadd.f32 0.0, %v4200
      %v4202 = vpop.f32.mrf.mxu0
      %v4203 = vadd.f32 0.0, %v4202
      %4204 = vmatmul.bf16.gmra.mxu0 %v4138
      %v4205 = vpop.f32.mrf.mxu0
      %v4206 = vadd.f32 0.0, %v4205
      %v4207 = vpop.f32.mrf.mxu0
      %v4208 = vadd.f32 0.0, %v4207
      %4209 = vmatmul.bf16.gmra.mxu0 %v4141
      %v4210 = vpop.f32.mrf.mxu0
      %v4211 = vadd.f32 0.0, %v4210
      %v4212 = vpop.f32.mrf.mxu0
      %v4213 = vadd.f32 0.0, %v4212
      %4214 = vmatmul.bf16.gmra.mxu0 %v4144
      %v4215 = vpop.f32.mrf.mxu0
      %v4216 = vadd.f32 0.0, %v4215
      %v4217 = vpop.f32.mrf.mxu0
      %v4218 = vadd.f32 0.0, %v4217
      %4219 = vmatmul.bf16.gmra.mxu0 %v4147
      %v4220 = vpop.f32.mrf.mxu0
      %v4221 = vadd.f32 0.0, %v4220
      %v4222 = vpop.f32.mrf.mxu0
      %v4223 = vadd.f32 0.0, %v4222
      %4224 = vmatmul.bf16.gmra.mxu0 %v4150
      %v4225 = vpop.f32.mrf.mxu0
      %v4226 = vadd.f32 0.0, %v4225
      %v4227 = vpop.f32.mrf.mxu0
      %v4228 = vadd.f32 0.0, %v4227
      %4229 = vmatmul.bf16.gmra.mxu0 %v4153
      %v4230 = vpop.f32.mrf.mxu0
      %v4231 = vadd.f32 0.0, %v4230
      %v4232 = vpop.f32.mrf.mxu0
      %v4233 = vadd.f32 0.0, %v4232
      %4234 = vmatmul.bf16.gmra.mxu0 %v4156
      %v4235 = vpop.f32.mrf.mxu0
      %v4236 = vadd.f32 0.0, %v4235
      %v4237 = vpop.f32.mrf.mxu0
      %v4238 = vadd.f32 0.0, %v4237
      %4239 = vmatmul.bf16.gmra.mxu0 %v4159
      %v4240 = vpop.f32.mrf.mxu0
      %v4241 = vadd.f32 0.0, %v4240
      %v4242 = vpop.f32.mrf.mxu0
      %v4243 = vadd.f32 0.0, %v4242
      %4244 = vmatmul.bf16.gmra.mxu0 %v4162
      %v4245 = vpop.f32.mrf.mxu0
      %v4246 = vadd.f32 0.0, %v4245
      %v4247 = vpop.f32.mrf.mxu0
      %v4248 = vadd.f32 0.0, %v4247
      %4249 = vmatmul.bf16.gmra.mxu0 %v4165
      %v4250 = vpop.f32.mrf.mxu0
      %v4251 = vadd.f32 0.0, %v4250
      %v4252 = vpop.f32.mrf.mxu0
      %v4253 = vadd.f32 0.0, %v4252
      %4254 = vmatmul.bf16.gmra.mxu0 %v4168
      %v4255 = vpop.f32.mrf.mxu0
      %v4256 = vadd.f32 0.0, %v4255
      %v4257 = vpop.f32.mrf.mxu0
      %v4258 = vadd.f32 0.0, %v4257
      %4259 = vmatmul.bf16.gmra.mxu0 %v4171
      %v4260 = vpop.f32.mrf.mxu0
      %v4261 = vadd.f32 0.0, %v4260
      %v4262 = vpop.f32.mrf.mxu0
      %v4263 = vadd.f32 0.0, %v4262
      %4264 = vmatmul.bf16.gmra.mxu0 %v4174
      %v4265 = vpop.f32.mrf.mxu0
      %v4266 = vadd.f32 0.0, %v4265
      %v4267 = vpop.f32.mrf.mxu0
      %v4268 = vadd.f32 0.0, %v4267
      %4269 = vmatmul.bf16.gmra.mxu0 %v4177
      %v4270 = vpop.f32.mrf.mxu0
      %v4271 = vadd.f32 0.0, %v4270
      %v4272 = vpop.f32.mrf.mxu0
      %v4273 = vadd.f32 0.0, %v4272
      %4274 = vmatmul.bf16.gmra.mxu0 %v4180
      %v4275 = vpop.f32.mrf.mxu0
      %v4276 = vadd.f32 0.0, %v4275
      %v4277 = vpop.f32.mrf.mxu0
      %v4278 = vadd.f32 0.0, %v4277
      %4279 = vmatmul.bf16.gmra.mxu0 %v4183
      %v4280 = vpop.f32.mrf.mxu0
      %v4281 = vadd.f32 0.0, %v4280
      %v4282 = vpop.f32.mrf.mxu0
      %v4283 = vadd.f32 0.0, %v4282
      %4284 = vmatmul.bf16.gmra.mxu0 %v4186
      %v4285 = vpop.f32.mrf.mxu0
      %v4286 = vadd.f32 0.0, %v4285
      %v4287 = vpop.f32.mrf.mxu0
      %v4288 = vadd.f32 0.0, %v4287
      %4289 = vdwg.mxu0
      %v4290 = vsel %vm571, %v3967, 0
      %v4292 = vsel %vm571, %v3968, 0
      %v4294 = vsel %vm571, %v3969, 0
      %v4296 = vsel %vm571, %v3970, 0
      %v4298 = vsel %vm571, %v3971, 0
      %v4300 = vsel %vm571, %v3972, 0
      %v4302 = vsel %vm571, %v3973, 0
      %v4304 = vsel %vm571, %v3974, 0
      %v4306 = vsel %vm571, %v3975, 0
      %v4308 = vsel %vm571, %v3976, 0
      %v4310 = vsel %vm571, %v3977, 0
      %v4312 = vsel %vm571, %v3978, 0
      %v4314 = vsel %vm571, %v3979, 0
      %v4316 = vsel %vm571, %v3980, 0
      %v4318 = vsel %vm571, %v3981, 0
      %v4320 = vsel %vm571, %v3982, 0
      %v4322 = vsel %vm571, %v3983, 0
      %v4324 = vsel %vm571, %v3984, 0
      %v4327 = vsel %vm626, %v3889, 0
      %4329 = vmatpush.bf16.msra.mxu0 0
      %4330 = vmatpush.bf16.msra.mxu0 0
      %4331 = vmatpush.bf16.msra.mxu0 0
      %4332 = vmatpush.bf16.msra.mxu0 0
      %4333 = vmatpush.bf16.msra.mxu0 0
      %4334 = vmatpush.bf16.msra.mxu0 0
      %4335 = vmatpush.bf16.msra.mxu0 0
      %4336 = vmatpush.bf16.msra.mxu0 %v4327
      %4337 = vmatmul.bf16.gmra.mxu0 %v4290
      %v4338 = vpop.f32.mrf.mxu0
      %v4339 = vadd.f32 %v4201, %v4338
      %v4340 = vpop.f32.mrf.mxu0
      %v4341 = vadd.f32 %v4203, %v4340
      %4342 = vmatmul.bf16.gmra.mxu0 %v4292
      %v4343 = vpop.f32.mrf.mxu0
      %v4344 = vadd.f32 %v4206, %v4343
      %v4345 = vpop.f32.mrf.mxu0
      %v4346 = vadd.f32 %v4208, %v4345
      %4347 = vmatmul.bf16.gmra.mxu0 %v4294
      %v4348 = vpop.f32.mrf.mxu0
      %v4349 = vadd.f32 %v4211, %v4348
      %v4350 = vpop.f32.mrf.mxu0
      %v4351 = vadd.f32 %v4213, %v4350
      %4352 = vmatmul.bf16.gmra.mxu0 %v4296
      %v4353 = vpop.f32.mrf.mxu0
      %v4354 = vadd.f32 %v4216, %v4353
      %v4355 = vpop.f32.mrf.mxu0
      %v4356 = vadd.f32 %v4218, %v4355
      %4357 = vmatmul.bf16.gmra.mxu0 %v4298
      %v4358 = vpop.f32.mrf.mxu0
      %v4359 = vadd.f32 %v4221, %v4358
      %v4360 = vpop.f32.mrf.mxu0
      %v4361 = vadd.f32 %v4223, %v4360
      %4362 = vmatmul.bf16.gmra.mxu0 %v4300
      %v4363 = vpop.f32.mrf.mxu0
      %v4364 = vadd.f32 %v4226, %v4363
      %v4365 = vpop.f32.mrf.mxu0
      %v4366 = vadd.f32 %v4228, %v4365
      %4367 = vmatmul.bf16.gmra.mxu0 %v4302
      %v4368 = vpop.f32.mrf.mxu0
      %v4369 = vadd.f32 %v4231, %v4368
      %v4370 = vpop.f32.mrf.mxu0
      %v4371 = vadd.f32 %v4233, %v4370
      %4372 = vmatmul.bf16.gmra.mxu0 %v4304
      %v4373 = vpop.f32.mrf.mxu0
      %v4374 = vadd.f32 %v4236, %v4373
      %v4375 = vpop.f32.mrf.mxu0
      %v4376 = vadd.f32 %v4238, %v4375
      %4377 = vmatmul.bf16.gmra.mxu0 %v4306
      %v4378 = vpop.f32.mrf.mxu0
      %v4379 = vadd.f32 %v4241, %v4378
      %v4380 = vpop.f32.mrf.mxu0
      %v4381 = vadd.f32 %v4243, %v4380
      %4382 = vmatmul.bf16.gmra.mxu0 %v4308
      %v4383 = vpop.f32.mrf.mxu0
      %v4384 = vadd.f32 %v4246, %v4383
      %v4385 = vpop.f32.mrf.mxu0
      %v4386 = vadd.f32 %v4248, %v4385
      %4387 = vmatmul.bf16.gmra.mxu0 %v4310
      %v4388 = vpop.f32.mrf.mxu0
      %v4389 = vadd.f32 %v4251, %v4388
      %v4390 = vpop.f32.mrf.mxu0
      %v4391 = vadd.f32 %v4253, %v4390
      %4392 = vmatmul.bf16.gmra.mxu0 %v4312
      %v4393 = vpop.f32.mrf.mxu0
      %v4394 = vadd.f32 %v4256, %v4393
      %v4395 = vpop.f32.mrf.mxu0
      %v4396 = vadd.f32 %v4258, %v4395
      %4397 = vmatmul.bf16.gmra.mxu0 %v4314
      %v4398 = vpop.f32.mrf.mxu0
      %v4399 = vadd.f32 %v4261, %v4398
      %v4400 = vpop.f32.mrf.mxu0
      %v4401 = vadd.f32 %v4263, %v4400
      %4402 = vmatmul.bf16.gmra.mxu0 %v4316
      %v4403 = vpop.f32.mrf.mxu0
      %v4404 = vadd.f32 %v4266, %v4403
      %v4405 = vpop.f32.mrf.mxu0
      %v4406 = vadd.f32 %v4268, %v4405
      %4407 = vmatmul.bf16.gmra.mxu0 %v4318
      %v4408 = vpop.f32.mrf.mxu0
      %v4409 = vadd.f32 %v4271, %v4408
      %v4410 = vpop.f32.mrf.mxu0
      %v4411 = vadd.f32 %v4273, %v4410
      %4412 = vmatmul.bf16.gmra.mxu0 %v4320
      %v4413 = vpop.f32.mrf.mxu0
      %v4414 = vadd.f32 %v4276, %v4413
      %v4415 = vpop.f32.mrf.mxu0
      %v4416 = vadd.f32 %v4278, %v4415
      %4417 = vmatmul.bf16.gmra.mxu0 %v4322
      %v4418 = vpop.f32.mrf.mxu0
      %v4419 = vadd.f32 %v4281, %v4418
      %v4420 = vpop.f32.mrf.mxu0
      %v4421 = vadd.f32 %v4283, %v4420
      %4422 = vmatmul.bf16.gmra.mxu0 %v4324
      %v4423 = vpop.f32.mrf.mxu0
      %v4424 = vadd.f32 %v4286, %v4423
      %v4425 = vpop.f32.mrf.mxu0
      %v4426 = vadd.f32 %v4288, %v4425
      %4427 = vdwg.mxu0
      %v4428 = vld [vmem:[#allocation2] sm:$0xe]
      %s4429 = scalar_lea.vmem %s3, 8
      %v4430 = vld [vmem:[%s4429] sm:$0xf]
      %v4432 = vunpack.c.l.b16 %v4428
      %v4433 = vpack.c.b16 %v3931, %v4432
      %v4434 = vrot.slane %v4433, 1
      %v4435 = vrot.slane %v3968, 1
      %v4436 = vsel %vm873, %v4434, %v4435
      %v4437 = vrot.slane %v3969, 1
      %v4438 = vsel %vm873, %v4435, %v4437
      %v4439 = vrot.slane %v3970, 1
      %v4440 = vsel %vm873, %v4437, %v4439
      %v4441 = vrot.slane %v3971, 1
      %v4442 = vsel %vm873, %v4439, %v4441
      %v4443 = vrot.slane %v3972, 1
      %v4444 = vsel %vm873, %v4441, %v4443
      %v4445 = vrot.slane %v3973, 1
      %v4446 = vsel %vm873, %v4443, %v4445
      %v4447 = vrot.slane %v3974, 1
      %v4448 = vsel %vm873, %v4445, %v4447
      %v4449 = vrot.slane %v3975, 1
      %v4450 = vsel %vm873, %v4447, %v4449
      %v4451 = vrot.slane %v3976, 1
      %v4452 = vsel %vm873, %v4449, %v4451
      %v4453 = vrot.slane %v3977, 1
      %v4454 = vsel %vm873, %v4451, %v4453
      %v4455 = vrot.slane %v3978, 1
      %v4456 = vsel %vm873, %v4453, %v4455
      %v4457 = vrot.slane %v3979, 1
      %v4458 = vsel %vm873, %v4455, %v4457
      %v4459 = vrot.slane %v3980, 1
      %v4460 = vsel %vm873, %v4457, %v4459
      %v4461 = vrot.slane %v3981, 1
      %v4462 = vsel %vm873, %v4459, %v4461
      %v4463 = vrot.slane %v3982, 1
      %v4464 = vsel %vm873, %v4461, %v4463
      %v4465 = vrot.slane %v3983, 1
      %v4466 = vsel %vm873, %v4463, %v4465
      %v4467 = vrot.slane %v3984, 1
      %v4468 = vsel %vm873, %v4465, %v4467
      %v4469 = vrot.slane %v3985, 1
      %v4470 = vsel %vm873, %v4467, %v4469
      %v4472 = vsel %vm571, %v4436, 0
      %v4475 = vsel %vm571, %v4438, 0
      %v4478 = vsel %vm571, %v4440, 0
      %v4481 = vsel %vm571, %v4442, 0
      %v4484 = vsel %vm571, %v4444, 0
      %v4487 = vsel %vm571, %v4446, 0
      %v4490 = vsel %vm571, %v4448, 0
      %v4493 = vsel %vm571, %v4450, 0
      %v4496 = vsel %vm571, %v4452, 0
      %v4499 = vsel %vm571, %v4454, 0
      %v4502 = vsel %vm571, %v4456, 0
      %v4505 = vsel %vm571, %v4458, 0
      %v4508 = vsel %vm571, %v4460, 0
      %v4511 = vsel %vm571, %v4462, 0
      %v4514 = vsel %vm571, %v4464, 0
      %v4517 = vsel %vm571, %v4466, 0
      %v4520 = vsel %vm571, %v4468, 0
      %v4523 = vsel %vm571, %v4470, 0
      %v4526 = vsel %vm626, %v4430, 0
      %4528 = vmatpush.bf16.msra.mxu0 0
      %4529 = vmatpush.bf16.msra.mxu0 0
      %4530 = vmatpush.bf16.msra.mxu0 0
      %4531 = vmatpush.bf16.msra.mxu0 0
      %4532 = vmatpush.bf16.msra.mxu0 0
      %4533 = vmatpush.bf16.msra.mxu0 0
      %4534 = vmatpush.bf16.msra.mxu0 0
      %4535 = vmatpush.bf16.msra.mxu0 %v4526
      %4536 = vmatmul.bf16.gmra.mxu0 %v4472
      %v4537 = vpop.f32.mrf.mxu0
      %v4538 = vadd.f32 0.0, %v4537
      %v4539 = vpop.f32.mrf.mxu0
      %v4540 = vadd.f32 0.0, %v4539
      %4541 = vmatmul.bf16.gmra.mxu0 %v4475
      %v4542 = vpop.f32.mrf.mxu0
      %v4543 = vadd.f32 0.0, %v4542
      %v4544 = vpop.f32.mrf.mxu0
      %v4545 = vadd.f32 0.0, %v4544
      %4546 = vmatmul.bf16.gmra.mxu0 %v4478
      %v4547 = vpop.f32.mrf.mxu0
      %v4548 = vadd.f32 0.0, %v4547
      %v4549 = vpop.f32.mrf.mxu0
      %v4550 = vadd.f32 0.0, %v4549
      %4551 = vmatmul.bf16.gmra.mxu0 %v4481
      %v4552 = vpop.f32.mrf.mxu0
      %v4553 = vadd.f32 0.0, %v4552
      %v4554 = vpop.f32.mrf.mxu0
      %v4555 = vadd.f32 0.0, %v4554
      %4556 = vmatmul.bf16.gmra.mxu0 %v4484
      %v4557 = vpop.f32.mrf.mxu0
      %v4558 = vadd.f32 0.0, %v4557
      %v4559 = vpop.f32.mrf.mxu0
      %v4560 = vadd.f32 0.0, %v4559
      %4561 = vmatmul.bf16.gmra.mxu0 %v4487
      %v4562 = vpop.f32.mrf.mxu0
      %v4563 = vadd.f32 0.0, %v4562
      %v4564 = vpop.f32.mrf.mxu0
      %v4565 = vadd.f32 0.0, %v4564
      %4566 = vmatmul.bf16.gmra.mxu0 %v4490
      %v4567 = vpop.f32.mrf.mxu0
      %v4568 = vadd.f32 0.0, %v4567
      %v4569 = vpop.f32.mrf.mxu0
      %v4570 = vadd.f32 0.0, %v4569
      %4571 = vmatmul.bf16.gmra.mxu0 %v4493
      %v4572 = vpop.f32.mrf.mxu0
      %v4573 = vadd.f32 0.0, %v4572
      %v4574 = vpop.f32.mrf.mxu0
      %v4575 = vadd.f32 0.0, %v4574
      %4576 = vmatmul.bf16.gmra.mxu0 %v4496
      %v4577 = vpop.f32.mrf.mxu0
      %v4578 = vadd.f32 0.0, %v4577
      %v4579 = vpop.f32.mrf.mxu0
      %v4580 = vadd.f32 0.0, %v4579
      %4581 = vmatmul.bf16.gmra.mxu0 %v4499
      %v4582 = vpop.f32.mrf.mxu0
      %v4583 = vadd.f32 0.0, %v4582
      %v4584 = vpop.f32.mrf.mxu0
      %v4585 = vadd.f32 0.0, %v4584
      %4586 = vmatmul.bf16.gmra.mxu0 %v4502
      %v4587 = vpop.f32.mrf.mxu0
      %v4588 = vadd.f32 0.0, %v4587
      %v4589 = vpop.f32.mrf.mxu0
      %v4590 = vadd.f32 0.0, %v4589
      %4591 = vmatmul.bf16.gmra.mxu0 %v4505
      %v4592 = vpop.f32.mrf.mxu0
      %v4593 = vadd.f32 0.0, %v4592
      %v4594 = vpop.f32.mrf.mxu0
      %v4595 = vadd.f32 0.0, %v4594
      %4596 = vmatmul.bf16.gmra.mxu0 %v4508
      %v4597 = vpop.f32.mrf.mxu0
      %v4598 = vadd.f32 0.0, %v4597
      %v4599 = vpop.f32.mrf.mxu0
      %v4600 = vadd.f32 0.0, %v4599
      %4601 = vmatmul.bf16.gmra.mxu0 %v4511
      %v4602 = vpop.f32.mrf.mxu0
      %v4603 = vadd.f32 0.0, %v4602
      %v4604 = vpop.f32.mrf.mxu0
      %v4605 = vadd.f32 0.0, %v4604
      %4606 = vmatmul.bf16.gmra.mxu0 %v4514
      %v4607 = vpop.f32.mrf.mxu0
      %v4608 = vadd.f32 0.0, %v4607
      %v4609 = vpop.f32.mrf.mxu0
      %v4610 = vadd.f32 0.0, %v4609
      %4611 = vmatmul.bf16.gmra.mxu0 %v4517
      %v4612 = vpop.f32.mrf.mxu0
      %v4613 = vadd.f32 0.0, %v4612
      %v4614 = vpop.f32.mrf.mxu0
      %v4615 = vadd.f32 0.0, %v4614
      %4616 = vmatmul.bf16.gmra.mxu0 %v4520
      %v4617 = vpop.f32.mrf.mxu0
      %v4618 = vadd.f32 0.0, %v4617
      %v4619 = vpop.f32.mrf.mxu0
      %v4620 = vadd.f32 0.0, %v4619
      %4621 = vmatmul.bf16.gmra.mxu0 %v4523
      %v4622 = vpop.f32.mrf.mxu0
      %v4623 = vadd.f32 0.0, %v4622
      %v4624 = vpop.f32.mrf.mxu0
      %v4625 = vadd.f32 0.0, %v4624
      %4626 = vdwg.mxu0
      %v4627 = vadd.f32 %v4339, %v4538
      %v4628 = vadd.f32 %v4341, %v4540
      %v4629 = vadd.f32 %v4344, %v4543
      %v4630 = vadd.f32 %v4346, %v4545
      %v4631 = vadd.f32 %v4349, %v4548
      %v4632 = vadd.f32 %v4351, %v4550
      %v4633 = vadd.f32 %v4354, %v4553
      %v4634 = vadd.f32 %v4356, %v4555
      %v4635 = vadd.f32 %v4359, %v4558
      %v4636 = vadd.f32 %v4361, %v4560
      %v4637 = vadd.f32 %v4364, %v4563
      %v4638 = vadd.f32 %v4366, %v4565
      %v4639 = vadd.f32 %v4369, %v4568
      %v4640 = vadd.f32 %v4371, %v4570
      %v4641 = vadd.f32 %v4374, %v4573
      %v4642 = vadd.f32 %v4376, %v4575
      %v4643 = vadd.f32 %v4379, %v4578
      %v4644 = vadd.f32 %v4381, %v4580
      %v4645 = vadd.f32 %v4384, %v4583
      %v4646 = vadd.f32 %v4386, %v4585
      %v4647 = vadd.f32 %v4389, %v4588
      %v4648 = vadd.f32 %v4391, %v4590
      %v4649 = vadd.f32 %v4394, %v4593
      %v4650 = vadd.f32 %v4396, %v4595
      %v4651 = vadd.f32 %v4399, %v4598
      %v4652 = vadd.f32 %v4401, %v4600
      %v4653 = vadd.f32 %v4404, %v4603
      %v4654 = vadd.f32 %v4406, %v4605
      %v4655 = vadd.f32 %v4409, %v4608
      %v4656 = vadd.f32 %v4411, %v4610
      %v4657 = vadd.f32 %v4414, %v4613
      %v4658 = vadd.f32 %v4416, %v4615
      %v4659 = vadd.f32 %v4419, %v4618
      %v4660 = vadd.f32 %v4421, %v4620
      %v4661 = vadd.f32 %v4424, %v4623
      %v4662 = vadd.f32 %v4426, %v4625
      %v4663 = vld [vmem:[#allocation2 + $0x8] sm:$0xe]
      %v4664 = vld [vmem:[#allocation2 + $0xc] sm:$0xf]
      %v4665 = vld [vmem:[#allocation2 + $0x10] sm:$0xf]
      %v4666 = vld [vmem:[#allocation2 + $0x14] sm:$0xf]
      %v4667 = vld [vmem:[#allocation2 + $0x18] sm:$0xf]
      %v4668 = vld [vmem:[#allocation2 + $0x1c] sm:$0xf]
      %v4669 = vld [vmem:[#allocation2 + $0x20] sm:$0xf]
      %v4670 = vld [vmem:[#allocation2 + $0x24] sm:$0xf]
      %v4671 = vld [vmem:[#allocation2 + $0x28] sm:$0xf]
      %v4672 = vld [vmem:[#allocation2 + $0x2c] sm:$0xf]
      %v4673 = vld [vmem:[#allocation2 + $0x30] sm:$0xf]
      %v4674 = vld [vmem:[#allocation2 + $0x34] sm:$0xf]
      %v4675 = vld [vmem:[#allocation2 + $0x38] sm:$0xf]
      %v4676 = vld [vmem:[#allocation2 + $0x3c] sm:$0xf]
      %v4677 = vld [vmem:[#allocation2 + $0x40] sm:$0xf]
      %v4678 = vld [vmem:[#allocation2 + $0x44] sm:$0xf]
      %v4679 = vld [vmem:[#allocation2 + $0x48] sm:$0xf]
      %v4680 = vld [vmem:[#allocation2 + $0x4c] sm:$0xf]
      %v4681 = vld [vmem:[#allocation2 + $0x50] sm:$0xf]
      %v4682 = vld [vmem:[#allocation2 + $0x54] sm:$0xf]
      %v4683 = vld [vmem:[#allocation2 + $0x58] sm:$0xf]
      %v4684 = vld [vmem:[#allocation2 + $0x5c] sm:$0xf]
      %v4685 = vld [vmem:[#allocation2 + $0x60] sm:$0xf]
      %v4686 = vld [vmem:[#allocation2 + $0x64] sm:$0xf]
      %v4687 = vld [vmem:[#allocation2 + $0x68] sm:$0xf]
      %v4688 = vld [vmem:[#allocation2 + $0x6c] sm:$0xf]
      %v4689 = vld [vmem:[#allocation2 + $0x70] sm:$0xf]
      %v4690 = vld [vmem:[#allocation2 + $0x74] sm:$0xf]
      %v4691 = vld [vmem:[#allocation2 + $0x78] sm:$0xf]
      %v4692 = vld [vmem:[#allocation2 + $0x7c] sm:$0xf]
      %v4693 = vld [vmem:[#allocation2 + $0x80] sm:$0xf]
      %v4694 = vld [vmem:[#allocation2 + $0x84] sm:$0xf]
      %v4695 = vld [vmem:[#allocation2 + $0x88] sm:$0xf]
      %v4696 = vld [vmem:[#allocation2 + $0x8c] sm:$0xf]
      %v4697 = vld [vmem:[#allocation2 + $0x90] sm:$0xf]
      %v4698 = vld [vmem:[#allocation2 + $0x94] sm:$0xf]
      %v4699 = vld [vmem:[#allocation2 + $0x98] sm:$0x1]
      %s4700 = scalar_lea.vmem %s3, 12
      %v4701 = vld [vmem:[%s4700] sm:$0xf]
      %v4739 = vunpack.c.l.b16 %v4663
      %v4740 = vunpack.c.l.b16 %v4664
      %v4741 = vunpack.c.l.b16 %v4665
      %v4742 = vunpack.c.l.b16 %v4666
      %v4743 = vunpack.c.l.b16 %v4667
      %v4744 = vunpack.c.l.b16 %v4668
      %v4745 = vunpack.c.l.b16 %v4669
      %v4746 = vunpack.c.l.b16 %v4670
      %v4747 = vunpack.c.l.b16 %v4671
      %v4748 = vunpack.c.l.b16 %v4672
      %v4749 = vunpack.c.l.b16 %v4673
      %v4750 = vunpack.c.l.b16 %v4674
      %v4751 = vunpack.c.l.b16 %v4675
      %v4752 = vunpack.c.l.b16 %v4676
      %v4753 = vunpack.c.l.b16 %v4677
      %v4754 = vunpack.c.l.b16 %v4678
      %v4755 = vunpack.c.l.b16 %v4679
      %v4756 = vunpack.c.l.b16 %v4680
      %v4757 = vunpack.c.l.b16 %v4681
      %v4758 = vunpack.c.l.b16 %v4682
      %v4759 = vunpack.c.l.b16 %v4683
      %v4760 = vunpack.c.l.b16 %v4684
      %v4761 = vunpack.c.l.b16 %v4685
      %v4762 = vunpack.c.l.b16 %v4686
      %v4763 = vunpack.c.l.b16 %v4687
      %v4764 = vunpack.c.l.b16 %v4688
      %v4765 = vunpack.c.l.b16 %v4689
      %v4766 = vunpack.c.l.b16 %v4690
      %v4767 = vunpack.c.l.b16 %v4691
      %v4768 = vunpack.c.l.b16 %v4692
      %v4769 = vunpack.c.l.b16 %v4693
      %v4770 = vunpack.c.l.b16 %v4694
      %v4771 = vunpack.c.l.b16 %v4695
      %v4772 = vunpack.c.l.b16 %v4696
      %v4773 = vunpack.c.l.b16 %v4697
      %v4774 = vunpack.c.l.b16 %v4698
      %v4775 = vunpack.c.l.b16 %v4699
      %v4776 = vpack.c.b16 %v4740, %v4739
      %v4777 = vpack.c.b16 %v4742, %v4741
      %v4778 = vpack.c.b16 %v4744, %v4743
      %v4779 = vpack.c.b16 %v4746, %v4745
      %v4780 = vpack.c.b16 %v4748, %v4747
      %v4781 = vpack.c.b16 %v4750, %v4749
      %v4782 = vpack.c.b16 %v4752, %v4751
      %v4783 = vpack.c.b16 %v4754, %v4753
      %v4784 = vpack.c.b16 %v4756, %v4755
      %v4785 = vpack.c.b16 %v4758, %v4757
      %v4786 = vpack.c.b16 %v4760, %v4759
      %v4787 = vpack.c.b16 %v4762, %v4761
      %v4788 = vpack.c.b16 %v4764, %v4763
      %v4789 = vpack.c.b16 %v4766, %v4765
      %v4790 = vpack.c.b16 %v4768, %v4767
      %v4791 = vpack.c.b16 %v4770, %v4769
      %v4792 = vpack.c.b16 %v4772, %v4771
      %v4793 = vpack.c.b16 %v4774, %v4773
      %v4794 = vpack.c.b16 %v4775, %v4775
      %v4795 = vrot.slane %v4776, 1
      %v4796 = vrot.slane %v4777, 1
      %v4797 = vsel %vm873, %v4795, %v4796
      %v4798 = vrot.slane %v4778, 1
      %v4799 = vsel %vm873, %v4796, %v4798
      %v4800 = vrot.slane %v4779, 1
      %v4801 = vsel %vm873, %v4798, %v4800
      %v4802 = vrot.slane %v4780, 1
      %v4803 = vsel %vm873, %v4800, %v4802
      %v4804 = vrot.slane %v4781, 1
      %v4805 = vsel %vm873, %v4802, %v4804
      %v4806 = vrot.slane %v4782, 1
      %v4807 = vsel %vm873, %v4804, %v4806
      %v4808 = vrot.slane %v4783, 1
      %v4809 = vsel %vm873, %v4806, %v4808
      %v4810 = vrot.slane %v4784, 1
      %v4811 = vsel %vm873, %v4808, %v4810
      %v4812 = vrot.slane %v4785, 1
      %v4813 = vsel %vm873, %v4810, %v4812
      %v4814 = vrot.slane %v4786, 1
      %v4815 = vsel %vm873, %v4812, %v4814
      %v4816 = vrot.slane %v4787, 1
      %v4817 = vsel %vm873, %v4814, %v4816
      %v4818 = vrot.slane %v4788, 1
      %v4819 = vsel %vm873, %v4816, %v4818
      %v4820 = vrot.slane %v4789, 1
      %v4821 = vsel %vm873, %v4818, %v4820
      %v4822 = vrot.slane %v4790, 1
      %v4823 = vsel %vm873, %v4820, %v4822
      %v4824 = vrot.slane %v4791, 1
      %v4825 = vsel %vm873, %v4822, %v4824
      %v4826 = vrot.slane %v4792, 1
      %v4827 = vsel %vm873, %v4824, %v4826
      %v4828 = vrot.slane %v4793, 1
      %v4829 = vsel %vm873, %v4826, %v4828
      %v4830 = vrot.slane %v4794, 1
      %v4831 = vsel %vm873, %v4828, %v4830
      %v4833 = vsel %vm571, %v4797, 0
      %v4836 = vsel %vm571, %v4799, 0
      %v4839 = vsel %vm571, %v4801, 0
      %v4842 = vsel %vm571, %v4803, 0
      %v4845 = vsel %vm571, %v4805, 0
      %v4848 = vsel %vm571, %v4807, 0
      %v4851 = vsel %vm571, %v4809, 0
      %v4854 = vsel %vm571, %v4811, 0
      %v4857 = vsel %vm571, %v4813, 0
      %v4860 = vsel %vm571, %v4815, 0
      %v4863 = vsel %vm571, %v4817, 0
      %v4866 = vsel %vm571, %v4819, 0
      %v4869 = vsel %vm571, %v4821, 0
      %v4872 = vsel %vm571, %v4823, 0
      %v4875 = vsel %vm571, %v4825, 0
      %v4878 = vsel %vm571, %v4827, 0
      %v4881 = vsel %vm571, %v4829, 0
      %v4884 = vsel %vm571, %v4831, 0
      %v4887 = vsel %vm626, %v4701, 0
      %4889 = vmatpush.bf16.msra.mxu0 0
      %4890 = vmatpush.bf16.msra.mxu0 0
      %4891 = vmatpush.bf16.msra.mxu0 0
      %4892 = vmatpush.bf16.msra.mxu0 0
      %4893 = vmatpush.bf16.msra.mxu0 0
      %4894 = vmatpush.bf16.msra.mxu0 0
      %4895 = vmatpush.bf16.msra.mxu0 0
      %4896 = vmatpush.bf16.msra.mxu0 %v4887
      %4897 = vmatmul.bf16.gmra.mxu0 %v4833
      %v4898 = vpop.f32.mrf.mxu0
      %v4899 = vadd.f32 0.0, %v4898
      %v4900 = vpop.f32.mrf.mxu0
      %v4901 = vadd.f32 0.0, %v4900
      %4902 = vmatmul.bf16.gmra.mxu0 %v4836
      %v4903 = vpop.f32.mrf.mxu0
      %v4904 = vadd.f32 0.0, %v4903
      %v4905 = vpop.f32.mrf.mxu0
      %v4906 = vadd.f32 0.0, %v4905
      %4907 = vmatmul.bf16.gmra.mxu0 %v4839
      %v4908 = vpop.f32.mrf.mxu0
      %v4909 = vadd.f32 0.0, %v4908
      %v4910 = vpop.f32.mrf.mxu0
      %v4911 = vadd.f32 0.0, %v4910
      %4912 = vmatmul.bf16.gmra.mxu0 %v4842
      %v4913 = vpop.f32.mrf.mxu0
      %v4914 = vadd.f32 0.0, %v4913
      %v4915 = vpop.f32.mrf.mxu0
      %v4916 = vadd.f32 0.0, %v4915
      %4917 = vmatmul.bf16.gmra.mxu0 %v4845
      %v4918 = vpop.f32.mrf.mxu0
      %v4919 = vadd.f32 0.0, %v4918
      %v4920 = vpop.f32.mrf.mxu0
      %v4921 = vadd.f32 0.0, %v4920
      %4922 = vmatmul.bf16.gmra.mxu0 %v4848
      %v4923 = vpop.f32.mrf.mxu0
      %v4924 = vadd.f32 0.0, %v4923
      %v4925 = vpop.f32.mrf.mxu0
      %v4926 = vadd.f32 0.0, %v4925
      %4927 = vmatmul.bf16.gmra.mxu0 %v4851
      %v4928 = vpop.f32.mrf.mxu0
      %v4929 = vadd.f32 0.0, %v4928
      %v4930 = vpop.f32.mrf.mxu0
      %v4931 = vadd.f32 0.0, %v4930
      %4932 = vmatmul.bf16.gmra.mxu0 %v4854
      %v4933 = vpop.f32.mrf.mxu0
      %v4934 = vadd.f32 0.0, %v4933
      %v4935 = vpop.f32.mrf.mxu0
      %v4936 = vadd.f32 0.0, %v4935
      %4937 = vmatmul.bf16.gmra.mxu0 %v4857
      %v4938 = vpop.f32.mrf.mxu0
      %v4939 = vadd.f32 0.0, %v4938
      %v4940 = vpop.f32.mrf.mxu0
      %v4941 = vadd.f32 0.0, %v4940
      %4942 = vmatmul.bf16.gmra.mxu0 %v4860
      %v4943 = vpop.f32.mrf.mxu0
      %v4944 = vadd.f32 0.0, %v4943
      %v4945 = vpop.f32.mrf.mxu0
      %v4946 = vadd.f32 0.0, %v4945
      %4947 = vmatmul.bf16.gmra.mxu0 %v4863
      %v4948 = vpop.f32.mrf.mxu0
      %v4949 = vadd.f32 0.0, %v4948
      %v4950 = vpop.f32.mrf.mxu0
      %v4951 = vadd.f32 0.0, %v4950
      %4952 = vmatmul.bf16.gmra.mxu0 %v4866
      %v4953 = vpop.f32.mrf.mxu0
      %v4954 = vadd.f32 0.0, %v4953
      %v4955 = vpop.f32.mrf.mxu0
      %v4956 = vadd.f32 0.0, %v4955
      %4957 = vmatmul.bf16.gmra.mxu0 %v4869
      %v4958 = vpop.f32.mrf.mxu0
      %v4959 = vadd.f32 0.0, %v4958
      %v4960 = vpop.f32.mrf.mxu0
      %v4961 = vadd.f32 0.0, %v4960
      %4962 = vmatmul.bf16.gmra.mxu0 %v4872
      %v4963 = vpop.f32.mrf.mxu0
      %v4964 = vadd.f32 0.0, %v4963
      %v4965 = vpop.f32.mrf.mxu0
      %v4966 = vadd.f32 0.0, %v4965
      %4967 = vmatmul.bf16.gmra.mxu0 %v4875
      %v4968 = vpop.f32.mrf.mxu0
      %v4969 = vadd.f32 0.0, %v4968
      %v4970 = vpop.f32.mrf.mxu0
      %v4971 = vadd.f32 0.0, %v4970
      %4972 = vmatmul.bf16.gmra.mxu0 %v4878
      %v4973 = vpop.f32.mrf.mxu0
      %v4974 = vadd.f32 0.0, %v4973
      %v4975 = vpop.f32.mrf.mxu0
      %v4976 = vadd.f32 0.0, %v4975
      %4977 = vmatmul.bf16.gmra.mxu0 %v4881
      %v4978 = vpop.f32.mrf.mxu0
      %v4979 = vadd.f32 0.0, %v4978
      %v4980 = vpop.f32.mrf.mxu0
      %v4981 = vadd.f32 0.0, %v4980
      %4982 = vmatmul.bf16.gmra.mxu0 %v4884
      %v4983 = vpop.f32.mrf.mxu0
      %v4984 = vadd.f32 0.0, %v4983
      %v4985 = vpop.f32.mrf.mxu0
      %v4986 = vadd.f32 0.0, %v4985
      %4987 = vdwg.mxu0
      %v4988 = vadd.f32 %v4627, %v4899
      %v4989 = vadd.f32 %v4628, %v4901
      %v4990 = vadd.f32 %v4629, %v4904
      %v4991 = vadd.f32 %v4630, %v4906
      %v4992 = vadd.f32 %v4631, %v4909
      %v4993 = vadd.f32 %v4632, %v4911
      %v4994 = vadd.f32 %v4633, %v4914
      %v4995 = vadd.f32 %v4634, %v4916
      %v4996 = vadd.f32 %v4635, %v4919
      %v4997 = vadd.f32 %v4636, %v4921
      %v4998 = vadd.f32 %v4637, %v4924
      %v4999 = vadd.f32 %v4638, %v4926
      %v5000 = vadd.f32 %v4639, %v4929
      %v5001 = vadd.f32 %v4640, %v4931
      %v5002 = vadd.f32 %v4641, %v4934
      %v5003 = vadd.f32 %v4642, %v4936
      %v5004 = vadd.f32 %v4643, %v4939
      %v5005 = vadd.f32 %v4644, %v4941
      %v5006 = vadd.f32 %v4645, %v4944
      %v5007 = vadd.f32 %v4646, %v4946
      %v5008 = vadd.f32 %v4647, %v4949
      %v5009 = vadd.f32 %v4648, %v4951
      %v5010 = vadd.f32 %v4649, %v4954
      %v5011 = vadd.f32 %v4650, %v4956
      %v5012 = vadd.f32 %v4651, %v4959
      %v5013 = vadd.f32 %v4652, %v4961
      %v5014 = vadd.f32 %v4653, %v4964
      %v5015 = vadd.f32 %v4654, %v4966
      %v5016 = vadd.f32 %v4655, %v4969
      %v5017 = vadd.f32 %v4656, %v4971
      %v5018 = vadd.f32 %v4657, %v4974
      %v5019 = vadd.f32 %v4658, %v4976
      %v5020 = vadd.f32 %v4659, %v4979
      %v5021 = vadd.f32 %v4660, %v4981
      %v5022 = vadd.f32 %v4661, %v4984
      %v5023 = vadd.f32 %v4662, %v4986
      %v5024 = vld [vmem:[#allocation2 + $0x98] sm:$0x3]
      %s5025 = scalar_lea.vmem %s3, 16
      %v5026 = vld [vmem:[%s5025] sm:$0xf]
      %v5028 = vunpack.c.l.b16 %v5024
      %v5029 = vpack.c.b16 %v5028, %v5028
      %v5031 = vshrl.u32 %v4776, 16
      %v5033 = vrot.slane %v5031, 1
      %v5034 = vshll.u32 %v4776, 16
      %v5036 = vrot.slane %v5034, 2
      %v5037 = vor.u32 %v5033, %v5036
      %v5039 = vshrl.u32 %v4777, 16
      %v5041 = vrot.slane %v5039, 1
      %v5042 = vshll.u32 %v4777, 16
      %v5044 = vrot.slane %v5042, 2
      %v5045 = vor.u32 %v5041, %v5044
      %v5046 = vsel %vm1470, %v5037, %v5045
      %v5048 = vshrl.u32 %v4778, 16
      %v5050 = vrot.slane %v5048, 1
      %v5051 = vshll.u32 %v4778, 16
      %v5053 = vrot.slane %v5051, 2
      %v5054 = vor.u32 %v5050, %v5053
      %v5055 = vsel %vm1470, %v5045, %v5054
      %v5057 = vshrl.u32 %v4779, 16
      %v5059 = vrot.slane %v5057, 1
      %v5060 = vshll.u32 %v4779, 16
      %v5062 = vrot.slane %v5060, 2
      %v5063 = vor.u32 %v5059, %v5062
      %v5064 = vsel %vm1470, %v5054, %v5063
      %v5066 = vshrl.u32 %v4780, 16
      %v5068 = vrot.slane %v5066, 1
      %v5069 = vshll.u32 %v4780, 16
      %v5071 = vrot.slane %v5069, 2
      %v5072 = vor.u32 %v5068, %v5071
      %v5073 = vsel %vm1470, %v5063, %v5072
      %v5075 = vshrl.u32 %v4781, 16
      %v5077 = vrot.slane %v5075, 1
      %v5078 = vshll.u32 %v4781, 16
      %v5080 = vrot.slane %v5078, 2
      %v5081 = vor.u32 %v5077, %v5080
      %v5082 = vsel %vm1470, %v5072, %v5081
      %v5084 = vshrl.u32 %v4782, 16
      %v5086 = vrot.slane %v5084, 1
      %v5087 = vshll.u32 %v4782, 16
      %v5089 = vrot.slane %v5087, 2
      %v5090 = vor.u32 %v5086, %v5089
      %v5091 = vsel %vm1470, %v5081, %v5090
      %v5093 = vshrl.u32 %v4783, 16
      %v5095 = vrot.slane %v5093, 1
      %v5096 = vshll.u32 %v4783, 16
      %v5098 = vrot.slane %v5096, 2
      %v5099 = vor.u32 %v5095, %v5098
      %v5100 = vsel %vm1470, %v5090, %v5099
      %v5102 = vshrl.u32 %v4784, 16
      %v5104 = vrot.slane %v5102, 1
      %v5105 = vshll.u32 %v4784, 16
      %v5107 = vrot.slane %v5105, 2
      %v5108 = vor.u32 %v5104, %v5107
      %v5109 = vsel %vm1470, %v5099, %v5108
      %v5111 = vshrl.u32 %v4785, 16
      %v5113 = vrot.slane %v5111, 1
      %v5114 = vshll.u32 %v4785, 16
      %v5116 = vrot.slane %v5114, 2
      %v5117 = vor.u32 %v5113, %v5116
      %v5118 = vsel %vm1470, %v5108, %v5117
      %v5120 = vshrl.u32 %v4786, 16
      %v5122 = vrot.slane %v5120, 1
      %v5123 = vshll.u32 %v4786, 16
      %v5125 = vrot.slane %v5123, 2
      %v5126 = vor.u32 %v5122, %v5125
      %v5127 = vsel %vm1470, %v5117, %v5126
      %v5129 = vshrl.u32 %v4787, 16
      %v5131 = vrot.slane %v5129, 1
      %v5132 = vshll.u32 %v4787, 16
      %v5134 = vrot.slane %v5132, 2
      %v5135 = vor.u32 %v5131, %v5134
      %v5136 = vsel %vm1470, %v5126, %v5135
      %v5138 = vshrl.u32 %v4788, 16
      %v5140 = vrot.slane %v5138, 1
      %v5141 = vshll.u32 %v4788, 16
      %v5143 = vrot.slane %v5141, 2
      %v5144 = vor.u32 %v5140, %v5143
      %v5145 = vsel %vm1470, %v5135, %v5144
      %v5147 = vshrl.u32 %v4789, 16
      %v5149 = vrot.slane %v5147, 1
      %v5150 = vshll.u32 %v4789, 16
      %v5152 = vrot.slane %v5150, 2
      %v5153 = vor.u32 %v5149, %v5152
      %v5154 = vsel %vm1470, %v5144, %v5153
      %v5156 = vshrl.u32 %v4790, 16
      %v5158 = vrot.slane %v5156, 1
      %v5159 = vshll.u32 %v4790, 16
      %v5161 = vrot.slane %v5159, 2
      %v5162 = vor.u32 %v5158, %v5161
      %v5163 = vsel %vm1470, %v5153, %v5162
      %v5165 = vshrl.u32 %v4791, 16
      %v5167 = vrot.slane %v5165, 1
      %v5168 = vshll.u32 %v4791, 16
      %v5170 = vrot.slane %v5168, 2
      %v5171 = vor.u32 %v5167, %v5170
      %v5172 = vsel %vm1470, %v5162, %v5171
      %v5174 = vshrl.u32 %v4792, 16
      %v5176 = vrot.slane %v5174, 1
      %v5177 = vshll.u32 %v4792, 16
      %v5179 = vrot.slane %v5177, 2
      %v5180 = vor.u32 %v5176, %v5179
      %v5181 = vsel %vm1470, %v5171, %v5180
      %v5183 = vshrl.u32 %v4793, 16
      %v5185 = vrot.slane %v5183, 1
      %v5186 = vshll.u32 %v4793, 16
      %v5188 = vrot.slane %v5186, 2
      %v5189 = vor.u32 %v5185, %v5188
      %v5190 = vsel %vm1470, %v5180, %v5189
      %v5192 = vshrl.u32 %v5029, 16
      %v5194 = vrot.slane %v5192, 1
      %v5195 = vshll.u32 %v5029, 16
      %v5197 = vrot.slane %v5195, 2
      %v5198 = vor.u32 %v5194, %v5197
      %v5199 = vsel %vm1470, %v5189, %v5198
      %v5201 = vsel %vm571, %v5046, 0
      %v5204 = vsel %vm571, %v5055, 0
      %v5207 = vsel %vm571, %v5064, 0
      %v5210 = vsel %vm571, %v5073, 0
      %v5213 = vsel %vm571, %v5082, 0
      %v5216 = vsel %vm571, %v5091, 0
      %v5219 = vsel %vm571, %v5100, 0
      %v5222 = vsel %vm571, %v5109, 0
      %v5225 = vsel %vm571, %v5118, 0
      %v5228 = vsel %vm571, %v5127, 0
      %v5231 = vsel %vm571, %v5136, 0
      %v5234 = vsel %vm571, %v5145, 0
      %v5237 = vsel %vm571, %v5154, 0
      %v5240 = vsel %vm571, %v5163, 0
      %v5243 = vsel %vm571, %v5172, 0
      %v5246 = vsel %vm571, %v5181, 0
      %v5249 = vsel %vm571, %v5190, 0
      %v5252 = vsel %vm571, %v5199, 0
      %v5255 = vsel %vm626, %v5026, 0
      %5257 = vmatpush.bf16.msra.mxu0 0
      %5258 = vmatpush.bf16.msra.mxu0 0
      %5259 = vmatpush.bf16.msra.mxu0 0
      %5260 = vmatpush.bf16.msra.mxu0 0
      %5261 = vmatpush.bf16.msra.mxu0 0
      %5262 = vmatpush.bf16.msra.mxu0 0
      %5263 = vmatpush.bf16.msra.mxu0 0
      %5264 = vmatpush.bf16.msra.mxu0 %v5255
      %5265 = vmatmul.bf16.gmra.mxu0 %v5201
      %v5266 = vpop.f32.mrf.mxu0
      %v5267 = vadd.f32 0.0, %v5266
      %v5268 = vpop.f32.mrf.mxu0
      %v5269 = vadd.f32 0.0, %v5268
      %5270 = vmatmul.bf16.gmra.mxu0 %v5204
      %v5271 = vpop.f32.mrf.mxu0
      %v5272 = vadd.f32 0.0, %v5271
      %v5273 = vpop.f32.mrf.mxu0
      %v5274 = vadd.f32 0.0, %v5273
      %5275 = vmatmul.bf16.gmra.mxu0 %v5207
      %v5276 = vpop.f32.mrf.mxu0
      %v5277 = vadd.f32 0.0, %v5276
      %v5278 = vpop.f32.mrf.mxu0
      %v5279 = vadd.f32 0.0, %v5278
      %5280 = vmatmul.bf16.gmra.mxu0 %v5210
      %v5281 = vpop.f32.mrf.mxu0
      %v5282 = vadd.f32 0.0, %v5281
      %v5283 = vpop.f32.mrf.mxu0
      %v5284 = vadd.f32 0.0, %v5283
      %5285 = vmatmul.bf16.gmra.mxu0 %v5213
      %v5286 = vpop.f32.mrf.mxu0
      %v5287 = vadd.f32 0.0, %v5286
      %v5288 = vpop.f32.mrf.mxu0
      %v5289 = vadd.f32 0.0, %v5288
      %5290 = vmatmul.bf16.gmra.mxu0 %v5216
      %v5291 = vpop.f32.mrf.mxu0
      %v5292 = vadd.f32 0.0, %v5291
      %v5293 = vpop.f32.mrf.mxu0
      %v5294 = vadd.f32 0.0, %v5293
      %5295 = vmatmul.bf16.gmra.mxu0 %v5219
      %v5296 = vpop.f32.mrf.mxu0
      %v5297 = vadd.f32 0.0, %v5296
      %v5298 = vpop.f32.mrf.mxu0
      %v5299 = vadd.f32 0.0, %v5298
      %5300 = vmatmul.bf16.gmra.mxu0 %v5222
      %v5301 = vpop.f32.mrf.mxu0
      %v5302 = vadd.f32 0.0, %v5301
      %v5303 = vpop.f32.mrf.mxu0
      %v5304 = vadd.f32 0.0, %v5303
      %5305 = vmatmul.bf16.gmra.mxu0 %v5225
      %v5306 = vpop.f32.mrf.mxu0
      %v5307 = vadd.f32 0.0, %v5306
      %v5308 = vpop.f32.mrf.mxu0
      %v5309 = vadd.f32 0.0, %v5308
      %5310 = vmatmul.bf16.gmra.mxu0 %v5228
      %v5311 = vpop.f32.mrf.mxu0
      %v5312 = vadd.f32 0.0, %v5311
      %v5313 = vpop.f32.mrf.mxu0
      %v5314 = vadd.f32 0.0, %v5313
      %5315 = vmatmul.bf16.gmra.mxu0 %v5231
      %v5316 = vpop.f32.mrf.mxu0
      %v5317 = vadd.f32 0.0, %v5316
      %v5318 = vpop.f32.mrf.mxu0
      %v5319 = vadd.f32 0.0, %v5318
      %5320 = vmatmul.bf16.gmra.mxu0 %v5234
      %v5321 = vpop.f32.mrf.mxu0
      %v5322 = vadd.f32 0.0, %v5321
      %v5323 = vpop.f32.mrf.mxu0
      %v5324 = vadd.f32 0.0, %v5323
      %5325 = vmatmul.bf16.gmra.mxu0 %v5237
      %v5326 = vpop.f32.mrf.mxu0
      %v5327 = vadd.f32 0.0, %v5326
      %v5328 = vpop.f32.mrf.mxu0
      %v5329 = vadd.f32 0.0, %v5328
      %5330 = vmatmul.bf16.gmra.mxu0 %v5240
      %v5331 = vpop.f32.mrf.mxu0
      %v5332 = vadd.f32 0.0, %v5331
      %v5333 = vpop.f32.mrf.mxu0
      %v5334 = vadd.f32 0.0, %v5333
      %5335 = vmatmul.bf16.gmra.mxu0 %v5243
      %v5336 = vpop.f32.mrf.mxu0
      %v5337 = vadd.f32 0.0, %v5336
      %v5338 = vpop.f32.mrf.mxu0
      %v5339 = vadd.f32 0.0, %v5338
      %5340 = vmatmul.bf16.gmra.mxu0 %v5246
      %v5341 = vpop.f32.mrf.mxu0
      %v5342 = vadd.f32 0.0, %v5341
      %v5343 = vpop.f32.mrf.mxu0
      %v5344 = vadd.f32 0.0, %v5343
      %5345 = vmatmul.bf16.gmra.mxu0 %v5249
      %v5346 = vpop.f32.mrf.mxu0
      %v5347 = vadd.f32 0.0, %v5346
      %v5348 = vpop.f32.mrf.mxu0
      %v5349 = vadd.f32 0.0, %v5348
      %5350 = vmatmul.bf16.gmra.mxu0 %v5252
      %v5351 = vpop.f32.mrf.mxu0
      %v5352 = vadd.f32 0.0, %v5351
      %v5353 = vpop.f32.mrf.mxu0
      %v5354 = vadd.f32 0.0, %v5353
      %5355 = vdwg.mxu0
      %v5356 = vadd.f32 %v4988, %v5267
      %v5357 = vadd.f32 %v4989, %v5269
      %v5358 = vadd.f32 %v4990, %v5272
      %v5359 = vadd.f32 %v4991, %v5274
      %v5360 = vadd.f32 %v4992, %v5277
      %v5361 = vadd.f32 %v4993, %v5279
      %v5362 = vadd.f32 %v4994, %v5282
      %v5363 = vadd.f32 %v4995, %v5284
      %v5364 = vadd.f32 %v4996, %v5287
      %v5365 = vadd.f32 %v4997, %v5289
      %v5366 = vadd.f32 %v4998, %v5292
      %v5367 = vadd.f32 %v4999, %v5294
      %v5368 = vadd.f32 %v5000, %v5297
      %v5369 = vadd.f32 %v5001, %v5299
      %v5370 = vadd.f32 %v5002, %v5302
      %v5371 = vadd.f32 %v5003, %v5304
      %v5372 = vadd.f32 %v5004, %v5307
      %v5373 = vadd.f32 %v5005, %v5309
      %v5374 = vadd.f32 %v5006, %v5312
      %v5375 = vadd.f32 %v5007, %v5314
      %v5376 = vadd.f32 %v5008, %v5317
      %v5377 = vadd.f32 %v5009, %v5319
      %v5378 = vadd.f32 %v5010, %v5322
      %v5379 = vadd.f32 %v5011, %v5324
      %v5380 = vadd.f32 %v5012, %v5327
      %v5381 = vadd.f32 %v5013, %v5329
      %v5382 = vadd.f32 %v5014, %v5332
      %v5383 = vadd.f32 %v5015, %v5334
      %v5384 = vadd.f32 %v5016, %v5337
      %v5385 = vadd.f32 %v5017, %v5339
      %v5386 = vadd.f32 %v5018, %v5342
      %v5387 = vadd.f32 %v5019, %v5344
      %v5388 = vadd.f32 %v5020, %v5347
      %v5389 = vadd.f32 %v5021, %v5349
      %v5390 = vadd.f32 %v5022, %v5352
      %v5391 = vadd.f32 %v5023, %v5354
      %v5392 = vld [vmem:[#allocation2 + $0x8] sm:$0xc]
      %s5393 = scalar_lea.vmem %s3, 20
      %v5394 = vld [vmem:[%s5393] sm:$0xf]
      %v5396 = vunpack.c.l.b16 %v5392
      %v5397 = vpack.c.b16 %v4740, %v5396
      %v5398 = vrot.slane %v5397, 2
      %v5399 = vrot.slane %v4777, 2
      %v5400 = vsel %vm1839, %v5398, %v5399
      %v5401 = vrot.slane %v4778, 2
      %v5402 = vsel %vm1839, %v5399, %v5401
      %v5403 = vrot.slane %v4779, 2
      %v5404 = vsel %vm1839, %v5401, %v5403
      %v5405 = vrot.slane %v4780, 2
      %v5406 = vsel %vm1839, %v5403, %v5405
      %v5407 = vrot.slane %v4781, 2
      %v5408 = vsel %vm1839, %v5405, %v5407
      %v5409 = vrot.slane %v4782, 2
      %v5410 = vsel %vm1839, %v5407, %v5409
      %v5411 = vrot.slane %v4783, 2
      %v5412 = vsel %vm1839, %v5409, %v5411
      %v5413 = vrot.slane %v4784, 2
      %v5414 = vsel %vm1839, %v5411, %v5413
      %v5415 = vrot.slane %v4785, 2
      %v5416 = vsel %vm1839, %v5413, %v5415
      %v5417 = vrot.slane %v4786, 2
      %v5418 = vsel %vm1839, %v5415, %v5417
      %v5419 = vrot.slane %v4787, 2
      %v5420 = vsel %vm1839, %v5417, %v5419
      %v5421 = vrot.slane %v4788, 2
      %v5422 = vsel %vm1839, %v5419, %v5421
      %v5423 = vrot.slane %v4789, 2
      %v5424 = vsel %vm1839, %v5421, %v5423
      %v5425 = vrot.slane %v4790, 2
      %v5426 = vsel %vm1839, %v5423, %v5425
      %v5427 = vrot.slane %v4791, 2
      %v5428 = vsel %vm1839, %v5425, %v5427
      %v5429 = vrot.slane %v4792, 2
      %v5430 = vsel %vm1839, %v5427, %v5429
      %v5431 = vrot.slane %v4793, 2
      %v5432 = vsel %vm1839, %v5429, %v5431
      %v5433 = vrot.slane %v5029, 2
      %v5434 = vsel %vm1839, %v5431, %v5433
      %v5436 = vsel %vm571, %v5400, 0
      %v5439 = vsel %vm571, %v5402, 0
      %v5442 = vsel %vm571, %v5404, 0
      %v5445 = vsel %vm571, %v5406, 0
      %v5448 = vsel %vm571, %v5408, 0
      %v5451 = vsel %vm571, %v5410, 0
      %v5454 = vsel %vm571, %v5412, 0
      %v5457 = vsel %vm571, %v5414, 0
      %v5460 = vsel %vm571, %v5416, 0
      %v5463 = vsel %vm571, %v5418, 0
      %v5466 = vsel %vm571, %v5420, 0
      %v5469 = vsel %vm571, %v5422, 0
      %v5472 = vsel %vm571, %v5424, 0
      %v5475 = vsel %vm571, %v5426, 0
      %v5478 = vsel %vm571, %v5428, 0
      %v5481 = vsel %vm571, %v5430, 0
      %v5484 = vsel %vm571, %v5432, 0
      %v5487 = vsel %vm571, %v5434, 0
      %v5490 = vsel %vm626, %v5394, 0
      %5492 = vmatpush.bf16.msra.mxu0 0
      %5493 = vmatpush.bf16.msra.mxu0 0
      %5494 = vmatpush.bf16.msra.mxu0 0
      %5495 = vmatpush.bf16.msra.mxu0 0
      %5496 = vmatpush.bf16.msra.mxu0 0
      %5497 = vmatpush.bf16.msra.mxu0 0
      %5498 = vmatpush.bf16.msra.mxu0 0
      %5499 = vmatpush.bf16.msra.mxu0 %v5490
      %5500 = vmatmul.bf16.gmra.mxu0 %v5436
      %v5501 = vpop.f32.mrf.mxu0
      %v5502 = vadd.f32 0.0, %v5501
      %v5503 = vpop.f32.mrf.mxu0
      %v5504 = vadd.f32 0.0, %v5503
      %5505 = vmatmul.bf16.gmra.mxu0 %v5439
      %v5506 = vpop.f32.mrf.mxu0
      %v5507 = vadd.f32 0.0, %v5506
      %v5508 = vpop.f32.mrf.mxu0
      %v5509 = vadd.f32 0.0, %v5508
      %5510 = vmatmul.bf16.gmra.mxu0 %v5442
      %v5511 = vpop.f32.mrf.mxu0
      %v5512 = vadd.f32 0.0, %v5511
      %v5513 = vpop.f32.mrf.mxu0
      %v5514 = vadd.f32 0.0, %v5513
      %5515 = vmatmul.bf16.gmra.mxu0 %v5445
      %v5516 = vpop.f32.mrf.mxu0
      %v5517 = vadd.f32 0.0, %v5516
      %v5518 = vpop.f32.mrf.mxu0
      %v5519 = vadd.f32 0.0, %v5518
      %5520 = vmatmul.bf16.gmra.mxu0 %v5448
      %v5521 = vpop.f32.mrf.mxu0
      %v5522 = vadd.f32 0.0, %v5521
      %v5523 = vpop.f32.mrf.mxu0
      %v5524 = vadd.f32 0.0, %v5523
      %5525 = vmatmul.bf16.gmra.mxu0 %v5451
      %v5526 = vpop.f32.mrf.mxu0
      %v5527 = vadd.f32 0.0, %v5526
      %v5528 = vpop.f32.mrf.mxu0
      %v5529 = vadd.f32 0.0, %v5528
      %5530 = vmatmul.bf16.gmra.mxu0 %v5454
      %v5531 = vpop.f32.mrf.mxu0
      %v5532 = vadd.f32 0.0, %v5531
      %v5533 = vpop.f32.mrf.mxu0
      %v5534 = vadd.f32 0.0, %v5533
      %5535 = vmatmul.bf16.gmra.mxu0 %v5457
      %v5536 = vpop.f32.mrf.mxu0
      %v5537 = vadd.f32 0.0, %v5536
      %v5538 = vpop.f32.mrf.mxu0
      %v5539 = vadd.f32 0.0, %v5538
      %5540 = vmatmul.bf16.gmra.mxu0 %v5460
      %v5541 = vpop.f32.mrf.mxu0
      %v5542 = vadd.f32 0.0, %v5541
      %v5543 = vpop.f32.mrf.mxu0
      %v5544 = vadd.f32 0.0, %v5543
      %5545 = vmatmul.bf16.gmra.mxu0 %v5463
      %v5546 = vpop.f32.mrf.mxu0
      %v5547 = vadd.f32 0.0, %v5546
      %v5548 = vpop.f32.mrf.mxu0
      %v5549 = vadd.f32 0.0, %v5548
      %5550 = vmatmul.bf16.gmra.mxu0 %v5466
      %v5551 = vpop.f32.mrf.mxu0
      %v5552 = vadd.f32 0.0, %v5551
      %v5553 = vpop.f32.mrf.mxu0
      %v5554 = vadd.f32 0.0, %v5553
      %5555 = vmatmul.bf16.gmra.mxu0 %v5469
      %v5556 = vpop.f32.mrf.mxu0
      %v5557 = vadd.f32 0.0, %v5556
      %v5558 = vpop.f32.mrf.mxu0
      %v5559 = vadd.f32 0.0, %v5558
      %5560 = vmatmul.bf16.gmra.mxu0 %v5472
      %v5561 = vpop.f32.mrf.mxu0
      %v5562 = vadd.f32 0.0, %v5561
      %v5563 = vpop.f32.mrf.mxu0
      %v5564 = vadd.f32 0.0, %v5563
      %5565 = vmatmul.bf16.gmra.mxu0 %v5475
      %v5566 = vpop.f32.mrf.mxu0
      %v5567 = vadd.f32 0.0, %v5566
      %v5568 = vpop.f32.mrf.mxu0
      %v5569 = vadd.f32 0.0, %v5568
      %5570 = vmatmul.bf16.gmra.mxu0 %v5478
      %v5571 = vpop.f32.mrf.mxu0
      %v5572 = vadd.f32 0.0, %v5571
      %v5573 = vpop.f32.mrf.mxu0
      %v5574 = vadd.f32 0.0, %v5573
      %5575 = vmatmul.bf16.gmra.mxu0 %v5481
      %v5576 = vpop.f32.mrf.mxu0
      %v5577 = vadd.f32 0.0, %v5576
      %v5578 = vpop.f32.mrf.mxu0
      %v5579 = vadd.f32 0.0, %v5578
      %5580 = vmatmul.bf16.gmra.mxu0 %v5484
      %v5581 = vpop.f32.mrf.mxu0
      %v5582 = vadd.f32 0.0, %v5581
      %v5583 = vpop.f32.mrf.mxu0
      %v5584 = vadd.f32 0.0, %v5583
      %5585 = vmatmul.bf16.gmra.mxu0 %v5487
      %v5586 = vpop.f32.mrf.mxu0
      %v5587 = vadd.f32 0.0, %v5586
      %v5588 = vpop.f32.mrf.mxu0
      %v5589 = vadd.f32 0.0, %v5588
      %5590 = vdwg.mxu0
      %v5591 = vadd.f32 %v5356, %v5502
      %v5592 = vadd.f32 %v5357, %v5504
      %v5593 = vadd.f32 %v5358, %v5507
      %v5594 = vadd.f32 %v5359, %v5509
      %v5595 = vadd.f32 %v5360, %v5512
      %v5596 = vadd.f32 %v5361, %v5514
      %v5597 = vadd.f32 %v5362, %v5517
      %v5598 = vadd.f32 %v5363, %v5519
      %v5599 = vadd.f32 %v5364, %v5522
      %v5600 = vadd.f32 %v5365, %v5524
      %v5601 = vadd.f32 %v5366, %v5527
      %v5602 = vadd.f32 %v5367, %v5529
      %v5603 = vadd.f32 %v5368, %v5532
      %v5604 = vadd.f32 %v5369, %v5534
      %v5605 = vadd.f32 %v5370, %v5537
      %v5606 = vadd.f32 %v5371, %v5539
      %v5607 = vadd.f32 %v5372, %v5542
      %v5608 = vadd.f32 %v5373, %v5544
      %v5609 = vadd.f32 %v5374, %v5547
      %v5610 = vadd.f32 %v5375, %v5549
      %v5611 = vadd.f32 %v5376, %v5552
      %v5612 = vadd.f32 %v5377, %v5554
      %v5613 = vadd.f32 %v5378, %v5557
      %v5614 = vadd.f32 %v5379, %v5559
      %v5615 = vadd.f32 %v5380, %v5562
      %v5616 = vadd.f32 %v5381, %v5564
      %v5617 = vadd.f32 %v5382, %v5567
      %v5618 = vadd.f32 %v5383, %v5569
      %v5619 = vadd.f32 %v5384, %v5572
      %v5620 = vadd.f32 %v5385, %v5574
      %v5621 = vadd.f32 %v5386, %v5577
      %v5622 = vadd.f32 %v5387, %v5579
      %v5623 = vadd.f32 %v5388, %v5582
      %v5624 = vadd.f32 %v5389, %v5584
      %v5625 = vadd.f32 %v5390, %v5587
      %v5626 = vadd.f32 %v5391, %v5589
      %v5627 = vld [vmem:[#allocation2 + $0x10] sm:$0xc]
      %v5628 = vld [vmem:[#allocation2 + $0x14] sm:$0xf]
      %v5629 = vld [vmem:[#allocation2 + $0x18] sm:$0xf]
      %v5630 = vld [vmem:[#allocation2 + $0x1c] sm:$0xf]
      %v5631 = vld [vmem:[#allocation2 + $0x20] sm:$0xf]
      %v5632 = vld [vmem:[#allocation2 + $0x24] sm:$0xf]
      %v5633 = vld [vmem:[#allocation2 + $0x28] sm:$0xf]
      %v5634 = vld [vmem:[#allocation2 + $0x2c] sm:$0xf]
      %v5635 = vld [vmem:[#allocation2 + $0x30] sm:$0xf]
      %v5636 = vld [vmem:[#allocation2 + $0x34] sm:$0xf]
      %v5637 = vld [vmem:[#allocation2 + $0x38] sm:$0xf]
      %v5638 = vld [vmem:[#allocation2 + $0x3c] sm:$0xf]
      %v5639 = vld [vmem:[#allocation2 + $0x40] sm:$0xf]
      %v5640 = vld [vmem:[#allocation2 + $0x44] sm:$0xf]
      %v5641 = vld [vmem:[#allocation2 + $0x48] sm:$0xf]
      %v5642 = vld [vmem:[#allocation2 + $0x4c] sm:$0xf]
      %v5643 = vld [vmem:[#allocation2 + $0x50] sm:$0xf]
      %v5644 = vld [vmem:[#allocation2 + $0x54] sm:$0xf]
      %v5645 = vld [vmem:[#allocation2 + $0x58] sm:$0xf]
      %v5646 = vld [vmem:[#allocation2 + $0x5c] sm:$0xf]
      %v5647 = vld [vmem:[#allocation2 + $0x60] sm:$0xf]
      %v5648 = vld [vmem:[#allocation2 + $0x64] sm:$0xf]
      %v5649 = vld [vmem:[#allocation2 + $0x68] sm:$0xf]
      %v5650 = vld [vmem:[#allocation2 + $0x6c] sm:$0xf]
      %v5651 = vld [vmem:[#allocation2 + $0x70] sm:$0xf]
      %v5652 = vld [vmem:[#allocation2 + $0x74] sm:$0xf]
      %v5653 = vld [vmem:[#allocation2 + $0x78] sm:$0xf]
      %v5654 = vld [vmem:[#allocation2 + $0x7c] sm:$0xf]
      %v5655 = vld [vmem:[#allocation2 + $0x80] sm:$0xf]
      %v5656 = vld [vmem:[#allocation2 + $0x84] sm:$0xf]
      %v5657 = vld [vmem:[#allocation2 + $0x88] sm:$0xf]
      %v5658 = vld [vmem:[#allocation2 + $0x8c] sm:$0xf]
      %v5659 = vld [vmem:[#allocation2 + $0x90] sm:$0xf]
      %v5660 = vld [vmem:[#allocation2 + $0x94] sm:$0xf]
      %v5661 = vld [vmem:[#allocation2 + $0x98] sm:$0xf]
      %v5662 = vld [vmem:[#allocation2 + $0x9c] sm:$0xf]
      %v5663 = vld [vmem:[#allocation2 + $0xa0] sm:$0x3]
      %s5664 = scalar_lea.vmem %s3, 24
      %v5665 = vld [vmem:[%s5664] sm:$0xf]
      %v5703 = vunpack.c.l.b16 %v5627
      %v5704 = vunpack.c.l.b16 %v5628
      %v5705 = vunpack.c.l.b16 %v5629
      %v5706 = vunpack.c.l.b16 %v5630
      %v5707 = vunpack.c.l.b16 %v5631
      %v5708 = vunpack.c.l.b16 %v5632
      %v5709 = vunpack.c.l.b16 %v5633
      %v5710 = vunpack.c.l.b16 %v5634
      %v5711 = vunpack.c.l.b16 %v5635
      %v5712 = vunpack.c.l.b16 %v5636
      %v5713 = vunpack.c.l.b16 %v5637
      %v5714 = vunpack.c.l.b16 %v5638
      %v5715 = vunpack.c.l.b16 %v5639
      %v5716 = vunpack.c.l.b16 %v5640
      %v5717 = vunpack.c.l.b16 %v5641
      %v5718 = vunpack.c.l.b16 %v5642
      %v5719 = vunpack.c.l.b16 %v5643
      %v5720 = vunpack.c.l.b16 %v5644
      %v5721 = vunpack.c.l.b16 %v5645
      %v5722 = vunpack.c.l.b16 %v5646
      %v5723 = vunpack.c.l.b16 %v5647
      %v5724 = vunpack.c.l.b16 %v5648
      %v5725 = vunpack.c.l.b16 %v5649
      %v5726 = vunpack.c.l.b16 %v5650
      %v5727 = vunpack.c.l.b16 %v5651
      %v5728 = vunpack.c.l.b16 %v5652
      %v5729 = vunpack.c.l.b16 %v5653
      %v5730 = vunpack.c.l.b16 %v5654
      %v5731 = vunpack.c.l.b16 %v5655
      %v5732 = vunpack.c.l.b16 %v5656
      %v5733 = vunpack.c.l.b16 %v5657
      %v5734 = vunpack.c.l.b16 %v5658
      %v5735 = vunpack.c.l.b16 %v5659
      %v5736 = vunpack.c.l.b16 %v5660
      %v5737 = vunpack.c.l.b16 %v5661
      %v5738 = vunpack.c.l.b16 %v5662
      %v5739 = vunpack.c.l.b16 %v5663
      %v5740 = vpack.c.b16 %v5704, %v5703
      %v5741 = vpack.c.b16 %v5706, %v5705
      %v5742 = vpack.c.b16 %v5708, %v5707
      %v5743 = vpack.c.b16 %v5710, %v5709
      %v5744 = vpack.c.b16 %v5712, %v5711
      %v5745 = vpack.c.b16 %v5714, %v5713
      %v5746 = vpack.c.b16 %v5716, %v5715
      %v5747 = vpack.c.b16 %v5718, %v5717
      %v5748 = vpack.c.b16 %v5720, %v5719
      %v5749 = vpack.c.b16 %v5722, %v5721
      %v5750 = vpack.c.b16 %v5724, %v5723
      %v5751 = vpack.c.b16 %v5726, %v5725
      %v5752 = vpack.c.b16 %v5728, %v5727
      %v5753 = vpack.c.b16 %v5730, %v5729
      %v5754 = vpack.c.b16 %v5732, %v5731
      %v5755 = vpack.c.b16 %v5734, %v5733
      %v5756 = vpack.c.b16 %v5736, %v5735
      %v5757 = vpack.c.b16 %v5738, %v5737
      %v5758 = vpack.c.b16 %v5739, %v5739
      %v5759 = vrot.slane %v5740, 2
      %v5760 = vrot.slane %v5741, 2
      %v5761 = vsel %vm1839, %v5759, %v5760
      %v5762 = vrot.slane %v5742, 2
      %v5763 = vsel %vm1839, %v5760, %v5762
      %v5764 = vrot.slane %v5743, 2
      %v5765 = vsel %vm1839, %v5762, %v5764
      %v5766 = vrot.slane %v5744, 2
      %v5767 = vsel %vm1839, %v5764, %v5766
      %v5768 = vrot.slane %v5745, 2
      %v5769 = vsel %vm1839, %v5766, %v5768
      %v5770 = vrot.slane %v5746, 2
      %v5771 = vsel %vm1839, %v5768, %v5770
      %v5772 = vrot.slane %v5747, 2
      %v5773 = vsel %vm1839, %v5770, %v5772
      %v5774 = vrot.slane %v5748, 2
      %v5775 = vsel %vm1839, %v5772, %v5774
      %v5776 = vrot.slane %v5749, 2
      %v5777 = vsel %vm1839, %v5774, %v5776
      %v5778 = vrot.slane %v5750, 2
      %v5779 = vsel %vm1839, %v5776, %v5778
      %v5780 = vrot.slane %v5751, 2
      %v5781 = vsel %vm1839, %v5778, %v5780
      %v5782 = vrot.slane %v5752, 2
      %v5783 = vsel %vm1839, %v5780, %v5782
      %v5784 = vrot.slane %v5753, 2
      %v5785 = vsel %vm1839, %v5782, %v5784
      %v5786 = vrot.slane %v5754, 2
      %v5787 = vsel %vm1839, %v5784, %v5786
      %v5788 = vrot.slane %v5755, 2
      %v5789 = vsel %vm1839, %v5786, %v5788
      %v5790 = vrot.slane %v5756, 2
      %v5791 = vsel %vm1839, %v5788, %v5790
      %v5792 = vrot.slane %v5757, 2
      %v5793 = vsel %vm1839, %v5790, %v5792
      %v5794 = vrot.slane %v5758, 2
      %v5795 = vsel %vm1839, %v5792, %v5794
      %v5797 = vsel %vm571, %v5761, 0
      %v5800 = vsel %vm571, %v5763, 0
      %v5803 = vsel %vm571, %v5765, 0
      %v5806 = vsel %vm571, %v5767, 0
      %v5809 = vsel %vm571, %v5769, 0
      %v5812 = vsel %vm571, %v5771, 0
      %v5815 = vsel %vm571, %v5773, 0
      %v5818 = vsel %vm571, %v5775, 0
      %v5821 = vsel %vm571, %v5777, 0
      %v5824 = vsel %vm571, %v5779, 0
      %v5827 = vsel %vm571, %v5781, 0
      %v5830 = vsel %vm571, %v5783, 0
      %v5833 = vsel %vm571, %v5785, 0
      %v5836 = vsel %vm571, %v5787, 0
      %v5839 = vsel %vm571, %v5789, 0
      %v5842 = vsel %vm571, %v5791, 0
      %v5845 = vsel %vm571, %v5793, 0
      %v5848 = vsel %vm571, %v5795, 0
      %v5851 = vsel %vm626, %v5665, 0
      %5853 = vmatpush.bf16.msra.mxu0 0
      %5854 = vmatpush.bf16.msra.mxu0 0
      %5855 = vmatpush.bf16.msra.mxu0 0
      %5856 = vmatpush.bf16.msra.mxu0 0
      %5857 = vmatpush.bf16.msra.mxu0 0
      %5858 = vmatpush.bf16.msra.mxu0 0
      %5859 = vmatpush.bf16.msra.mxu0 0
      %5860 = vmatpush.bf16.msra.mxu0 %v5851
      %5861 = vmatmul.bf16.gmra.mxu0 %v5797
      %v5862 = vpop.f32.mrf.mxu0
      %v5863 = vadd.f32 0.0, %v5862
      %v5864 = vpop.f32.mrf.mxu0
      %v5865 = vadd.f32 0.0, %v5864
      %5866 = vmatmul.bf16.gmra.mxu0 %v5800
      %v5867 = vpop.f32.mrf.mxu0
      %v5868 = vadd.f32 0.0, %v5867
      %v5869 = vpop.f32.mrf.mxu0
      %v5870 = vadd.f32 0.0, %v5869
      %5871 = vmatmul.bf16.gmra.mxu0 %v5803
      %v5872 = vpop.f32.mrf.mxu0
      %v5873 = vadd.f32 0.0, %v5872
      %v5874 = vpop.f32.mrf.mxu0
      %v5875 = vadd.f32 0.0, %v5874
      %5876 = vmatmul.bf16.gmra.mxu0 %v5806
      %v5877 = vpop.f32.mrf.mxu0
      %v5878 = vadd.f32 0.0, %v5877
      %v5879 = vpop.f32.mrf.mxu0
      %v5880 = vadd.f32 0.0, %v5879
      %5881 = vmatmul.bf16.gmra.mxu0 %v5809
      %v5882 = vpop.f32.mrf.mxu0
      %v5883 = vadd.f32 0.0, %v5882
      %v5884 = vpop.f32.mrf.mxu0
      %v5885 = vadd.f32 0.0, %v5884
      %5886 = vmatmul.bf16.gmra.mxu0 %v5812
      %v5887 = vpop.f32.mrf.mxu0
      %v5888 = vadd.f32 0.0, %v5887
      %v5889 = vpop.f32.mrf.mxu0
      %v5890 = vadd.f32 0.0, %v5889
      %5891 = vmatmul.bf16.gmra.mxu0 %v5815
      %v5892 = vpop.f32.mrf.mxu0
      %v5893 = vadd.f32 0.0, %v5892
      %v5894 = vpop.f32.mrf.mxu0
      %v5895 = vadd.f32 0.0, %v5894
      %5896 = vmatmul.bf16.gmra.mxu0 %v5818
      %v5897 = vpop.f32.mrf.mxu0
      %v5898 = vadd.f32 0.0, %v5897
      %v5899 = vpop.f32.mrf.mxu0
      %v5900 = vadd.f32 0.0, %v5899
      %5901 = vmatmul.bf16.gmra.mxu0 %v5821
      %v5902 = vpop.f32.mrf.mxu0
      %v5903 = vadd.f32 0.0, %v5902
      %v5904 = vpop.f32.mrf.mxu0
      %v5905 = vadd.f32 0.0, %v5904
      %5906 = vmatmul.bf16.gmra.mxu0 %v5824
      %v5907 = vpop.f32.mrf.mxu0
      %v5908 = vadd.f32 0.0, %v5907
      %v5909 = vpop.f32.mrf.mxu0
      %v5910 = vadd.f32 0.0, %v5909
      %5911 = vmatmul.bf16.gmra.mxu0 %v5827
      %v5912 = vpop.f32.mrf.mxu0
      %v5913 = vadd.f32 0.0, %v5912
      %v5914 = vpop.f32.mrf.mxu0
      %v5915 = vadd.f32 0.0, %v5914
      %5916 = vmatmul.bf16.gmra.mxu0 %v5830
      %v5917 = vpop.f32.mrf.mxu0
      %v5918 = vadd.f32 0.0, %v5917
      %v5919 = vpop.f32.mrf.mxu0
      %v5920 = vadd.f32 0.0, %v5919
      %5921 = vmatmul.bf16.gmra.mxu0 %v5833
      %v5922 = vpop.f32.mrf.mxu0
      %v5923 = vadd.f32 0.0, %v5922
      %v5924 = vpop.f32.mrf.mxu0
      %v5925 = vadd.f32 0.0, %v5924
      %5926 = vmatmul.bf16.gmra.mxu0 %v5836
      %v5927 = vpop.f32.mrf.mxu0
      %v5928 = vadd.f32 0.0, %v5927
      %v5929 = vpop.f32.mrf.mxu0
      %v5930 = vadd.f32 0.0, %v5929
      %5931 = vmatmul.bf16.gmra.mxu0 %v5839
      %v5932 = vpop.f32.mrf.mxu0
      %v5933 = vadd.f32 0.0, %v5932
      %v5934 = vpop.f32.mrf.mxu0
      %v5935 = vadd.f32 0.0, %v5934
      %5936 = vmatmul.bf16.gmra.mxu0 %v5842
      %v5937 = vpop.f32.mrf.mxu0
      %v5938 = vadd.f32 0.0, %v5937
      %v5939 = vpop.f32.mrf.mxu0
      %v5940 = vadd.f32 0.0, %v5939
      %5941 = vmatmul.bf16.gmra.mxu0 %v5845
      %v5942 = vpop.f32.mrf.mxu0
      %v5943 = vadd.f32 0.0, %v5942
      %v5944 = vpop.f32.mrf.mxu0
      %v5945 = vadd.f32 0.0, %v5944
      %5946 = vmatmul.bf16.gmra.mxu0 %v5848
      %v5947 = vpop.f32.mrf.mxu0
      %v5948 = vadd.f32 0.0, %v5947
      %v5949 = vpop.f32.mrf.mxu0
      %v5950 = vadd.f32 0.0, %v5949
      %5951 = vdwg.mxu0
      %v5952 = vadd.f32 %v5591, %v5863
      %v5953 = vadd.f32 %v5592, %v5865
      %v5954 = vadd.f32 %v5593, %v5868
      %v5955 = vadd.f32 %v5594, %v5870
      %v5956 = vadd.f32 %v5595, %v5873
      %v5957 = vadd.f32 %v5596, %v5875
      %v5958 = vadd.f32 %v5597, %v5878
      %v5959 = vadd.f32 %v5598, %v5880
      %v5960 = vadd.f32 %v5599, %v5883
      %v5961 = vadd.f32 %v5600, %v5885
      %v5962 = vadd.f32 %v5601, %v5888
      %v5963 = vadd.f32 %v5602, %v5890
      %v5964 = vadd.f32 %v5603, %v5893
      %v5965 = vadd.f32 %v5604, %v5895
      %v5966 = vadd.f32 %v5605, %v5898
      %v5967 = vadd.f32 %v5606, %v5900
      %v5968 = vadd.f32 %v5607, %v5903
      %v5969 = vadd.f32 %v5608, %v5905
      %v5970 = vadd.f32 %v5609, %v5908
      %v5971 = vadd.f32 %v5610, %v5910
      %v5972 = vadd.f32 %v5611, %v5913
      %v5973 = vadd.f32 %v5612, %v5915
      %v5974 = vadd.f32 %v5613, %v5918
      %v5975 = vadd.f32 %v5614, %v5920
      %v5976 = vadd.f32 %v5615, %v5923
      %v5977 = vadd.f32 %v5616, %v5925
      %v5978 = vadd.f32 %v5617, %v5928
      %v5979 = vadd.f32 %v5618, %v5930
      %v5980 = vadd.f32 %v5619, %v5933
      %v5981 = vadd.f32 %v5620, %v5935
      %v5982 = vadd.f32 %v5621, %v5938
      %v5983 = vadd.f32 %v5622, %v5940
      %v5984 = vadd.f32 %v5623, %v5943
      %v5985 = vadd.f32 %v5624, %v5945
      %v5986 = vadd.f32 %v5625, %v5948
      %v5987 = vadd.f32 %v5626, %v5950
      %v5988 = vld [vmem:[#allocation2 + $0xa0] sm:$0x7]
      %s5989 = scalar_lea.vmem %s3, 28
      %v5990 = vld [vmem:[%s5989] sm:$0xf]
      %v5992 = vunpack.c.l.b16 %v5988
      %v5993 = vpack.c.b16 %v5992, %v5992
      %v5995 = vshrl.u32 %v5740, 16
      %v5997 = vrot.slane %v5995, 2
      %v5998 = vshll.u32 %v5740, 16
      %v6000 = vrot.slane %v5998, 3
      %v6001 = vor.u32 %v5997, %v6000
      %v6003 = vshrl.u32 %v5741, 16
      %v6005 = vrot.slane %v6003, 2
      %v6006 = vshll.u32 %v5741, 16
      %v6008 = vrot.slane %v6006, 3
      %v6009 = vor.u32 %v6005, %v6008
      %v6010 = vsel %vm2436, %v6001, %v6009
      %v6012 = vshrl.u32 %v5742, 16
      %v6014 = vrot.slane %v6012, 2
      %v6015 = vshll.u32 %v5742, 16
      %v6017 = vrot.slane %v6015, 3
      %v6018 = vor.u32 %v6014, %v6017
      %v6019 = vsel %vm2436, %v6009, %v6018
      %v6021 = vshrl.u32 %v5743, 16
      %v6023 = vrot.slane %v6021, 2
      %v6024 = vshll.u32 %v5743, 16
      %v6026 = vrot.slane %v6024, 3
      %v6027 = vor.u32 %v6023, %v6026
      %v6028 = vsel %vm2436, %v6018, %v6027
      %v6030 = vshrl.u32 %v5744, 16
      %v6032 = vrot.slane %v6030, 2
      %v6033 = vshll.u32 %v5744, 16
      %v6035 = vrot.slane %v6033, 3
      %v6036 = vor.u32 %v6032, %v6035
      %v6037 = vsel %vm2436, %v6027, %v6036
      %v6039 = vshrl.u32 %v5745, 16
      %v6041 = vrot.slane %v6039, 2
      %v6042 = vshll.u32 %v5745, 16
      %v6044 = vrot.slane %v6042, 3
      %v6045 = vor.u32 %v6041, %v6044
      %v6046 = vsel %vm2436, %v6036, %v6045
      %v6048 = vshrl.u32 %v5746, 16
      %v6050 = vrot.slane %v6048, 2
      %v6051 = vshll.u32 %v5746, 16
      %v6053 = vrot.slane %v6051, 3
      %v6054 = vor.u32 %v6050, %v6053
      %v6055 = vsel %vm2436, %v6045, %v6054
      %v6057 = vshrl.u32 %v5747, 16
      %v6059 = vrot.slane %v6057, 2
      %v6060 = vshll.u32 %v5747, 16
      %v6062 = vrot.slane %v6060, 3
      %v6063 = vor.u32 %v6059, %v6062
      %v6064 = vsel %vm2436, %v6054, %v6063
      %v6066 = vshrl.u32 %v5748, 16
      %v6068 = vrot.slane %v6066, 2
      %v6069 = vshll.u32 %v5748, 16
      %v6071 = vrot.slane %v6069, 3
      %v6072 = vor.u32 %v6068, %v6071
      %v6073 = vsel %vm2436, %v6063, %v6072
      %v6075 = vshrl.u32 %v5749, 16
      %v6077 = vrot.slane %v6075, 2
      %v6078 = vshll.u32 %v5749, 16
      %v6080 = vrot.slane %v6078, 3
      %v6081 = vor.u32 %v6077, %v6080
      %v6082 = vsel %vm2436, %v6072, %v6081
      %v6084 = vshrl.u32 %v5750, 16
      %v6086 = vrot.slane %v6084, 2
      %v6087 = vshll.u32 %v5750, 16
      %v6089 = vrot.slane %v6087, 3
      %v6090 = vor.u32 %v6086, %v6089
      %v6091 = vsel %vm2436, %v6081, %v6090
      %v6093 = vshrl.u32 %v5751, 16
      %v6095 = vrot.slane %v6093, 2
      %v6096 = vshll.u32 %v5751, 16
      %v6098 = vrot.slane %v6096, 3
      %v6099 = vor.u32 %v6095, %v6098
      %v6100 = vsel %vm2436, %v6090, %v6099
      %v6102 = vshrl.u32 %v5752, 16
      %v6104 = vrot.slane %v6102, 2
      %v6105 = vshll.u32 %v5752, 16
      %v6107 = vrot.slane %v6105, 3
      %v6108 = vor.u32 %v6104, %v6107
      %v6109 = vsel %vm2436, %v6099, %v6108
      %v6111 = vshrl.u32 %v5753, 16
      %v6113 = vrot.slane %v6111, 2
      %v6114 = vshll.u32 %v5753, 16
      %v6116 = vrot.slane %v6114, 3
      %v6117 = vor.u32 %v6113, %v6116
      %v6118 = vsel %vm2436, %v6108, %v6117
      %v6120 = vshrl.u32 %v5754, 16
      %v6122 = vrot.slane %v6120, 2
      %v6123 = vshll.u32 %v5754, 16
      %v6125 = vrot.slane %v6123, 3
      %v6126 = vor.u32 %v6122, %v6125
      %v6127 = vsel %vm2436, %v6117, %v6126
      %v6129 = vshrl.u32 %v5755, 16
      %v6131 = vrot.slane %v6129, 2
      %v6132 = vshll.u32 %v5755, 16
      %v6134 = vrot.slane %v6132, 3
      %v6135 = vor.u32 %v6131, %v6134
      %v6136 = vsel %vm2436, %v6126, %v6135
      %v6138 = vshrl.u32 %v5756, 16
      %v6140 = vrot.slane %v6138, 2
      %v6141 = vshll.u32 %v5756, 16
      %v6143 = vrot.slane %v6141, 3
      %v6144 = vor.u32 %v6140, %v6143
      %v6145 = vsel %vm2436, %v6135, %v6144
      %v6147 = vshrl.u32 %v5757, 16
      %v6149 = vrot.slane %v6147, 2
      %v6150 = vshll.u32 %v5757, 16
      %v6152 = vrot.slane %v6150, 3
      %v6153 = vor.u32 %v6149, %v6152
      %v6154 = vsel %vm2436, %v6144, %v6153
      %v6156 = vshrl.u32 %v5993, 16
      %v6158 = vrot.slane %v6156, 2
      %v6159 = vshll.u32 %v5993, 16
      %v6161 = vrot.slane %v6159, 3
      %v6162 = vor.u32 %v6158, %v6161
      %v6163 = vsel %vm2436, %v6153, %v6162
      %v6165 = vsel %vm571, %v6010, 0
      %v6168 = vsel %vm571, %v6019, 0
      %v6171 = vsel %vm571, %v6028, 0
      %v6174 = vsel %vm571, %v6037, 0
      %v6177 = vsel %vm571, %v6046, 0
      %v6180 = vsel %vm571, %v6055, 0
      %v6183 = vsel %vm571, %v6064, 0
      %v6186 = vsel %vm571, %v6073, 0
      %v6189 = vsel %vm571, %v6082, 0
      %v6192 = vsel %vm571, %v6091, 0
      %v6195 = vsel %vm571, %v6100, 0
      %v6198 = vsel %vm571, %v6109, 0
      %v6201 = vsel %vm571, %v6118, 0
      %v6204 = vsel %vm571, %v6127, 0
      %v6207 = vsel %vm571, %v6136, 0
      %v6210 = vsel %vm571, %v6145, 0
      %v6213 = vsel %vm571, %v6154, 0
      %v6216 = vsel %vm571, %v6163, 0
      %v6219 = vsel %vm626, %v5990, 0
      %6221 = vmatpush.bf16.msra.mxu0 0
      %6222 = vmatpush.bf16.msra.mxu0 0
      %6223 = vmatpush.bf16.msra.mxu0 0
      %6224 = vmatpush.bf16.msra.mxu0 0
      %6225 = vmatpush.bf16.msra.mxu0 0
      %6226 = vmatpush.bf16.msra.mxu0 0
      %6227 = vmatpush.bf16.msra.mxu0 0
      %6228 = vmatpush.bf16.msra.mxu0 %v6219
      %6229 = vmatmul.bf16.gmra.mxu0 %v6165
      %v6230 = vpop.f32.mrf.mxu0
      %v6231 = vadd.f32 0.0, %v6230
      %v6232 = vpop.f32.mrf.mxu0
      %v6233 = vadd.f32 0.0, %v6232
      %6234 = vmatmul.bf16.gmra.mxu0 %v6168
      %v6235 = vpop.f32.mrf.mxu0
      %v6236 = vadd.f32 0.0, %v6235
      %v6237 = vpop.f32.mrf.mxu0
      %v6238 = vadd.f32 0.0, %v6237
      %6239 = vmatmul.bf16.gmra.mxu0 %v6171
      %v6240 = vpop.f32.mrf.mxu0
      %v6241 = vadd.f32 0.0, %v6240
      %v6242 = vpop.f32.mrf.mxu0
      %v6243 = vadd.f32 0.0, %v6242
      %6244 = vmatmul.bf16.gmra.mxu0 %v6174
      %v6245 = vpop.f32.mrf.mxu0
      %v6246 = vadd.f32 0.0, %v6245
      %v6247 = vpop.f32.mrf.mxu0
      %v6248 = vadd.f32 0.0, %v6247
      %6249 = vmatmul.bf16.gmra.mxu0 %v6177
      %v6250 = vpop.f32.mrf.mxu0
      %v6251 = vadd.f32 0.0, %v6250
      %v6252 = vpop.f32.mrf.mxu0
      %v6253 = vadd.f32 0.0, %v6252
      %6254 = vmatmul.bf16.gmra.mxu0 %v6180
      %v6255 = vpop.f32.mrf.mxu0
      %v6256 = vadd.f32 0.0, %v6255
      %v6257 = vpop.f32.mrf.mxu0
      %v6258 = vadd.f32 0.0, %v6257
      %6259 = vmatmul.bf16.gmra.mxu0 %v6183
      %v6260 = vpop.f32.mrf.mxu0
      %v6261 = vadd.f32 0.0, %v6260
      %v6262 = vpop.f32.mrf.mxu0
      %v6263 = vadd.f32 0.0, %v6262
      %6264 = vmatmul.bf16.gmra.mxu0 %v6186
      %v6265 = vpop.f32.mrf.mxu0
      %v6266 = vadd.f32 0.0, %v6265
      %v6267 = vpop.f32.mrf.mxu0
      %v6268 = vadd.f32 0.0, %v6267
      %6269 = vmatmul.bf16.gmra.mxu0 %v6189
      %v6270 = vpop.f32.mrf.mxu0
      %v6271 = vadd.f32 0.0, %v6270
      %v6272 = vpop.f32.mrf.mxu0
      %v6273 = vadd.f32 0.0, %v6272
      %6274 = vmatmul.bf16.gmra.mxu0 %v6192
      %v6275 = vpop.f32.mrf.mxu0
      %v6276 = vadd.f32 0.0, %v6275
      %v6277 = vpop.f32.mrf.mxu0
      %v6278 = vadd.f32 0.0, %v6277
      %6279 = vmatmul.bf16.gmra.mxu0 %v6195
      %v6280 = vpop.f32.mrf.mxu0
      %v6281 = vadd.f32 0.0, %v6280
      %v6282 = vpop.f32.mrf.mxu0
      %v6283 = vadd.f32 0.0, %v6282
      %6284 = vmatmul.bf16.gmra.mxu0 %v6198
      %v6285 = vpop.f32.mrf.mxu0
      %v6286 = vadd.f32 0.0, %v6285
      %v6287 = vpop.f32.mrf.mxu0
      %v6288 = vadd.f32 0.0, %v6287
      %6289 = vmatmul.bf16.gmra.mxu0 %v6201
      %v6290 = vpop.f32.mrf.mxu0
      %v6291 = vadd.f32 0.0, %v6290
      %v6292 = vpop.f32.mrf.mxu0
      %v6293 = vadd.f32 0.0, %v6292
      %6294 = vmatmul.bf16.gmra.mxu0 %v6204
      %v6295 = vpop.f32.mrf.mxu0
      %v6296 = vadd.f32 0.0, %v6295
      %v6297 = vpop.f32.mrf.mxu0
      %v6298 = vadd.f32 0.0, %v6297
      %6299 = vmatmul.bf16.gmra.mxu0 %v6207
      %v6300 = vpop.f32.mrf.mxu0
      %v6301 = vadd.f32 0.0, %v6300
      %v6302 = vpop.f32.mrf.mxu0
      %v6303 = vadd.f32 0.0, %v6302
      %6304 = vmatmul.bf16.gmra.mxu0 %v6210
      %v6305 = vpop.f32.mrf.mxu0
      %v6306 = vadd.f32 0.0, %v6305
      %v6307 = vpop.f32.mrf.mxu0
      %v6308 = vadd.f32 0.0, %v6307
      %6309 = vmatmul.bf16.gmra.mxu0 %v6213
      %v6310 = vpop.f32.mrf.mxu0
      %v6311 = vadd.f32 0.0, %v6310
      %v6312 = vpop.f32.mrf.mxu0
      %v6313 = vadd.f32 0.0, %v6312
      %6314 = vmatmul.bf16.gmra.mxu0 %v6216
      %v6315 = vpop.f32.mrf.mxu0
      %v6316 = vadd.f32 0.0, %v6315
      %v6317 = vpop.f32.mrf.mxu0
      %v6318 = vadd.f32 0.0, %v6317
      %6319 = vdwg.mxu0
      %v6320 = vadd.f32 %v5952, %v6231
      %v6321 = vadd.f32 %v5953, %v6233
      %v6322 = vadd.f32 %v5954, %v6236
      %v6323 = vadd.f32 %v5955, %v6238
      %v6324 = vadd.f32 %v5956, %v6241
      %v6325 = vadd.f32 %v5957, %v6243
      %v6326 = vadd.f32 %v5958, %v6246
      %v6327 = vadd.f32 %v5959, %v6248
      %v6328 = vadd.f32 %v5960, %v6251
      %v6329 = vadd.f32 %v5961, %v6253
      %v6330 = vadd.f32 %v5962, %v6256
      %v6331 = vadd.f32 %v5963, %v6258
      %v6332 = vadd.f32 %v5964, %v6261
      %v6333 = vadd.f32 %v5965, %v6263
      %v6334 = vadd.f32 %v5966, %v6266
      %v6335 = vadd.f32 %v5967, %v6268
      %v6336 = vadd.f32 %v5968, %v6271
      %v6337 = vadd.f32 %v5969, %v6273
      %v6338 = vadd.f32 %v5970, %v6276
      %v6339 = vadd.f32 %v5971, %v6278
      %v6340 = vadd.f32 %v5972, %v6281
      %v6341 = vadd.f32 %v5973, %v6283
      %v6342 = vadd.f32 %v5974, %v6286
      %v6343 = vadd.f32 %v5975, %v6288
      %v6344 = vadd.f32 %v5976, %v6291
      %v6345 = vadd.f32 %v5977, %v6293
      %v6346 = vadd.f32 %v5978, %v6296
      %v6347 = vadd.f32 %v5979, %v6298
      %v6348 = vadd.f32 %v5980, %v6301
      %v6349 = vadd.f32 %v5981, %v6303
      %v6350 = vadd.f32 %v5982, %v6306
      %v6351 = vadd.f32 %v5983, %v6308
      %v6352 = vadd.f32 %v5984, %v6311
      %v6353 = vadd.f32 %v5985, %v6313
      %v6354 = vadd.f32 %v5986, %v6316
      %v6355 = vadd.f32 %v5987, %v6318
      %v6356 = vld [vmem:[#allocation2 + $0x10] sm:$0x8]
      %s6357 = scalar_lea.vmem %s3, 32
      %v6358 = vld [vmem:[%s6357] sm:$0xf]
      %v6360 = vunpack.c.l.b16 %v6356
      %v6361 = vpack.c.b16 %v5704, %v6360
      %v6362 = vrot.slane %v6361, 3
      %v6363 = vrot.slane %v5741, 3
      %v6364 = vsel %vm2805, %v6362, %v6363
      %v6365 = vrot.slane %v5742, 3
      %v6366 = vsel %vm2805, %v6363, %v6365
      %v6367 = vrot.slane %v5743, 3
      %v6368 = vsel %vm2805, %v6365, %v6367
      %v6369 = vrot.slane %v5744, 3
      %v6370 = vsel %vm2805, %v6367, %v6369
      %v6371 = vrot.slane %v5745, 3
      %v6372 = vsel %vm2805, %v6369, %v6371
      %v6373 = vrot.slane %v5746, 3
      %v6374 = vsel %vm2805, %v6371, %v6373
      %v6375 = vrot.slane %v5747, 3
      %v6376 = vsel %vm2805, %v6373, %v6375
      %v6377 = vrot.slane %v5748, 3
      %v6378 = vsel %vm2805, %v6375, %v6377
      %v6379 = vrot.slane %v5749, 3
      %v6380 = vsel %vm2805, %v6377, %v6379
      %v6381 = vrot.slane %v5750, 3
      %v6382 = vsel %vm2805, %v6379, %v6381
      %v6383 = vrot.slane %v5751, 3
      %v6384 = vsel %vm2805, %v6381, %v6383
      %v6385 = vrot.slane %v5752, 3
      %v6386 = vsel %vm2805, %v6383, %v6385
      %v6387 = vrot.slane %v5753, 3
      %v6388 = vsel %vm2805, %v6385, %v6387
      %v6389 = vrot.slane %v5754, 3
      %v6390 = vsel %vm2805, %v6387, %v6389
      %v6391 = vrot.slane %v5755, 3
      %v6392 = vsel %vm2805, %v6389, %v6391
      %v6393 = vrot.slane %v5756, 3
      %v6394 = vsel %vm2805, %v6391, %v6393
      %v6395 = vrot.slane %v5757, 3
      %v6396 = vsel %vm2805, %v6393, %v6395
      %v6397 = vrot.slane %v5993, 3
      %v6398 = vsel %vm2805, %v6395, %v6397
      %v6400 = vsel %vm571, %v6364, 0
      %v6403 = vsel %vm571, %v6366, 0
      %v6406 = vsel %vm571, %v6368, 0
      %v6409 = vsel %vm571, %v6370, 0
      %v6412 = vsel %vm571, %v6372, 0
      %v6415 = vsel %vm571, %v6374, 0
      %v6418 = vsel %vm571, %v6376, 0
      %v6421 = vsel %vm571, %v6378, 0
      %v6424 = vsel %vm571, %v6380, 0
      %v6427 = vsel %vm571, %v6382, 0
      %v6430 = vsel %vm571, %v6384, 0
      %v6433 = vsel %vm571, %v6386, 0
      %v6436 = vsel %vm571, %v6388, 0
      %v6439 = vsel %vm571, %v6390, 0
      %v6442 = vsel %vm571, %v6392, 0
      %v6445 = vsel %vm571, %v6394, 0
      %v6448 = vsel %vm571, %v6396, 0
      %v6451 = vsel %vm571, %v6398, 0
      %v6454 = vsel %vm626, %v6358, 0
      %6456 = vmatpush.bf16.msra.mxu0 0
      %6457 = vmatpush.bf16.msra.mxu0 0
      %6458 = vmatpush.bf16.msra.mxu0 0
      %6459 = vmatpush.bf16.msra.mxu0 0
      %6460 = vmatpush.bf16.msra.mxu0 0
      %6461 = vmatpush.bf16.msra.mxu0 0
      %6462 = vmatpush.bf16.msra.mxu0 0
      %6463 = vmatpush.bf16.msra.mxu0 %v6454
      %6464 = vmatmul.bf16.gmra.mxu0 %v6400
      %v6465 = vpop.f32.mrf.mxu0
      %v6466 = vadd.f32 0.0, %v6465
      %v6467 = vpop.f32.mrf.mxu0
      %v6468 = vadd.f32 0.0, %v6467
      %6469 = vmatmul.bf16.gmra.mxu0 %v6403
      %v6470 = vpop.f32.mrf.mxu0
      %v6471 = vadd.f32 0.0, %v6470
      %v6472 = vpop.f32.mrf.mxu0
      %v6473 = vadd.f32 0.0, %v6472
      %6474 = vmatmul.bf16.gmra.mxu0 %v6406
      %v6475 = vpop.f32.mrf.mxu0
      %v6476 = vadd.f32 0.0, %v6475
      %v6477 = vpop.f32.mrf.mxu0
      %v6478 = vadd.f32 0.0, %v6477
      %6479 = vmatmul.bf16.gmra.mxu0 %v6409
      %v6480 = vpop.f32.mrf.mxu0
      %v6481 = vadd.f32 0.0, %v6480
      %v6482 = vpop.f32.mrf.mxu0
      %v6483 = vadd.f32 0.0, %v6482
      %6484 = vmatmul.bf16.gmra.mxu0 %v6412
      %v6485 = vpop.f32.mrf.mxu0
      %v6486 = vadd.f32 0.0, %v6485
      %v6487 = vpop.f32.mrf.mxu0
      %v6488 = vadd.f32 0.0, %v6487
      %6489 = vmatmul.bf16.gmra.mxu0 %v6415
      %v6490 = vpop.f32.mrf.mxu0
      %v6491 = vadd.f32 0.0, %v6490
      %v6492 = vpop.f32.mrf.mxu0
      %v6493 = vadd.f32 0.0, %v6492
      %6494 = vmatmul.bf16.gmra.mxu0 %v6418
      %v6495 = vpop.f32.mrf.mxu0
      %v6496 = vadd.f32 0.0, %v6495
      %v6497 = vpop.f32.mrf.mxu0
      %v6498 = vadd.f32 0.0, %v6497
      %6499 = vmatmul.bf16.gmra.mxu0 %v6421
      %v6500 = vpop.f32.mrf.mxu0
      %v6501 = vadd.f32 0.0, %v6500
      %v6502 = vpop.f32.mrf.mxu0
      %v6503 = vadd.f32 0.0, %v6502
      %6504 = vmatmul.bf16.gmra.mxu0 %v6424
      %v6505 = vpop.f32.mrf.mxu0
      %v6506 = vadd.f32 0.0, %v6505
      %v6507 = vpop.f32.mrf.mxu0
      %v6508 = vadd.f32 0.0, %v6507
      %6509 = vmatmul.bf16.gmra.mxu0 %v6427
      %v6510 = vpop.f32.mrf.mxu0
      %v6511 = vadd.f32 0.0, %v6510
      %v6512 = vpop.f32.mrf.mxu0
      %v6513 = vadd.f32 0.0, %v6512
      %6514 = vmatmul.bf16.gmra.mxu0 %v6430
      %v6515 = vpop.f32.mrf.mxu0
      %v6516 = vadd.f32 0.0, %v6515
      %v6517 = vpop.f32.mrf.mxu0
      %v6518 = vadd.f32 0.0, %v6517
      %6519 = vmatmul.bf16.gmra.mxu0 %v6433
      %v6520 = vpop.f32.mrf.mxu0
      %v6521 = vadd.f32 0.0, %v6520
      %v6522 = vpop.f32.mrf.mxu0
      %v6523 = vadd.f32 0.0, %v6522
      %6524 = vmatmul.bf16.gmra.mxu0 %v6436
      %v6525 = vpop.f32.mrf.mxu0
      %v6526 = vadd.f32 0.0, %v6525
      %v6527 = vpop.f32.mrf.mxu0
      %v6528 = vadd.f32 0.0, %v6527
      %6529 = vmatmul.bf16.gmra.mxu0 %v6439
      %v6530 = vpop.f32.mrf.mxu0
      %v6531 = vadd.f32 0.0, %v6530
      %v6532 = vpop.f32.mrf.mxu0
      %v6533 = vadd.f32 0.0, %v6532
      %6534 = vmatmul.bf16.gmra.mxu0 %v6442
      %v6535 = vpop.f32.mrf.mxu0
      %v6536 = vadd.f32 0.0, %v6535
      %v6537 = vpop.f32.mrf.mxu0
      %v6538 = vadd.f32 0.0, %v6537
      %6539 = vmatmul.bf16.gmra.mxu0 %v6445
      %v6540 = vpop.f32.mrf.mxu0
      %v6541 = vadd.f32 0.0, %v6540
      %v6542 = vpop.f32.mrf.mxu0
      %v6543 = vadd.f32 0.0, %v6542
      %6544 = vmatmul.bf16.gmra.mxu0 %v6448
      %v6545 = vpop.f32.mrf.mxu0
      %v6546 = vadd.f32 0.0, %v6545
      %v6547 = vpop.f32.mrf.mxu0
      %v6548 = vadd.f32 0.0, %v6547
      %6549 = vmatmul.bf16.gmra.mxu0 %v6451
      %v6550 = vpop.f32.mrf.mxu0
      %v6551 = vadd.f32 0.0, %v6550
      %v6552 = vpop.f32.mrf.mxu0
      %v6553 = vadd.f32 0.0, %v6552
      %6554 = vdwg.mxu0
      %v6555 = vadd.f32 %v6320, %v6466
      %v6556 = vadd.f32 %v6321, %v6468
      %v6557 = vadd.f32 %v6322, %v6471
      %v6558 = vadd.f32 %v6323, %v6473
      %v6559 = vadd.f32 %v6324, %v6476
      %v6560 = vadd.f32 %v6325, %v6478
      %v6561 = vadd.f32 %v6326, %v6481
      %v6562 = vadd.f32 %v6327, %v6483
      %v6563 = vadd.f32 %v6328, %v6486
      %v6564 = vadd.f32 %v6329, %v6488
      %v6565 = vadd.f32 %v6330, %v6491
      %v6566 = vadd.f32 %v6331, %v6493
      %v6567 = vadd.f32 %v6332, %v6496
      %v6568 = vadd.f32 %v6333, %v6498
      %v6569 = vadd.f32 %v6334, %v6501
      %v6570 = vadd.f32 %v6335, %v6503
      %v6571 = vadd.f32 %v6336, %v6506
      %v6572 = vadd.f32 %v6337, %v6508
      %v6573 = vadd.f32 %v6338, %v6511
      %v6574 = vadd.f32 %v6339, %v6513
      %v6575 = vadd.f32 %v6340, %v6516
      %v6576 = vadd.f32 %v6341, %v6518
      %v6577 = vadd.f32 %v6342, %v6521
      %v6578 = vadd.f32 %v6343, %v6523
      %v6579 = vadd.f32 %v6344, %v6526
      %v6580 = vadd.f32 %v6345, %v6528
      %v6581 = vadd.f32 %v6346, %v6531
      %v6582 = vadd.f32 %v6347, %v6533
      %v6583 = vadd.f32 %v6348, %v6536
      %v6584 = vadd.f32 %v6349, %v6538
      %v6585 = vadd.f32 %v6350, %v6541
      %v6586 = vadd.f32 %v6351, %v6543
      %v6587 = vadd.f32 %v6352, %v6546
      %v6588 = vadd.f32 %v6353, %v6548
      %v6589 = vadd.f32 %v6354, %v6551
      %v6590 = vadd.f32 %v6355, %v6553
      %v6591 = vld [vmem:[%s4] sm:$0x1]
      %v6593 = vperm.slane %v6591, 0
      %v6595 = vadd.f32 %v6555, %v6593
      %v6596 = vadd.f32 %v6556, %v6593
      %v6597 = vadd.f32 %v6557, %v6593
      %v6598 = vadd.f32 %v6558, %v6593
      %v6599 = vadd.f32 %v6559, %v6593
      %v6600 = vadd.f32 %v6560, %v6593
      %v6601 = vadd.f32 %v6561, %v6593
      %v6602 = vadd.f32 %v6562, %v6593
      %v6603 = vadd.f32 %v6563, %v6593
      %v6604 = vadd.f32 %v6564, %v6593
      %v6605 = vadd.f32 %v6565, %v6593
      %v6606 = vadd.f32 %v6566, %v6593
      %v6607 = vadd.f32 %v6567, %v6593
      %v6608 = vadd.f32 %v6568, %v6593
      %v6609 = vadd.f32 %v6569, %v6593
      %v6610 = vadd.f32 %v6570, %v6593
      %v6611 = vadd.f32 %v6571, %v6593
      %v6612 = vadd.f32 %v6572, %v6593
      %v6613 = vadd.f32 %v6573, %v6593
      %v6614 = vadd.f32 %v6574, %v6593
      %v6615 = vadd.f32 %v6575, %v6593
      %v6616 = vadd.f32 %v6576, %v6593
      %v6617 = vadd.f32 %v6577, %v6593
      %v6618 = vadd.f32 %v6578, %v6593
      %v6619 = vadd.f32 %v6579, %v6593
      %v6620 = vadd.f32 %v6580, %v6593
      %v6621 = vadd.f32 %v6581, %v6593
      %v6622 = vadd.f32 %v6582, %v6593
      %v6623 = vadd.f32 %v6583, %v6593
      %v6624 = vadd.f32 %v6584, %v6593
      %v6625 = vadd.f32 %v6585, %v6593
      %v6626 = vadd.f32 %v6586, %v6593
      %v6627 = vadd.f32 %v6587, %v6593
      %v6628 = vadd.f32 %v6588, %v6593
      %v6629 = vadd.f32 %v6589, %v6593
      %v6630 = vadd.f32 %v6590, %v6593
      %v6631 = vld [vmem:[%s246 + $0x8] sm:$0xe]
      %v6632 = vld [vmem:[%s246 + $0xc] sm:$0xf]
      %v6633 = vld [vmem:[%s246 + $0x10] sm:$0xf]
      %v6634 = vld [vmem:[%s246 + $0x14] sm:$0xf]
      %v6635 = vld [vmem:[%s246 + $0x18] sm:$0xf]
      %v6636 = vld [vmem:[%s246 + $0x1c] sm:$0xf]
      %v6637 = vld [vmem:[%s246 + $0x20] sm:$0xf]
      %v6638 = vld [vmem:[%s246 + $0x24] sm:$0xf]
      %v6639 = vld [vmem:[%s246 + $0x28] sm:$0xf]
      %v6640 = vld [vmem:[%s246 + $0x2c] sm:$0xf]
      %v6641 = vld [vmem:[%s246 + $0x30] sm:$0xf]
      %v6642 = vld [vmem:[%s246 + $0x34] sm:$0xf]
      %v6643 = vld [vmem:[%s246 + $0x38] sm:$0xf]
      %v6644 = vld [vmem:[%s246 + $0x3c] sm:$0xf]
      %v6645 = vld [vmem:[%s246 + $0x40] sm:$0xf]
      %v6646 = vld [vmem:[%s246 + $0x44] sm:$0xf]
      %v6647 = vld [vmem:[%s246 + $0x48] sm:$0xf]
      %v6648 = vld [vmem:[%s246 + $0x4c] sm:$0xf]
      %v6649 = vld [vmem:[%s246 + $0x50] sm:$0xf]
      %v6650 = vld [vmem:[%s246 + $0x54] sm:$0xf]
      %v6651 = vld [vmem:[%s246 + $0x58] sm:$0xf]
      %v6652 = vld [vmem:[%s246 + $0x5c] sm:$0xf]
      %v6653 = vld [vmem:[%s246 + $0x60] sm:$0xf]
      %v6654 = vld [vmem:[%s246 + $0x64] sm:$0xf]
      %v6655 = vld [vmem:[%s246 + $0x68] sm:$0xf]
      %v6656 = vld [vmem:[%s246 + $0x6c] sm:$0xf]
      %v6657 = vld [vmem:[%s246 + $0x70] sm:$0xf]
      %v6658 = vld [vmem:[%s246 + $0x74] sm:$0xf]
      %v6659 = vld [vmem:[%s246 + $0x78] sm:$0xf]
      %v6660 = vld [vmem:[%s246 + $0x7c] sm:$0xf]
      %v6661 = vld [vmem:[%s246 + $0x80] sm:$0xf]
      %v6662 = vld [vmem:[%s246 + $0x84] sm:$0xf]
      %v6663 = vld [vmem:[%s246 + $0x88] sm:$0xf]
      %v6664 = vld [vmem:[%s246 + $0x8c] sm:$0xf]
      %v6665 = vld [vmem:[%s246 + $0x90] sm:$0xf]
      %v6666 = vld [vmem:[%s246 + $0x94] sm:$0xf]
      %v6667 = vld [vmem:[%s246 + $0x98] sm:$0x3]
      %v6668 = vunpack.c.l.bf16 %v6631
      %v6669 = vunpack.c.l.bf16 %v6632
      %v6670 = vunpack.c.l.bf16 %v6633
      %v6671 = vunpack.c.l.bf16 %v6634
      %v6672 = vunpack.c.l.bf16 %v6635
      %v6673 = vunpack.c.l.bf16 %v6636
      %v6674 = vunpack.c.l.bf16 %v6637
      %v6675 = vunpack.c.l.bf16 %v6638
      %v6676 = vunpack.c.l.bf16 %v6639
      %v6677 = vunpack.c.l.bf16 %v6640
      %v6678 = vunpack.c.l.bf16 %v6641
      %v6679 = vunpack.c.l.bf16 %v6642
      %v6680 = vunpack.c.l.bf16 %v6643
      %v6681 = vunpack.c.l.bf16 %v6644
      %v6682 = vunpack.c.l.bf16 %v6645
      %v6683 = vunpack.c.l.bf16 %v6646
      %v6684 = vunpack.c.l.bf16 %v6647
      %v6685 = vunpack.c.l.bf16 %v6648
      %v6686 = vunpack.c.l.bf16 %v6649
      %v6687 = vunpack.c.l.bf16 %v6650
      %v6688 = vunpack.c.l.bf16 %v6651
      %v6689 = vunpack.c.l.bf16 %v6652
      %v6690 = vunpack.c.l.bf16 %v6653
      %v6691 = vunpack.c.l.bf16 %v6654
      %v6692 = vunpack.c.l.bf16 %v6655
      %v6693 = vunpack.c.l.bf16 %v6656
      %v6694 = vunpack.c.l.bf16 %v6657
      %v6695 = vunpack.c.l.bf16 %v6658
      %v6696 = vunpack.c.l.bf16 %v6659
      %v6697 = vunpack.c.l.bf16 %v6660
      %v6698 = vunpack.c.l.bf16 %v6661
      %v6699 = vunpack.c.l.bf16 %v6662
      %v6700 = vunpack.c.l.bf16 %v6663
      %v6701 = vunpack.c.l.bf16 %v6664
      %v6702 = vunpack.c.l.bf16 %v6665
      %v6703 = vunpack.c.l.bf16 %v6666
      %v6704 = vunpack.c.l.bf16 %v6667
      %vm6742 = vcmask 1044480
      %v6743 = vrot.slane %v6668, 3
      %v6744 = vrot.slane %v6669, 3
      %v6745 = vsel %vm6742, %v6743, %v6744
      %v6746 = vrot.slane %v6670, 3
      %v6747 = vsel %vm6742, %v6744, %v6746
      %v6748 = vrot.slane %v6671, 3
      %v6749 = vsel %vm6742, %v6746, %v6748
      %v6750 = vrot.slane %v6672, 3
      %v6751 = vsel %vm6742, %v6748, %v6750
      %v6752 = vrot.slane %v6673, 3
      %v6753 = vsel %vm6742, %v6750, %v6752
      %v6754 = vrot.slane %v6674, 3
      %v6755 = vsel %vm6742, %v6752, %v6754
      %v6756 = vrot.slane %v6675, 3
      %v6757 = vsel %vm6742, %v6754, %v6756
      %v6758 = vrot.slane %v6676, 3
      %v6759 = vsel %vm6742, %v6756, %v6758
      %v6760 = vrot.slane %v6677, 3
      %v6761 = vsel %vm6742, %v6758, %v6760
      %v6762 = vrot.slane %v6678, 3
      %v6763 = vsel %vm6742, %v6760, %v6762
      %v6764 = vrot.slane %v6679, 3
      %v6765 = vsel %vm6742, %v6762, %v6764
      %v6766 = vrot.slane %v6680, 3
      %v6767 = vsel %vm6742, %v6764, %v6766
      %v6768 = vrot.slane %v6681, 3
      %v6769 = vsel %vm6742, %v6766, %v6768
      %v6770 = vrot.slane %v6682, 3
      %v6771 = vsel %vm6742, %v6768, %v6770
      %v6772 = vrot.slane %v6683, 3
      %v6773 = vsel %vm6742, %v6770, %v6772
      %v6774 = vrot.slane %v6684, 3
      %v6775 = vsel %vm6742, %v6772, %v6774
      %v6776 = vrot.slane %v6685, 3
      %v6777 = vsel %vm6742, %v6774, %v6776
      %v6778 = vrot.slane %v6686, 3
      %v6779 = vsel %vm6742, %v6776, %v6778
      %v6780 = vrot.slane %v6687, 3
      %v6781 = vsel %vm6742, %v6778, %v6780
      %v6782 = vrot.slane %v6688, 3
      %v6783 = vsel %vm6742, %v6780, %v6782
      %v6784 = vrot.slane %v6689, 3
      %v6785 = vsel %vm6742, %v6782, %v6784
      %v6786 = vrot.slane %v6690, 3
      %v6787 = vsel %vm6742, %v6784, %v6786
      %v6788 = vrot.slane %v6691, 3
      %v6789 = vsel %vm6742, %v6786, %v6788
      %v6790 = vrot.slane %v6692, 3
      %v6791 = vsel %vm6742, %v6788, %v6790
      %v6792 = vrot.slane %v6693, 3
      %v6793 = vsel %vm6742, %v6790, %v6792
      %v6794 = vrot.slane %v6694, 3
      %v6795 = vsel %vm6742, %v6792, %v6794
      %v6796 = vrot.slane %v6695, 3
      %v6797 = vsel %vm6742, %v6794, %v6796
      %v6798 = vrot.slane %v6696, 3
      %v6799 = vsel %vm6742, %v6796, %v6798
      %v6800 = vrot.slane %v6697, 3
      %v6801 = vsel %vm6742, %v6798, %v6800
      %v6802 = vrot.slane %v6698, 3
      %v6803 = vsel %vm6742, %v6800, %v6802
      %v6804 = vrot.slane %v6699, 3
      %v6805 = vsel %vm6742, %v6802, %v6804
      %v6806 = vrot.slane %v6700, 3
      %v6807 = vsel %vm6742, %v6804, %v6806
      %v6808 = vrot.slane %v6701, 3
      %v6809 = vsel %vm6742, %v6806, %v6808
      %v6810 = vrot.slane %v6702, 3
      %v6811 = vsel %vm6742, %v6808, %v6810
      %v6812 = vrot.slane %v6703, 3
      %v6813 = vsel %vm6742, %v6810, %v6812
      %v6814 = vrot.slane %v6704, 3
      %v6815 = vsel %vm6742, %v6812, %v6814
      %v6852 = vadd.f32 %v6595, %v6745
      %v6853 = vadd.f32 %v6596, %v6747
      %v6854 = vadd.f32 %v6597, %v6749
      %v6855 = vadd.f32 %v6598, %v6751
      %v6856 = vadd.f32 %v6599, %v6753
      %v6857 = vadd.f32 %v6600, %v6755
      %v6858 = vadd.f32 %v6601, %v6757
      %v6859 = vadd.f32 %v6602, %v6759
      %v6860 = vadd.f32 %v6603, %v6761
      %v6861 = vadd.f32 %v6604, %v6763
      %v6862 = vadd.f32 %v6605, %v6765
      %v6863 = vadd.f32 %v6606, %v6767
      %v6864 = vadd.f32 %v6607, %v6769
      %v6865 = vadd.f32 %v6608, %v6771
      %v6866 = vadd.f32 %v6609, %v6773
      %v6867 = vadd.f32 %v6610, %v6775
      %v6868 = vadd.f32 %v6611, %v6777
      %v6869 = vadd.f32 %v6612, %v6779
      %v6870 = vadd.f32 %v6613, %v6781
      %v6871 = vadd.f32 %v6614, %v6783
      %v6872 = vadd.f32 %v6615, %v6785
      %v6873 = vadd.f32 %v6616, %v6787
      %v6874 = vadd.f32 %v6617, %v6789
      %v6875 = vadd.f32 %v6618, %v6791
      %v6876 = vadd.f32 %v6619, %v6793
      %v6877 = vadd.f32 %v6620, %v6795
      %v6878 = vadd.f32 %v6621, %v6797
      %v6879 = vadd.f32 %v6622, %v6799
      %v6880 = vadd.f32 %v6623, %v6801
      %v6881 = vadd.f32 %v6624, %v6803
      %v6882 = vadd.f32 %v6625, %v6805
      %v6883 = vadd.f32 %v6626, %v6807
      %v6884 = vadd.f32 %v6627, %v6809
      %v6885 = vadd.f32 %v6628, %v6811
      %v6886 = vadd.f32 %v6629, %v6813
      %v6887 = vadd.f32 %v6630, %v6815
      %v6888 = vmax.f32 %v6852, 0.0
      %v6889 = vmax.f32 %v6853, 0.0
      %v6890 = vmax.f32 %v6854, 0.0
      %v6891 = vmax.f32 %v6855, 0.0
      %v6892 = vmax.f32 %v6856, 0.0
      %v6893 = vmax.f32 %v6857, 0.0
      %v6894 = vmax.f32 %v6858, 0.0
      %v6895 = vmax.f32 %v6859, 0.0
      %v6896 = vmax.f32 %v6860, 0.0
      %v6897 = vmax.f32 %v6861, 0.0
      %v6898 = vmax.f32 %v6862, 0.0
      %v6899 = vmax.f32 %v6863, 0.0
      %v6900 = vmax.f32 %v6864, 0.0
      %v6901 = vmax.f32 %v6865, 0.0
      %v6902 = vmax.f32 %v6866, 0.0
      %v6903 = vmax.f32 %v6867, 0.0
      %v6904 = vmax.f32 %v6868, 0.0
      %v6905 = vmax.f32 %v6869, 0.0
      %v6906 = vmax.f32 %v6870, 0.0
      %v6907 = vmax.f32 %v6871, 0.0
      %v6908 = vmax.f32 %v6872, 0.0
      %v6909 = vmax.f32 %v6873, 0.0
      %v6910 = vmax.f32 %v6874, 0.0
      %v6911 = vmax.f32 %v6875, 0.0
      %v6912 = vmax.f32 %v6876, 0.0
      %v6913 = vmax.f32 %v6877, 0.0
      %v6914 = vmax.f32 %v6878, 0.0
      %v6915 = vmax.f32 %v6879, 0.0
      %v6916 = vmax.f32 %v6880, 0.0
      %v6917 = vmax.f32 %v6881, 0.0
      %v6918 = vmax.f32 %v6882, 0.0
      %v6919 = vmax.f32 %v6883, 0.0
      %v6920 = vmax.f32 %v6884, 0.0
      %v6921 = vmax.f32 %v6885, 0.0
      %v6922 = vmax.f32 %v6886, 0.0
      %v6923 = vmax.f32 %v6887, 0.0
      %6924 = vst.msk [vmem:[%s251] sm:$0xff] %vm571, %v6888
      %6925 = vst.msk [vmem:[%s251 + $0x8] sm:$0xff] %vm571, %v6889
      %6926 = vst.msk [vmem:[%s251 + $0x10] sm:$0xff] %vm571, %v6890
      %6927 = vst.msk [vmem:[%s251 + $0x18] sm:$0xff] %vm571, %v6891
      %6928 = vst.msk [vmem:[%s251 + $0x20] sm:$0xff] %vm571, %v6892
      %6929 = vst.msk [vmem:[%s251 + $0x28] sm:$0xff] %vm571, %v6893
      %6930 = vst.msk [vmem:[%s251 + $0x30] sm:$0xff] %vm571, %v6894
      %6931 = vst.msk [vmem:[%s251 + $0x38] sm:$0xff] %vm571, %v6895
      %6932 = vst.msk [vmem:[%s251 + $0x40] sm:$0xff] %vm571, %v6896
      %6933 = vst.msk [vmem:[%s251 + $0x48] sm:$0xff] %vm571, %v6897
      %6934 = vst.msk [vmem:[%s251 + $0x50] sm:$0xff] %vm571, %v6898
      %6935 = vst.msk [vmem:[%s251 + $0x58] sm:$0xff] %vm571, %v6899
      %6936 = vst.msk [vmem:[%s251 + $0x60] sm:$0xff] %vm571, %v6900
      %6937 = vst.msk [vmem:[%s251 + $0x68] sm:$0xff] %vm571, %v6901
      %6938 = vst.msk [vmem:[%s251 + $0x70] sm:$0xff] %vm571, %v6902
      %6939 = vst.msk [vmem:[%s251 + $0x78] sm:$0xff] %vm571, %v6903
      %6940 = vst.msk [vmem:[%s251 + $0x80] sm:$0xff] %vm571, %v6904
      %6941 = vst.msk [vmem:[%s251 + $0x88] sm:$0xff] %vm571, %v6905
      %6942 = vst.msk [vmem:[%s251 + $0x90] sm:$0xff] %vm571, %v6906
      %6943 = vst.msk [vmem:[%s251 + $0x98] sm:$0xff] %vm571, %v6907
      %6944 = vst.msk [vmem:[%s251 + $0xa0] sm:$0xff] %vm571, %v6908
      %6945 = vst.msk [vmem:[%s251 + $0xa8] sm:$0xff] %vm571, %v6909
      %6946 = vst.msk [vmem:[%s251 + $0xb0] sm:$0xff] %vm571, %v6910
      %6947 = vst.msk [vmem:[%s251 + $0xb8] sm:$0xff] %vm571, %v6911
      %6948 = vst.msk [vmem:[%s251 + $0xc0] sm:$0xff] %vm571, %v6912
      %6949 = vst.msk [vmem:[%s251 + $0xc8] sm:$0xff] %vm571, %v6913
      %6950 = vst.msk [vmem:[%s251 + $0xd0] sm:$0xff] %vm571, %v6914
      %6951 = vst.msk [vmem:[%s251 + $0xd8] sm:$0xff] %vm571, %v6915
      %6952 = vst.msk [vmem:[%s251 + $0xe0] sm:$0xff] %vm571, %v6916
      %6953 = vst.msk [vmem:[%s251 + $0xe8] sm:$0xff] %vm571, %v6917
      %6954 = vst.msk [vmem:[%s251 + $0xf0] sm:$0xff] %vm571, %v6918
      %6955 = vst.msk [vmem:[%s251 + $0xf8] sm:$0xff] %vm571, %v6919
      %6956 = vst.msk [vmem:[%s251 + $0x100] sm:$0xff] %vm571, %v6920
      %6957 = vst.msk [vmem:[%s251 + $0x108] sm:$0xff] %vm571, %v6921
      %6958 = vst.msk [vmem:[%s251 + $0x110] sm:$0xff] %vm571, %v6922
      %6959 = vst.msk [vmem:[%s251 + $0x118] sm:$0xff] %vm571, %v6923
      %p6960 = scmp.lt.s32.totalorder %s17, 1
      %s6961 = scalar_select %p6960, %s17, 1
      %s6962 = smul.addr %s6961, 36
      %s6963 = smul.addr %s6962, 8
      %s6964 = scalar_lea.vmem %s6, %s6963
      // Predicated region
      $region45: #{tpu_custom_call.1} parent=43 // pred_check
        %p6965 = pneg %p166
      $region46: #{tpu_custom_call.1} parent=43 // pred_check_branch
        %6967 = sbr.rel (%p6965) target = $region48
      $region47: #{tpu_custom_call.1} parent=43 // pred_region
        _
      $region48: #{tpu_custom_call.1} parent=43 // pred_fallthru
        _
    $region44: #{tpu_custom_call.1} parent=5 // pred_fallthru
      _
    %p6968 = scmp.le.s32.totalorder 2, %s12
    // Predicated region
    $region49: #{tpu_custom_call.1} parent=5 // pred_check
      %p6969 = pneg %p6968
    $region50: #{tpu_custom_call.1} parent=5 // pred_check_branch
      %6971 = sbr.rel (%p6969) target = $region52
    $region51: #{tpu_custom_call.1} parent=5 // pred_region
      %s6972 = ssub.s32 %s12, 2
      // Predicated region
      $region53: #{tpu_custom_call.1} parent=51 // pred_check
        %p6973 = pneg %p172
      $region54: #{tpu_custom_call.1} parent=51 // pred_check_branch
        %6975 = sbr.rel (%p6973) target = $region56
      $region55: #{tpu_custom_call.1} parent=51 // pred_region
        %p6976 = scmp.lt.s32.totalorder %s18, 1
        %s6977 = scalar_select %p6976, %s18, 1
        %s6978 = smul.addr %s6977, 36
        %s6979 = smul.addr %s6978, 8
        %s6980 = scalar_lea.vmem %s6, %s6979
      $region56: #{tpu_custom_call.1} parent=51 // pred_fallthru
        _
    $region52: #{tpu_custom_call.1} parent=5 // pred_fallthru
      _
  $region6: #{tpu_custom_call.1} parent=0 // loop_footer
    %s16 = sadd.s32 1, %s12
  $region7: #{tpu_custom_call.1} parent=0 // loop_footer_branch
    %11 = sbr.rel target = $region3
  $region8: #{tpu_custom_call.1} parent=0 // loop_exit
    _

</llo_original>
